<compile_context>
chip_gen: v7x
topology: tpu7x:2x2x1
jax: 0.10.0
libtpu: 0.0.40
codegen_flags: <defaults>
</compile_context>

<pallas_src>
import jax
import jax.numpy as jnp
from jax.experimental import pallas as pl
from jax.experimental.pallas import tpu as pltpu

NUM_CLASSES = 4
LANES = 128


def surv_kernel(x_ref, w1_ref, b1_ref, w2_ref, b2_ref, w3_ref, b3_ref, out_ref):
    # x block: (TB, C, S) — AvgPool3d/MaxPool3d((8,8,8),1) with full-extent
    # windows == mean/max over the flattened spatial axis.
    x = x_ref[...].astype(jnp.float32)
    avg = jnp.mean(x, axis=-1)                       # (TB, C)
    mx = jnp.max(x, axis=-1)                         # (TB, C)
    c = avg.shape[1]

    def elu(v):  # nn.ELU(alpha=1.0)
        # TODO(synk): expm1 would be marginally more accurate near 0; exp(min(v,0))-1
        # keeps the unselected branch finite and uses ops with known Mosaic lowerings.
        return jnp.where(v > 0, v, jnp.exp(jnp.minimum(v, 0.0)) - 1.0)

    # Split Linear(768, 256): feat = [avg, max]  =>  avg @ W1[:C] + max @ W1[C:].
    h1 = elu(jnp.dot(avg, w1_ref[0:c, :], preferred_element_type=jnp.float32)
             + jnp.dot(mx, w1_ref[c:2 * c, :], preferred_element_type=jnp.float32)
             + b1_ref[...])
    # TODO(synk): AlphaDropout(p=0.2) is identity in eval mode; training-mode
    # stochastic alpha-dropout masking is not implemented here.

    # Layer 2 padded to 128 output lanes (lanes >= 64 have zero W/b -> elu(0)=0).
    h2 = elu(jnp.dot(h1, w2_ref[...],
                     preferred_element_type=jnp.float32) + b2_ref[...])    # (TB, 128)

    # Classifier padded to 128x128 (zero rows for padded h2 lanes, zero cols >= 4).
    logits = jnp.dot(h2, w3_ref[...],
                     preferred_element_type=jnp.float32) + b3_ref[...]     # (TB, 128)

    tb = logits.shape[0]
    lane = jax.lax.broadcasted_iota(jnp.int32, (tb, LANES), 1)
    valid = lane < NUM_CLASSES

    hz = jax.nn.sigmoid(logits)                      # lanes >= 4 hold sigmoid(0); masked below
    hz_pad = jnp.where(valid, hz, 0.0)

    # S = cumprod(1 - hazards, dim=1): fully in registers.
    s1 = 1.0 - hz[:, 0:1]
    s2 = s1 * (1.0 - hz[:, 1:2])
    s3 = s2 * (1.0 - hz[:, 2:3])
    s4 = s3 * (1.0 - hz[:, 3:4])
    s_pad = jnp.where(lane == 0, s1,
            jnp.where(lane == 1, s2,
            jnp.where(lane == 2, s3,
            jnp.where(lane == 3, s4, 0.0))))

    # Y_hat = torch.topk(logits, 1, dim=1)[1] == first argmax over classes.
    # (Exact through the float32 round-trip because class indices < 2^24.)
    neg = jnp.where(valid, logits, jnp.float32(-1e30))
    max_val = jnp.max(neg, axis=1, keepdims=True)
    idx = jnp.min(jnp.where(neg == max_val, lane, LANES),
                  axis=1, keepdims=True)             # (TB, 1) int32
    y_b = jnp.broadcast_to(idx.astype(jnp.float32), (tb, LANES))

    # Single lane-dense store: [hazards | S | Y_hat] -> (TB, 3*128).
    out_ref[...] = jnp.concatenate([hz_pad, s_pad, y_b], axis=1)


def init_params(key):
    """Deterministic Linear params (W stored as (in, out), b as (1, out))."""
    def linear(k, fan_in, fan_out):
        kw, kb = jax.random.split(k)
        bound = 1.0 / jnp.sqrt(jnp.float32(fan_in))
        w = jax.random.uniform(kw, (fan_in, fan_out), jnp.float32, -bound, bound)
        b = jax.random.uniform(kb, (1, fan_out), jnp.float32, -bound, bound)
        return w, b

    k1, k2, k3 = jax.random.split(key, 3)
    w1, b1 = linear(k1, 768, 256)
    w2, b2 = linear(k2, 256, 64)
    w3, b3 = linear(k3, 64, NUM_CLASSES)
    return w1, b1, w2, b2, w3, b3


def _pick_batch_tile(B):
    # x block bytes = TB * 384 * 512 * 4B = TB * 0.75 MiB (double-buffered).
    #  * TB=16 -> ~24 MiB x + ~2 MiB weights: fits the 40 MiB scoped limit and
    #    v7x's 64 MiB physical VMEM with headroom.
    #  * TB=8 for small/medium batches keeps grid >= 2 once B > 8 so both v7x
    #    TensorCores get work under the "parallel" batch axis.
    #  * B <= 8: single block, no overhang / no padded HBM traffic.
    if B <= 8:
        return B
    return 16 if B > 24 else 8


def surv_forward(x4_1, params):
    B, C, D, H, W = x4_1.shape
    assert (D, H, W) == (8, 8, 8) and 2 * C == 768, \
        "Linear(768, 256) implies C=384 with an 8x8x8 full-extent pooling window"
    S_sp = D * H * W
    xf = x4_1.reshape(B, C, S_sp)                    # contiguous reshape (free)

    w1, b1, w2, b2, w3, b3 = params
    # Pad layer 2 and the classifier to full 128-lane outputs (zero-filled):
    # full-lane MXU results + unmasked vregs through ELU / sigmoid / stores.
    w2p = jnp.zeros((256, LANES), jnp.float32).at[:, :64].set(w2)
    b2p = jnp.zeros((1, LANES), jnp.float32).at[:, :64].set(b2)
    w3p = jnp.zeros((LANES, LANES), jnp.float32).at[:64, :NUM_CLASSES].set(w3)
    b3p = jnp.zeros((1, LANES), jnp.float32).at[:, :NUM_CLASSES].set(b3)

    TB = _pick_batch_tile(B)
    grid = (pl.cdiv(B, TB),)                         # tail tile is masked, not padded

    itemsize = jnp.dtype(xf.dtype).itemsize
    cost = pl.CostEstimate(
        flops=B * (2 * C * S_sp + 2 * (768 * 256 + 256 * LANES + LANES * LANES)),
        transcendentals=B * (256 + LANES + LANES),
        bytes_accessed=B * C * S_sp * itemsize
        + 4 * (768 * 256 + 256 + 256 * LANES + LANES + LANES * LANES + LANES)
        + B * 3 * LANES * 4,
    )

    packed = pl.pallas_call(
        surv_kernel,
        out_shape=jax.ShapeDtypeStruct((B, 3 * LANES), jnp.float32),
        grid_spec=pltpu.PrefetchScalarGridSpec(
            num_scalar_prefetch=0,
            grid=grid,
            in_specs=[
                # x: one (TB, 384, 512) tile per grid step, double-buffered.
                pl.BlockSpec((TB, C, S_sp), lambda i: (i, 0, 0)),
                # Weights / biases: constant block index -> fetched once and
                # kept VMEM-resident (the pipeline skips re-DMA on revisits).
                pl.BlockSpec((768, 256), lambda i: (0, 0)),
                pl.BlockSpec((1, 256), lambda i: (0, 0)),
                pl.BlockSpec((256, LANES), lambda i: (0, 0)),
                pl.BlockSpec((1, LANES), lambda i: (0, 0)),
                pl.BlockSpec((LANES, LANES), lambda i: (0, 0)),
                pl.BlockSpec((1, LANES), lambda i: (0, 0)),
            ],
            out_specs=pl.BlockSpec((TB, 3 * LANES), lambda i: (i, 0)),
        ),
        compiler_params=pltpu.CompilerParams(
            dimension_semantics=("parallel",),       # batch tiles independent (v7x megacore)
            vmem_limit_bytes=40 * 1024 * 1024,       # > v5e 16 MiB / v7x 32 MiB defaults
        ),
        cost_estimate=cost,
    )(xf, w1, b1, w2p, b2p, w3p, b3p)

    hazards = packed[:, 0:NUM_CLASSES]
    S = packed[:, LANES:LANES + NUM_CLASSES]
    y_hat = packed[:, 2 * LANES:2 * LANES + 1].astype(jnp.int32)
    return hazards, S, y_hat


def reference_forward(x4_1, params):
    """Pure-JAX reference matching the PyTorch module (eval mode)."""
    w1, b1, w2, b2, w3, b3 = params
    B, C = x4_1.shape[:2]
    xf = x4_1.reshape(B, C, -1).astype(jnp.float32)
    feat = jnp.concatenate([xf.mean(-1), xf.max(-1)], axis=1)
    elu = lambda v: jnp.where(v > 0, v, jnp.expm1(jnp.minimum(v, 0.0)))
    h1 = elu(feat @ w1 + b1)
    h2 = elu(h1 @ w2 + b2)
    logits = h2 @ w3 + b3
    hz = jax.nn.sigmoid(logits)
    S = jnp.cumprod(1.0 - hz, axis=1)
    y = jnp.argmax(logits, axis=1)[:, None].astype(jnp.int32)
    return hz, S, y


if __name__ == "__main__":
    key = jax.random.PRNGKey(0)
    kx, kp = jax.random.split(key)
    # Smallest shape consistent with Linear(768, ...): (B=2, C=384, 8, 8, 8)
    x4_1 = jax.random.normal(kx, (2, 384, 8, 8, 8), dtype=jnp.float32)
    params = init_params(kp)

    fwd = jax.jit(surv_forward)
    hazards, S, y_hat = jax.block_until_ready(fwd(x4_1, params))

    assert hazards.shape == (2, NUM_CLASSES)
    assert S.shape == (2, NUM_CLASSES)
    assert y_hat.shape == (2, 1) and y_hat.dtype == jnp.int32

    hz_r, S_r, y_r = reference_forward(x4_1, params)
    assert jnp.allclose(hazards, hz_r, atol=2e-2, rtol=2e-2), "hazards mismatch"
    assert jnp.allclose(S, S_r, atol=2e-2, rtol=2e-2), "survival curve mismatch"
    assert jnp.array_equal(y_hat, y_r), "Y_hat mismatch"

    print("KERNEL_OK")
</pallas_src>

<mosaic_0001>
module attributes {stable_mosaic.version = 11 : i64} {
  func.func @surv_kernel(%arg0: i32, %arg1: memref<2x384x512xf32, #tpu.memory_space<vmem>>, %arg2: memref<768x256xf32, #tpu.memory_space<vmem>>, %arg3: memref<1x256xf32, #tpu.memory_space<vmem>>, %arg4: memref<256x128xf32, #tpu.memory_space<vmem>>, %arg5: memref<1x128xf32, #tpu.memory_space<vmem>>, %arg6: memref<128x128xf32, #tpu.memory_space<vmem>>, %arg7: memref<1x128xf32, #tpu.memory_space<vmem>>, %arg8: memref<2x384xf32, #tpu.memory_space<vmem>>) attributes {dimension_semantics = [#tpu.dimension_semantics<parallel>], iteration_bounds = array<i64: 1>, scalar_prefetch = 0 : i64, scratch_operands = 0 : i64, tpu.core_type = #tpu.core_type<tc>, window_params = [{transform_indices = @transform_0, window_bounds = array<i64: 2, 384, 512>}, {pipeline_mode = #tpu.pipeline_mode<synchronous>, transform_indices = @transform_1, window_bounds = array<i64: 768, 256>}, {pipeline_mode = #tpu.pipeline_mode<synchronous>, transform_indices = @transform_2, window_bounds = array<i64: 1, 256>}, {pipeline_mode = #tpu.pipeline_mode<synchronous>, transform_indices = @transform_3, window_bounds = array<i64: 256, 128>}, {pipeline_mode = #tpu.pipeline_mode<synchronous>, transform_indices = @transform_4, window_bounds = array<i64: 1, 128>}, {pipeline_mode = #tpu.pipeline_mode<synchronous>, transform_indices = @transform_5, window_bounds = array<i64: 128, 128>}, {pipeline_mode = #tpu.pipeline_mode<synchronous>, transform_indices = @transform_6, window_bounds = array<i64: 1, 128>}, {transform_indices = @transform_7, window_bounds = array<i64: 2, 384>}]} {
    %c0 = arith.constant 0 : index
    %c0_0 = arith.constant 0 : index
    %c0_1 = arith.constant 0 : index
    %0 = vector.load %arg1[%c0, %c0_0, %c0_1] : memref<2x384x512xf32, #tpu.memory_space<vmem>>, vector<2x384x512xf32>
    %cst = arith.constant dense<0.000000e+00> : vector<2x384xf32>
    %1 = vector.multi_reduction <add>, %0, %cst [2] : vector<2x384x512xf32> to vector<2x384xf32>
    %cst_2 = arith.constant 5.120000e+02 : f32
    %2 = vector.broadcast %cst_2 : f32 to vector<2x384xf32>
    %3 = arith.divf %1, %2 : vector<2x384xf32>
    %cst_3 = arith.constant dense<0xFF800000> : vector<2x384xf32>
    %4 = vector.multi_reduction <maximumf>, %0, %cst_3 [2] : vector<2x384x512xf32> to vector<2x384xf32>
    %c0_4 = arith.constant 0 : index
    %c0_5 = arith.constant 0 : index
    %5 = vector.load %arg2[%c0_4, %c0_5] : memref<768x256xf32, #tpu.memory_space<vmem>>, vector<384x256xf32>
    %cst_6 = arith.constant dense<0.000000e+00> : vector<2x256xf32>
    %6 = tpu.matmul %3, %5, %cst_6 {dimension_numbers = #tpu.dot_dimension_numbers<[1], [0], [0], [1], [0, 0, 1, 1], [], []>} : vector<2x384xf32>, vector<384x256xf32>, vector<2x256xf32> -> vector<2x256xf32>
    %c384 = arith.constant 384 : index
    %c0_7 = arith.constant 0 : index
    %7 = vector.load %arg2[%c384, %c0_7] : memref<768x256xf32, #tpu.memory_space<vmem>>, vector<384x256xf32>
    %cst_8 = arith.constant dense<0.000000e+00> : vector<2x256xf32>
    %8 = tpu.matmul %4, %7, %cst_8 {dimension_numbers = #tpu.dot_dimension_numbers<[1], [0], [0], [1], [0, 0, 1, 1], [], []>} : vector<2x384xf32>, vector<384x256xf32>, vector<2x256xf32> -> vector<2x256xf32>
    %9 = arith.addf %6, %8 : vector<2x256xf32>
    %c0_9 = arith.constant 0 : index
    %c0_10 = arith.constant 0 : index
    %10 = vector.load %arg3[%c0_9, %c0_10] : memref<1x256xf32, #tpu.memory_space<vmem>>, vector<1x256xf32>
    %11 = vector.broadcast %10 : vector<1x256xf32> to vector<2x256xf32>
    %12 = arith.addf %9, %11 : vector<2x256xf32>
    %cst_11 = arith.constant 0.000000e+00 : f32
    %13 = vector.broadcast %cst_11 : f32 to vector<2x256xf32>
    %14 = arith.cmpf ogt, %12, %13 : vector<2x256xf32>
    %cst_12 = arith.constant 0.000000e+00 : f32
    %15 = vector.broadcast %cst_12 : f32 to vector<2x256xf32>
    %16 = arith.minimumf %12, %15 : vector<2x256xf32>
    %17 = math.exp %16 : vector<2x256xf32>
    %cst_13 = arith.constant 1.000000e+00 : f32
    %18 = vector.broadcast %cst_13 : f32 to vector<2x256xf32>
    %19 = arith.subf %17, %18 : vector<2x256xf32>
    %20 = arith.select %14, %12, %19 : vector<2x256xi1>, vector<2x256xf32>
    %c0_14 = arith.constant 0 : index
    %c0_15 = arith.constant 0 : index
    %21 = vector.load %arg4[%c0_14, %c0_15] : memref<256x128xf32, #tpu.memory_space<vmem>>, vector<256x128xf32>
    %cst_16 = arith.constant dense<0.000000e+00> : vector<2x128xf32>
    %22 = tpu.matmul %20, %21, %cst_16 {dimension_numbers = #tpu.dot_dimension_numbers<[1], [0], [0], [1], [0, 0, 1, 1], [], []>} : vector<2x256xf32>, vector<256x128xf32>, vector<2x128xf32> -> vector<2x128xf32>
    %c0_17 = arith.constant 0 : index
    %c0_18 = arith.constant 0 : index
    %23 = vector.load %arg5[%c0_17, %c0_18] : memref<1x128xf32, #tpu.memory_space<vmem>>, vector<1x128xf32>
    %24 = vector.broadcast %23 : vector<1x128xf32> to vector<2x128xf32>
    %25 = arith.addf %22, %24 : vector<2x128xf32>
    %cst_19 = arith.constant 0.000000e+00 : f32
    %26 = vector.broadcast %cst_19 : f32 to vector<2x128xf32>
    %27 = arith.cmpf ogt, %25, %26 : vector<2x128xf32>
    %cst_20 = arith.constant 0.000000e+00 : f32
    %28 = vector.broadcast %cst_20 : f32 to vector<2x128xf32>
    %29 = arith.minimumf %25, %28 : vector<2x128xf32>
    %30 = math.exp %29 : vector<2x128xf32>
    %cst_21 = arith.constant 1.000000e+00 : f32
    %31 = vector.broadcast %cst_21 : f32 to vector<2x128xf32>
    %32 = arith.subf %30, %31 : vector<2x128xf32>
    %33 = arith.select %27, %25, %32 : vector<2x128xi1>, vector<2x128xf32>
    %c0_22 = arith.constant 0 : index
    %c0_23 = arith.constant 0 : index
    %34 = vector.load %arg6[%c0_22, %c0_23] : memref<128x128xf32, #tpu.memory_space<vmem>>, vector<128x128xf32>
    %cst_24 = arith.constant dense<0.000000e+00> : vector<2x128xf32>
    %35 = tpu.matmul %33, %34, %cst_24 {dimension_numbers = #tpu.dot_dimension_numbers<[1], [0], [0], [1], [0, 0, 1, 1], [], []>} : vector<2x128xf32>, vector<128x128xf32>, vector<2x128xf32> -> vector<2x128xf32>
    %c0_25 = arith.constant 0 : index
    %c0_26 = arith.constant 0 : index
    %36 = vector.load %arg7[%c0_25, %c0_26] : memref<1x128xf32, #tpu.memory_space<vmem>>, vector<1x128xf32>
    %37 = vector.broadcast %36 : vector<1x128xf32> to vector<2x128xf32>
    %38 = arith.addf %35, %37 : vector<2x128xf32>
    %39 = tpu.iota {dimensions = array<i32: 1>} : vector<2x128xi32>
    %c4_i32 = arith.constant 4 : i32
    %40 = vector.broadcast %c4_i32 : i32 to vector<2x128xi32>
    %41 = arith.cmpi slt, %39, %40 : vector<2x128xi32>
    %42 = arith.negf %38 : vector<2x128xf32>
    %43 = math.exp %42 : vector<2x128xf32>
    %cst_27 = arith.constant 1.000000e+00 : f32
    %44 = vector.broadcast %cst_27 : f32 to vector<2x128xf32>
    %45 = arith.addf %44, %43 : vector<2x128xf32>
    %46 = arith.divf %44, %45 : vector<2x128xf32>
    %cst_28 = arith.constant 0.000000e+00 : f32
    %47 = vector.broadcast %cst_28 : f32 to vector<2x128xf32>
    %48 = arith.select %41, %46, %47 : vector<2x128xi1>, vector<2x128xf32>
    %49 = vector.extract_strided_slice %46 {offsets = [0, 0], sizes = [2, 1], strides = [1, 1]} : vector<2x128xf32> to vector<2x1xf32>
    %cst_29 = arith.constant 1.000000e+00 : f32
    %50 = vector.broadcast %cst_29 : f32 to vector<2x1xf32>
    %51 = arith.subf %50, %49 : vector<2x1xf32>
    %52 = vector.extract_strided_slice %46 {offsets = [0, 1], sizes = [2, 1], strides = [1, 1]} : vector<2x128xf32> to vector<2x1xf32>
    %cst_30 = arith.constant 1.000000e+00 : f32
    %53 = vector.broadcast %cst_30 : f32 to vector<2x1xf32>
    %54 = arith.subf %53, %52 : vector<2x1xf32>
    %55 = arith.mulf %51, %54 : vector<2x1xf32>
    %56 = vector.extract_strided_slice %46 {offsets = [0, 2], sizes = [2, 1], strides = [1, 1]} : vector<2x128xf32> to vector<2x1xf32>
    %cst_31 = arith.constant 1.000000e+00 : f32
    %57 = vector.broadcast %cst_31 : f32 to vector<2x1xf32>
    %58 = arith.subf %57, %56 : vector<2x1xf32>
    %59 = arith.mulf %55, %58 : vector<2x1xf32>
    %60 = vector.extract_strided_slice %46 {offsets = [0, 3], sizes = [2, 1], strides = [1, 1]} : vector<2x128xf32> to vector<2x1xf32>
    %cst_32 = arith.constant 1.000000e+00 : f32
    %61 = vector.broadcast %cst_32 : f32 to vector<2x1xf32>
    %62 = arith.subf %61, %60 : vector<2x1xf32>
    %63 = arith.mulf %59, %62 : vector<2x1xf32>
    %c0_i32 = arith.constant 0 : i32
    %64 = vector.broadcast %c0_i32 : i32 to vector<2x128xi32>
    %65 = arith.cmpi eq, %39, %64 : vector<2x128xi32>
    %c1_i32 = arith.constant 1 : i32
    %66 = vector.broadcast %c1_i32 : i32 to vector<2x128xi32>
    %67 = arith.cmpi eq, %39, %66 : vector<2x128xi32>
    %c2_i32 = arith.constant 2 : i32
    %68 = vector.broadcast %c2_i32 : i32 to vector<2x128xi32>
    %69 = arith.cmpi eq, %39, %68 : vector<2x128xi32>
    %c3_i32 = arith.constant 3 : i32
    %70 = vector.broadcast %c3_i32 : i32 to vector<2x128xi32>
    %71 = arith.cmpi eq, %39, %70 : vector<2x128xi32>
    %cst_33 = arith.constant 0.000000e+00 : f32
    %72 = vector.shape_cast %63 : vector<2x1xf32> to vector<2x1xf32>
    %73 = vector.broadcast %72 : vector<2x1xf32> to vector<2x128xf32>
    %74 = vector.broadcast %cst_33 : f32 to vector<2x128xf32>
    %75 = arith.select %71, %73, %74 : vector<2x128xi1>, vector<2x128xf32>
    %76 = vector.shape_cast %59 : vector<2x1xf32> to vector<2x1xf32>
    %77 = vector.broadcast %76 : vector<2x1xf32> to vector<2x128xf32>
    %78 = arith.select %69, %77, %75 : vector<2x128xi1>, vector<2x128xf32>
    %79 = vector.shape_cast %55 : vector<2x1xf32> to vector<2x1xf32>
    %80 = vector.broadcast %79 : vector<2x1xf32> to vector<2x128xf32>
    %81 = arith.select %67, %80, %78 : vector<2x128xi1>, vector<2x128xf32>
    %82 = vector.shape_cast %51 : vector<2x1xf32> to vector<2x1xf32>
    %83 = vector.broadcast %82 : vector<2x1xf32> to vector<2x128xf32>
    %84 = arith.select %65, %83, %81 : vector<2x128xi1>, vector<2x128xf32>
    %cst_34 = arith.constant -1.000000e+30 : f32
    %85 = vector.broadcast %cst_34 : f32 to vector<2x128xf32>
    %86 = arith.select %41, %38, %85 : vector<2x128xi1>, vector<2x128xf32>
    %cst_35 = arith.constant dense<0xFF800000> : vector<2xf32>
    %87 = vector.multi_reduction <maximumf>, %86, %cst_35 [1] : vector<2x128xf32> to vector<2xf32>
    %88 = vector.shape_cast %87 : vector<2xf32> to vector<2x1xf32>
    %89 = vector.broadcast %88 : vector<2x1xf32> to vector<2x128xf32>
    %90 = arith.cmpf oeq, %86, %89 : vector<2x128xf32>
    %c128_i32 = arith.constant 128 : i32
    %91 = vector.broadcast %c128_i32 : i32 to vector<2x128xi32>
    %92 = arith.select %90, %39, %91 : vector<2x128xi1>, vector<2x128xi32>
    %cst_36 = arith.constant dense<2147483647> : vector<2xi32>
    %93 = vector.multi_reduction <minsi>, %92, %cst_36 [1] : vector<2x128xi32> to vector<2xi32>
    %94 = vector.shape_cast %93 : vector<2xi32> to vector<2x1xi32>
    %95 = arith.sitofp %94 : vector<2x1xi32> to vector<2x1xf32>
    %96 = vector.shape_cast %95 : vector<2x1xf32> to vector<2x1xf32>
    %97 = vector.broadcast %96 : vector<2x1xf32> to vector<2x128xf32>
    %98 = tpu.concatenate %48, %84, %97 in 1 : vector<2x128xf32>, vector<2x128xf32>, vector<2x128xf32> -> vector<2x384xf32>
    %c0_37 = arith.constant 0 : index
    %c0_38 = arith.constant 0 : index
    %99 = vector.load %arg8[%c0_37, %c0_38] : memref<2x384xf32, #tpu.memory_space<vmem>>, vector<2x384xf32>
    tpu.vector_store %arg8[%c0_37, %c0_38], %98 {strides = array<i32>} : memref<2x384xf32, #tpu.memory_space<vmem>>, vector<2x384xf32>,
    return
  }
  func.func @transform_0(%arg0: i32) -> (i32, i32, i32) {
    %c0_i32 = arith.constant 0 : i32
    %c0_i32_0 = arith.constant 0 : i32
    %c0_i32_1 = arith.constant 0 : i32
    return %arg0, %c0_i32, %c0_i32_0 : i32, i32, i32
  }
  func.func @transform_1(%arg0: i32) -> (i32, i32) {
    %c0_i32 = arith.constant 0 : i32
    %c0_i32_0 = arith.constant 0 : i32
    %c0_i32_1 = arith.constant 0 : i32
    return %c0_i32, %c0_i32_0 : i32, i32
  }
  func.func @transform_2(%arg0: i32) -> (i32, i32) {
    %c0_i32 = arith.constant 0 : i32
    %c0_i32_0 = arith.constant 0 : i32
    %c0_i32_1 = arith.constant 0 : i32
    return %c0_i32, %c0_i32_0 : i32, i32
  }
  func.func @transform_3(%arg0: i32) -> (i32, i32) {
    %c0_i32 = arith.constant 0 : i32
    %c0_i32_0 = arith.constant 0 : i32
    %c0_i32_1 = arith.constant 0 : i32
    return %c0_i32, %c0_i32_0 : i32, i32
  }
  func.func @transform_4(%arg0: i32) -> (i32, i32) {
    %c0_i32 = arith.constant 0 : i32
    %c0_i32_0 = arith.constant 0 : i32
    %c0_i32_1 = arith.constant 0 : i32
    return %c0_i32, %c0_i32_0 : i32, i32
  }
  func.func @transform_5(%arg0: i32) -> (i32, i32) {
    %c0_i32 = arith.constant 0 : i32
    %c0_i32_0 = arith.constant 0 : i32
    %c0_i32_1 = arith.constant 0 : i32
    return %c0_i32, %c0_i32_0 : i32, i32
  }
  func.func @transform_6(%arg0: i32) -> (i32, i32) {
    %c0_i32 = arith.constant 0 : i32
    %c0_i32_0 = arith.constant 0 : i32
    %c0_i32_1 = arith.constant 0 : i32
    return %c0_i32, %c0_i32_0 : i32, i32
  }
  func.func @transform_7(%arg0: i32) -> (i32, i32) {
    %c0_i32 = arith.constant 0 : i32
    %c0_i32_0 = arith.constant 0 : i32
    return %arg0, %c0_i32 : i32, i32
  }
}

</mosaic_0001>

<llo_original>
// kernel: surv_forward.1
$region0: #{surv_forward.1}
  #allocation0 [shape = 'u32[]', space=smem, size = 0x4, offset = 0x4, fixed_abs, tag = 'smem constant byte address 0x4 - core index']
  #allocation1 [shape = 'u32[144,128]{1,0:T(1,128)}', space=vmem, size = 0x12000, scoped, tag = 'internal scratch']
  %s0 = inlined_call_operand.vmem [shape: f32[2,384,512], index: 0, kind: input, shape index: {}]
  %s1 = inlined_call_operand.vmem [shape: f32[768,256], index: 1, kind: input, shape index: {}]
  %s2 = inlined_call_operand.vmem [shape: f32[1,256], index: 2, kind: input, shape index: {}]
  %s3 = inlined_call_operand.vmem [shape: f32[256,128], index: 3, kind: input, shape index: {}]
  %s4 = inlined_call_operand.vmem [shape: f32[1,128], index: 4, kind: input, shape index: {}]
  %s5 = inlined_call_operand.vmem [shape: f32[128,128], index: 5, kind: input, shape index: {}]
  %s6 = inlined_call_operand.vmem [shape: f32[1,128], index: 6, kind: input, shape index: {}]
  %s7 = inlined_call_operand.vmem [shape: f32[2,384], index: 7, kind: output, shape index: {}]
  %s8 = sld [smem:[#allocation0]]
  $region38: #{surv_forward.1} parent=0
    _
  %s10 = ssub.s32 1, %s8
  %s11 = scalar_select 0, %s10, %s8
  // Predicated region
  $region2: #{surv_forward.1} parent=0 // pred_check
    _
  $region3: #{surv_forward.1} parent=0 // pred_check_branch
    %13 = sbr.rel (0) target = $region5
  $region4: #{surv_forward.1} parent=0 // pred_region
    _
  $region5: #{surv_forward.1} parent=0 // pred_fallthru
    _
  // Predicated region
  $region6: #{surv_forward.1} parent=0 // pred_check
    _
  $region7: #{surv_forward.1} parent=0 // pred_check_branch
    %15 = sbr.rel (0) target = $region9
  $region8: #{surv_forward.1} parent=0 // pred_region
    _
  $region9: #{surv_forward.1} parent=0 // pred_fallthru
    _
  // Predicated region
  $region10: #{surv_forward.1} parent=0 // pred_check
    _
  $region11: #{surv_forward.1} parent=0 // pred_check_branch
    %17 = sbr.rel (0) target = $region13
  $region12: #{surv_forward.1} parent=0 // pred_region
    _
  $region13: #{surv_forward.1} parent=0 // pred_fallthru
    _
  // Predicated region
  $region14: #{surv_forward.1} parent=0 // pred_check
    _
  $region15: #{surv_forward.1} parent=0 // pred_check_branch
    %19 = sbr.rel (0) target = $region17
  $region16: #{surv_forward.1} parent=0 // pred_region
    _
  $region17: #{surv_forward.1} parent=0 // pred_fallthru
    _
  // Predicated region
  $region18: #{surv_forward.1} parent=0 // pred_check
    _
  $region19: #{surv_forward.1} parent=0 // pred_check_branch
    %21 = sbr.rel (0) target = $region21
  $region20: #{surv_forward.1} parent=0 // pred_region
    _
  $region21: #{surv_forward.1} parent=0 // pred_fallthru
    _
  // Predicated region
  $region22: #{surv_forward.1} parent=0 // pred_check
    _
  $region23: #{surv_forward.1} parent=0 // pred_check_branch
    %23 = sbr.rel (0) target = $region25
  $region24: #{surv_forward.1} parent=0 // pred_region
    _
  $region25: #{surv_forward.1} parent=0 // pred_fallthru
    _
  // Predicated region
  $region26: #{surv_forward.1} parent=0 // pred_check
    _
  $region27: #{surv_forward.1} parent=0 // pred_check_branch
    %25 = sbr.rel (0) target = $region29
  $region28: #{surv_forward.1} parent=0 // pred_region
    _
  $region29: #{surv_forward.1} parent=0 // pred_fallthru
    _
  %v26 = vld [vmem:[%s0] sm:$0xff]
  %v27 = vld [vmem:[%s0 + $0x8] sm:$0xff]
  %v28 = vld [vmem:[%s0 + $0x10] sm:$0xff]
  %v29 = vld [vmem:[%s0 + $0x18] sm:$0xff]
  %v30 = vld [vmem:[%s0 + $0x20] sm:$0xff]
  %v31 = vld [vmem:[%s0 + $0x28] sm:$0xff]
  %v32 = vld [vmem:[%s0 + $0x30] sm:$0xff]
  %v33 = vld [vmem:[%s0 + $0x38] sm:$0xff]
  %v34 = vld [vmem:[%s0 + $0x40] sm:$0xff]
  %v35 = vld [vmem:[%s0 + $0x48] sm:$0xff]
  %v36 = vld [vmem:[%s0 + $0x50] sm:$0xff]
  %v37 = vld [vmem:[%s0 + $0x58] sm:$0xff]
  %v38 = vld [vmem:[%s0 + $0x60] sm:$0xff]
  %v39 = vld [vmem:[%s0 + $0x68] sm:$0xff]
  %v40 = vld [vmem:[%s0 + $0x70] sm:$0xff]
  %v41 = vld [vmem:[%s0 + $0x78] sm:$0xff]
  %v42 = vld [vmem:[%s0 + $0x80] sm:$0xff]
  %v43 = vld [vmem:[%s0 + $0x88] sm:$0xff]
  %v44 = vld [vmem:[%s0 + $0x90] sm:$0xff]
  %v45 = vld [vmem:[%s0 + $0x98] sm:$0xff]
  %v46 = vld [vmem:[%s0 + $0xa0] sm:$0xff]
  %v47 = vld [vmem:[%s0 + $0xa8] sm:$0xff]
  %v48 = vld [vmem:[%s0 + $0xb0] sm:$0xff]
  %v49 = vld [vmem:[%s0 + $0xb8] sm:$0xff]
  %v50 = vld [vmem:[%s0 + $0xc0] sm:$0xff]
  %v51 = vld [vmem:[%s0 + $0xc8] sm:$0xff]
  %v52 = vld [vmem:[%s0 + $0xd0] sm:$0xff]
  %v53 = vld [vmem:[%s0 + $0xd8] sm:$0xff]
  %v54 = vld [vmem:[%s0 + $0xe0] sm:$0xff]
  %v55 = vld [vmem:[%s0 + $0xe8] sm:$0xff]
  %v56 = vld [vmem:[%s0 + $0xf0] sm:$0xff]
  %v57 = vld [vmem:[%s0 + $0xf8] sm:$0xff]
  %v58 = vld [vmem:[%s0 + $0x100] sm:$0xff]
  %v59 = vld [vmem:[%s0 + $0x108] sm:$0xff]
  %v60 = vld [vmem:[%s0 + $0x110] sm:$0xff]
  %v61 = vld [vmem:[%s0 + $0x118] sm:$0xff]
  %v62 = vld [vmem:[%s0 + $0x120] sm:$0xff]
  %v63 = vld [vmem:[%s0 + $0x128] sm:$0xff]
  %v64 = vld [vmem:[%s0 + $0x130] sm:$0xff]
  %v65 = vld [vmem:[%s0 + $0x138] sm:$0xff]
  %v66 = vld [vmem:[%s0 + $0x140] sm:$0xff]
  %v67 = vld [vmem:[%s0 + $0x148] sm:$0xff]
  %v68 = vld [vmem:[%s0 + $0x150] sm:$0xff]
  %v69 = vld [vmem:[%s0 + $0x158] sm:$0xff]
  %v70 = vld [vmem:[%s0 + $0x160] sm:$0xff]
  %v71 = vld [vmem:[%s0 + $0x168] sm:$0xff]
  %v72 = vld [vmem:[%s0 + $0x170] sm:$0xff]
  %v73 = vld [vmem:[%s0 + $0x178] sm:$0xff]
  %v74 = vld [vmem:[%s0 + $0x180] sm:$0xff]
  %v75 = vld [vmem:[%s0 + $0x188] sm:$0xff]
  %v76 = vld [vmem:[%s0 + $0x190] sm:$0xff]
  %v77 = vld [vmem:[%s0 + $0x198] sm:$0xff]
  %v78 = vld [vmem:[%s0 + $0x1a0] sm:$0xff]
  %v79 = vld [vmem:[%s0 + $0x1a8] sm:$0xff]
  %v80 = vld [vmem:[%s0 + $0x1b0] sm:$0xff]
  %v81 = vld [vmem:[%s0 + $0x1b8] sm:$0xff]
  %v82 = vld [vmem:[%s0 + $0x1c0] sm:$0xff]
  %v83 = vld [vmem:[%s0 + $0x1c8] sm:$0xff]
  %v84 = vld [vmem:[%s0 + $0x1d0] sm:$0xff]
  %v85 = vld [vmem:[%s0 + $0x1d8] sm:$0xff]
  %v86 = vld [vmem:[%s0 + $0x1e0] sm:$0xff]
  %v87 = vld [vmem:[%s0 + $0x1e8] sm:$0xff]
  %v88 = vld [vmem:[%s0 + $0x1f0] sm:$0xff]
  %v89 = vld [vmem:[%s0 + $0x1f8] sm:$0xff]
  %v90 = vld [vmem:[%s0 + $0x200] sm:$0xff]
  %v91 = vld [vmem:[%s0 + $0x208] sm:$0xff]
  %v92 = vld [vmem:[%s0 + $0x210] sm:$0xff]
  %v93 = vld [vmem:[%s0 + $0x218] sm:$0xff]
  %v94 = vld [vmem:[%s0 + $0x220] sm:$0xff]
  %v95 = vld [vmem:[%s0 + $0x228] sm:$0xff]
  %v96 = vld [vmem:[%s0 + $0x230] sm:$0xff]
  %v97 = vld [vmem:[%s0 + $0x238] sm:$0xff]
  %v98 = vld [vmem:[%s0 + $0x240] sm:$0xff]
  %v99 = vld [vmem:[%s0 + $0x248] sm:$0xff]
  %v100 = vld [vmem:[%s0 + $0x250] sm:$0xff]
  %v101 = vld [vmem:[%s0 + $0x258] sm:$0xff]
  %v102 = vld [vmem:[%s0 + $0x260] sm:$0xff]
  %v103 = vld [vmem:[%s0 + $0x268] sm:$0xff]
  %v104 = vld [vmem:[%s0 + $0x270] sm:$0xff]
  %v105 = vld [vmem:[%s0 + $0x278] sm:$0xff]
  %v106 = vld [vmem:[%s0 + $0x280] sm:$0xff]
  %v107 = vld [vmem:[%s0 + $0x288] sm:$0xff]
  %v108 = vld [vmem:[%s0 + $0x290] sm:$0xff]
  %v109 = vld [vmem:[%s0 + $0x298] sm:$0xff]
  %v110 = vld [vmem:[%s0 + $0x2a0] sm:$0xff]
  %v111 = vld [vmem:[%s0 + $0x2a8] sm:$0xff]
  %v112 = vld [vmem:[%s0 + $0x2b0] sm:$0xff]
  %v113 = vld [vmem:[%s0 + $0x2b8] sm:$0xff]
  %v114 = vld [vmem:[%s0 + $0x2c0] sm:$0xff]
  %v115 = vld [vmem:[%s0 + $0x2c8] sm:$0xff]
  %v116 = vld [vmem:[%s0 + $0x2d0] sm:$0xff]
  %v117 = vld [vmem:[%s0 + $0x2d8] sm:$0xff]
  %v118 = vld [vmem:[%s0 + $0x2e0] sm:$0xff]
  %v119 = vld [vmem:[%s0 + $0x2e8] sm:$0xff]
  %v120 = vld [vmem:[%s0 + $0x2f0] sm:$0xff]
  %v121 = vld [vmem:[%s0 + $0x2f8] sm:$0xff]
  %v122 = vld [vmem:[%s0 + $0x300] sm:$0xff]
  %v123 = vld [vmem:[%s0 + $0x308] sm:$0xff]
  %v124 = vld [vmem:[%s0 + $0x310] sm:$0xff]
  %v125 = vld [vmem:[%s0 + $0x318] sm:$0xff]
  %v126 = vld [vmem:[%s0 + $0x320] sm:$0xff]
  %v127 = vld [vmem:[%s0 + $0x328] sm:$0xff]
  %v128 = vld [vmem:[%s0 + $0x330] sm:$0xff]
  %v129 = vld [vmem:[%s0 + $0x338] sm:$0xff]
  %v130 = vld [vmem:[%s0 + $0x340] sm:$0xff]
  %v131 = vld [vmem:[%s0 + $0x348] sm:$0xff]
  %v132 = vld [vmem:[%s0 + $0x350] sm:$0xff]
  %v133 = vld [vmem:[%s0 + $0x358] sm:$0xff]
  %v134 = vld [vmem:[%s0 + $0x360] sm:$0xff]
  %v135 = vld [vmem:[%s0 + $0x368] sm:$0xff]
  %v136 = vld [vmem:[%s0 + $0x370] sm:$0xff]
  %v137 = vld [vmem:[%s0 + $0x378] sm:$0xff]
  %v138 = vld [vmem:[%s0 + $0x380] sm:$0xff]
  %v139 = vld [vmem:[%s0 + $0x388] sm:$0xff]
  %v140 = vld [vmem:[%s0 + $0x390] sm:$0xff]
  %v141 = vld [vmem:[%s0 + $0x398] sm:$0xff]
  %v142 = vld [vmem:[%s0 + $0x3a0] sm:$0xff]
  %v143 = vld [vmem:[%s0 + $0x3a8] sm:$0xff]
  %v144 = vld [vmem:[%s0 + $0x3b0] sm:$0xff]
  %v145 = vld [vmem:[%s0 + $0x3b8] sm:$0xff]
  %v146 = vld [vmem:[%s0 + $0x3c0] sm:$0xff]
  %v147 = vld [vmem:[%s0 + $0x3c8] sm:$0xff]
  %v148 = vld [vmem:[%s0 + $0x3d0] sm:$0xff]
  %v149 = vld [vmem:[%s0 + $0x3d8] sm:$0xff]
  %v150 = vld [vmem:[%s0 + $0x3e0] sm:$0xff]
  %v151 = vld [vmem:[%s0 + $0x3e8] sm:$0xff]
  %v152 = vld [vmem:[%s0 + $0x3f0] sm:$0xff]
  %v153 = vld [vmem:[%s0 + $0x3f8] sm:$0xff]
  %v154 = vld [vmem:[%s0 + $0x400] sm:$0xff]
  %v155 = vld [vmem:[%s0 + $0x408] sm:$0xff]
  %v156 = vld [vmem:[%s0 + $0x410] sm:$0xff]
  %v157 = vld [vmem:[%s0 + $0x418] sm:$0xff]
  %v158 = vld [vmem:[%s0 + $0x420] sm:$0xff]
  %v159 = vld [vmem:[%s0 + $0x428] sm:$0xff]
  %v160 = vld [vmem:[%s0 + $0x430] sm:$0xff]
  %v161 = vld [vmem:[%s0 + $0x438] sm:$0xff]
  %v162 = vld [vmem:[%s0 + $0x440] sm:$0xff]
  %v163 = vld [vmem:[%s0 + $0x448] sm:$0xff]
  %v164 = vld [vmem:[%s0 + $0x450] sm:$0xff]
  %v165 = vld [vmem:[%s0 + $0x458] sm:$0xff]
  %v166 = vld [vmem:[%s0 + $0x460] sm:$0xff]
  %v167 = vld [vmem:[%s0 + $0x468] sm:$0xff]
  %v168 = vld [vmem:[%s0 + $0x470] sm:$0xff]
  %v169 = vld [vmem:[%s0 + $0x478] sm:$0xff]
  %v170 = vld [vmem:[%s0 + $0x480] sm:$0xff]
  %v171 = vld [vmem:[%s0 + $0x488] sm:$0xff]
  %v172 = vld [vmem:[%s0 + $0x490] sm:$0xff]
  %v173 = vld [vmem:[%s0 + $0x498] sm:$0xff]
  %v174 = vld [vmem:[%s0 + $0x4a0] sm:$0xff]
  %v175 = vld [vmem:[%s0 + $0x4a8] sm:$0xff]
  %v176 = vld [vmem:[%s0 + $0x4b0] sm:$0xff]
  %v177 = vld [vmem:[%s0 + $0x4b8] sm:$0xff]
  %v178 = vld [vmem:[%s0 + $0x4c0] sm:$0xff]
  %v179 = vld [vmem:[%s0 + $0x4c8] sm:$0xff]
  %v180 = vld [vmem:[%s0 + $0x4d0] sm:$0xff]
  %v181 = vld [vmem:[%s0 + $0x4d8] sm:$0xff]
  %v182 = vld [vmem:[%s0 + $0x4e0] sm:$0xff]
  %v183 = vld [vmem:[%s0 + $0x4e8] sm:$0xff]
  %v184 = vld [vmem:[%s0 + $0x4f0] sm:$0xff]
  %v185 = vld [vmem:[%s0 + $0x4f8] sm:$0xff]
  %v186 = vld [vmem:[%s0 + $0x500] sm:$0xff]
  %v187 = vld [vmem:[%s0 + $0x508] sm:$0xff]
  %v188 = vld [vmem:[%s0 + $0x510] sm:$0xff]
  %v189 = vld [vmem:[%s0 + $0x518] sm:$0xff]
  %v190 = vld [vmem:[%s0 + $0x520] sm:$0xff]
  %v191 = vld [vmem:[%s0 + $0x528] sm:$0xff]
  %v192 = vld [vmem:[%s0 + $0x530] sm:$0xff]
  %v193 = vld [vmem:[%s0 + $0x538] sm:$0xff]
  %v194 = vld [vmem:[%s0 + $0x540] sm:$0xff]
  %v195 = vld [vmem:[%s0 + $0x548] sm:$0xff]
  %v196 = vld [vmem:[%s0 + $0x550] sm:$0xff]
  %v197 = vld [vmem:[%s0 + $0x558] sm:$0xff]
  %v198 = vld [vmem:[%s0 + $0x560] sm:$0xff]
  %v199 = vld [vmem:[%s0 + $0x568] sm:$0xff]
  %v200 = vld [vmem:[%s0 + $0x570] sm:$0xff]
  %v201 = vld [vmem:[%s0 + $0x578] sm:$0xff]
  %v202 = vld [vmem:[%s0 + $0x580] sm:$0xff]
  %v203 = vld [vmem:[%s0 + $0x588] sm:$0xff]
  %v204 = vld [vmem:[%s0 + $0x590] sm:$0xff]
  %v205 = vld [vmem:[%s0 + $0x598] sm:$0xff]
  %v206 = vld [vmem:[%s0 + $0x5a0] sm:$0xff]
  %v207 = vld [vmem:[%s0 + $0x5a8] sm:$0xff]
  %v208 = vld [vmem:[%s0 + $0x5b0] sm:$0xff]
  %v209 = vld [vmem:[%s0 + $0x5b8] sm:$0xff]
  %v210 = vld [vmem:[%s0 + $0x5c0] sm:$0xff]
  %v211 = vld [vmem:[%s0 + $0x5c8] sm:$0xff]
  %v212 = vld [vmem:[%s0 + $0x5d0] sm:$0xff]
  %v213 = vld [vmem:[%s0 + $0x5d8] sm:$0xff]
  %v214 = vld [vmem:[%s0 + $0x5e0] sm:$0xff]
  %v215 = vld [vmem:[%s0 + $0x5e8] sm:$0xff]
  %v216 = vld [vmem:[%s0 + $0x5f0] sm:$0xff]
  %v217 = vld [vmem:[%s0 + $0x5f8] sm:$0xff]
  %v218 = vld [vmem:[%s0 + $0x600] sm:$0xff]
  %v219 = vld [vmem:[%s0 + $0x608] sm:$0xff]
  %v220 = vld [vmem:[%s0 + $0x610] sm:$0xff]
  %v221 = vld [vmem:[%s0 + $0x618] sm:$0xff]
  %v222 = vld [vmem:[%s0 + $0x620] sm:$0xff]
  %v223 = vld [vmem:[%s0 + $0x628] sm:$0xff]
  %v224 = vld [vmem:[%s0 + $0x630] sm:$0xff]
  %v225 = vld [vmem:[%s0 + $0x638] sm:$0xff]
  %v226 = vld [vmem:[%s0 + $0x640] sm:$0xff]
  %v227 = vld [vmem:[%s0 + $0x648] sm:$0xff]
  %v228 = vld [vmem:[%s0 + $0x650] sm:$0xff]
  %v229 = vld [vmem:[%s0 + $0x658] sm:$0xff]
  %v230 = vld [vmem:[%s0 + $0x660] sm:$0xff]
  %v231 = vld [vmem:[%s0 + $0x668] sm:$0xff]
  %v232 = vld [vmem:[%s0 + $0x670] sm:$0xff]
  %v233 = vld [vmem:[%s0 + $0x678] sm:$0xff]
  %v234 = vld [vmem:[%s0 + $0x680] sm:$0xff]
  %v235 = vld [vmem:[%s0 + $0x688] sm:$0xff]
  %v236 = vld [vmem:[%s0 + $0x690] sm:$0xff]
  %v237 = vld [vmem:[%s0 + $0x698] sm:$0xff]
  %v238 = vld [vmem:[%s0 + $0x6a0] sm:$0xff]
  %v239 = vld [vmem:[%s0 + $0x6a8] sm:$0xff]
  %v240 = vld [vmem:[%s0 + $0x6b0] sm:$0xff]
  %v241 = vld [vmem:[%s0 + $0x6b8] sm:$0xff]
  %v242 = vld [vmem:[%s0 + $0x6c0] sm:$0xff]
  %v243 = vld [vmem:[%s0 + $0x6c8] sm:$0xff]
  %v244 = vld [vmem:[%s0 + $0x6d0] sm:$0xff]
  %v245 = vld [vmem:[%s0 + $0x6d8] sm:$0xff]
  %v246 = vld [vmem:[%s0 + $0x6e0] sm:$0xff]
  %v247 = vld [vmem:[%s0 + $0x6e8] sm:$0xff]
  %v248 = vld [vmem:[%s0 + $0x6f0] sm:$0xff]
  %v249 = vld [vmem:[%s0 + $0x6f8] sm:$0xff]
  %v250 = vld [vmem:[%s0 + $0x700] sm:$0xff]
  %v251 = vld [vmem:[%s0 + $0x708] sm:$0xff]
  %v252 = vld [vmem:[%s0 + $0x710] sm:$0xff]
  %v253 = vld [vmem:[%s0 + $0x718] sm:$0xff]
  %v254 = vld [vmem:[%s0 + $0x720] sm:$0xff]
  %v255 = vld [vmem:[%s0 + $0x728] sm:$0xff]
  %v256 = vld [vmem:[%s0 + $0x730] sm:$0xff]
  %v257 = vld [vmem:[%s0 + $0x738] sm:$0xff]
  %v258 = vld [vmem:[%s0 + $0x740] sm:$0xff]
  %v259 = vld [vmem:[%s0 + $0x748] sm:$0xff]
  %v260 = vld [vmem:[%s0 + $0x750] sm:$0xff]
  %v261 = vld [vmem:[%s0 + $0x758] sm:$0xff]
  %v262 = vld [vmem:[%s0 + $0x760] sm:$0xff]
  %v263 = vld [vmem:[%s0 + $0x768] sm:$0xff]
  %v264 = vld [vmem:[%s0 + $0x770] sm:$0xff]
  %v265 = vld [vmem:[%s0 + $0x778] sm:$0xff]
  %v266 = vld [vmem:[%s0 + $0x780] sm:$0xff]
  %v267 = vld [vmem:[%s0 + $0x788] sm:$0xff]
  %v268 = vld [vmem:[%s0 + $0x790] sm:$0xff]
  %v269 = vld [vmem:[%s0 + $0x798] sm:$0xff]
  %v270 = vld [vmem:[%s0 + $0x7a0] sm:$0xff]
  %v271 = vld [vmem:[%s0 + $0x7a8] sm:$0xff]
  %v272 = vld [vmem:[%s0 + $0x7b0] sm:$0xff]
  %v273 = vld [vmem:[%s0 + $0x7b8] sm:$0xff]
  %v274 = vld [vmem:[%s0 + $0x7c0] sm:$0xff]
  %v275 = vld [vmem:[%s0 + $0x7c8] sm:$0xff]
  %v276 = vld [vmem:[%s0 + $0x7d0] sm:$0xff]
  %v277 = vld [vmem:[%s0 + $0x7d8] sm:$0xff]
  %v278 = vld [vmem:[%s0 + $0x7e0] sm:$0xff]
  %v279 = vld [vmem:[%s0 + $0x7e8] sm:$0xff]
  %v280 = vld [vmem:[%s0 + $0x7f0] sm:$0xff]
  %v281 = vld [vmem:[%s0 + $0x7f8] sm:$0xff]
  %v282 = vld [vmem:[%s0 + $0x800] sm:$0xff]
  %v283 = vld [vmem:[%s0 + $0x808] sm:$0xff]
  %v284 = vld [vmem:[%s0 + $0x810] sm:$0xff]
  %v285 = vld [vmem:[%s0 + $0x818] sm:$0xff]
  %v286 = vld [vmem:[%s0 + $0x820] sm:$0xff]
  %v287 = vld [vmem:[%s0 + $0x828] sm:$0xff]
  %v288 = vld [vmem:[%s0 + $0x830] sm:$0xff]
  %v289 = vld [vmem:[%s0 + $0x838] sm:$0xff]
  %v290 = vld [vmem:[%s0 + $0x840] sm:$0xff]
  %v291 = vld [vmem:[%s0 + $0x848] sm:$0xff]
  %v292 = vld [vmem:[%s0 + $0x850] sm:$0xff]
  %v293 = vld [vmem:[%s0 + $0x858] sm:$0xff]
  %v294 = vld [vmem:[%s0 + $0x860] sm:$0xff]
  %v295 = vld [vmem:[%s0 + $0x868] sm:$0xff]
  %v296 = vld [vmem:[%s0 + $0x870] sm:$0xff]
  %v297 = vld [vmem:[%s0 + $0x878] sm:$0xff]
  %v298 = vld [vmem:[%s0 + $0x880] sm:$0xff]
  %v299 = vld [vmem:[%s0 + $0x888] sm:$0xff]
  %v300 = vld [vmem:[%s0 + $0x890] sm:$0xff]
  %v301 = vld [vmem:[%s0 + $0x898] sm:$0xff]
  %v302 = vld [vmem:[%s0 + $0x8a0] sm:$0xff]
  %v303 = vld [vmem:[%s0 + $0x8a8] sm:$0xff]
  %v304 = vld [vmem:[%s0 + $0x8b0] sm:$0xff]
  %v305 = vld [vmem:[%s0 + $0x8b8] sm:$0xff]
  %v306 = vld [vmem:[%s0 + $0x8c0] sm:$0xff]
  %v307 = vld [vmem:[%s0 + $0x8c8] sm:$0xff]
  %v308 = vld [vmem:[%s0 + $0x8d0] sm:$0xff]
  %v309 = vld [vmem:[%s0 + $0x8d8] sm:$0xff]
  %v310 = vld [vmem:[%s0 + $0x8e0] sm:$0xff]
  %v311 = vld [vmem:[%s0 + $0x8e8] sm:$0xff]
  %v312 = vld [vmem:[%s0 + $0x8f0] sm:$0xff]
  %v313 = vld [vmem:[%s0 + $0x8f8] sm:$0xff]
  %v314 = vld [vmem:[%s0 + $0x900] sm:$0xff]
  %v315 = vld [vmem:[%s0 + $0x908] sm:$0xff]
  %v316 = vld [vmem:[%s0 + $0x910] sm:$0xff]
  %v317 = vld [vmem:[%s0 + $0x918] sm:$0xff]
  %v318 = vld [vmem:[%s0 + $0x920] sm:$0xff]
  %v319 = vld [vmem:[%s0 + $0x928] sm:$0xff]
  %v320 = vld [vmem:[%s0 + $0x930] sm:$0xff]
  %v321 = vld [vmem:[%s0 + $0x938] sm:$0xff]
  %v322 = vld [vmem:[%s0 + $0x940] sm:$0xff]
  %v323 = vld [vmem:[%s0 + $0x948] sm:$0xff]
  %v324 = vld [vmem:[%s0 + $0x950] sm:$0xff]
  %v325 = vld [vmem:[%s0 + $0x958] sm:$0xff]
  %v326 = vld [vmem:[%s0 + $0x960] sm:$0xff]
  %v327 = vld [vmem:[%s0 + $0x968] sm:$0xff]
  %v328 = vld [vmem:[%s0 + $0x970] sm:$0xff]
  %v329 = vld [vmem:[%s0 + $0x978] sm:$0xff]
  %v330 = vld [vmem:[%s0 + $0x980] sm:$0xff]
  %v331 = vld [vmem:[%s0 + $0x988] sm:$0xff]
  %v332 = vld [vmem:[%s0 + $0x990] sm:$0xff]
  %v333 = vld [vmem:[%s0 + $0x998] sm:$0xff]
  %v334 = vld [vmem:[%s0 + $0x9a0] sm:$0xff]
  %v335 = vld [vmem:[%s0 + $0x9a8] sm:$0xff]
  %v336 = vld [vmem:[%s0 + $0x9b0] sm:$0xff]
  %v337 = vld [vmem:[%s0 + $0x9b8] sm:$0xff]
  %v338 = vld [vmem:[%s0 + $0x9c0] sm:$0xff]
  %v339 = vld [vmem:[%s0 + $0x9c8] sm:$0xff]
  %v340 = vld [vmem:[%s0 + $0x9d0] sm:$0xff]
  %v341 = vld [vmem:[%s0 + $0x9d8] sm:$0xff]
  %v342 = vld [vmem:[%s0 + $0x9e0] sm:$0xff]
  %v343 = vld [vmem:[%s0 + $0x9e8] sm:$0xff]
  %v344 = vld [vmem:[%s0 + $0x9f0] sm:$0xff]
  %v345 = vld [vmem:[%s0 + $0x9f8] sm:$0xff]
  %v346 = vld [vmem:[%s0 + $0xa00] sm:$0xff]
  %v347 = vld [vmem:[%s0 + $0xa08] sm:$0xff]
  %v348 = vld [vmem:[%s0 + $0xa10] sm:$0xff]
  %v349 = vld [vmem:[%s0 + $0xa18] sm:$0xff]
  %v350 = vld [vmem:[%s0 + $0xa20] sm:$0xff]
  %v351 = vld [vmem:[%s0 + $0xa28] sm:$0xff]
  %v352 = vld [vmem:[%s0 + $0xa30] sm:$0xff]
  %v353 = vld [vmem:[%s0 + $0xa38] sm:$0xff]
  %v354 = vld [vmem:[%s0 + $0xa40] sm:$0xff]
  %v355 = vld [vmem:[%s0 + $0xa48] sm:$0xff]
  %v356 = vld [vmem:[%s0 + $0xa50] sm:$0xff]
  %v357 = vld [vmem:[%s0 + $0xa58] sm:$0xff]
  %v358 = vld [vmem:[%s0 + $0xa60] sm:$0xff]
  %v359 = vld [vmem:[%s0 + $0xa68] sm:$0xff]
  %v360 = vld [vmem:[%s0 + $0xa70] sm:$0xff]
  %v361 = vld [vmem:[%s0 + $0xa78] sm:$0xff]
  %v362 = vld [vmem:[%s0 + $0xa80] sm:$0xff]
  %v363 = vld [vmem:[%s0 + $0xa88] sm:$0xff]
  %v364 = vld [vmem:[%s0 + $0xa90] sm:$0xff]
  %v365 = vld [vmem:[%s0 + $0xa98] sm:$0xff]
  %v366 = vld [vmem:[%s0 + $0xaa0] sm:$0xff]
  %v367 = vld [vmem:[%s0 + $0xaa8] sm:$0xff]
  %v368 = vld [vmem:[%s0 + $0xab0] sm:$0xff]
  %v369 = vld [vmem:[%s0 + $0xab8] sm:$0xff]
  %v370 = vld [vmem:[%s0 + $0xac0] sm:$0xff]
  %v371 = vld [vmem:[%s0 + $0xac8] sm:$0xff]
  %v372 = vld [vmem:[%s0 + $0xad0] sm:$0xff]
  %v373 = vld [vmem:[%s0 + $0xad8] sm:$0xff]
  %v374 = vld [vmem:[%s0 + $0xae0] sm:$0xff]
  %v375 = vld [vmem:[%s0 + $0xae8] sm:$0xff]
  %v376 = vld [vmem:[%s0 + $0xaf0] sm:$0xff]
  %v377 = vld [vmem:[%s0 + $0xaf8] sm:$0xff]
  %v378 = vld [vmem:[%s0 + $0xb00] sm:$0xff]
  %v379 = vld [vmem:[%s0 + $0xb08] sm:$0xff]
  %v380 = vld [vmem:[%s0 + $0xb10] sm:$0xff]
  %v381 = vld [vmem:[%s0 + $0xb18] sm:$0xff]
  %v382 = vld [vmem:[%s0 + $0xb20] sm:$0xff]
  %v383 = vld [vmem:[%s0 + $0xb28] sm:$0xff]
  %v384 = vld [vmem:[%s0 + $0xb30] sm:$0xff]
  %v385 = vld [vmem:[%s0 + $0xb38] sm:$0xff]
  %v386 = vld [vmem:[%s0 + $0xb40] sm:$0xff]
  %v387 = vld [vmem:[%s0 + $0xb48] sm:$0xff]
  %v388 = vld [vmem:[%s0 + $0xb50] sm:$0xff]
  %v389 = vld [vmem:[%s0 + $0xb58] sm:$0xff]
  %v390 = vld [vmem:[%s0 + $0xb60] sm:$0xff]
  %v391 = vld [vmem:[%s0 + $0xb68] sm:$0xff]
  %v392 = vld [vmem:[%s0 + $0xb70] sm:$0xff]
  %v393 = vld [vmem:[%s0 + $0xb78] sm:$0xff]
  %v394 = vld [vmem:[%s0 + $0xb80] sm:$0xff]
  %v395 = vld [vmem:[%s0 + $0xb88] sm:$0xff]
  %v396 = vld [vmem:[%s0 + $0xb90] sm:$0xff]
  %v397 = vld [vmem:[%s0 + $0xb98] sm:$0xff]
  %v398 = vld [vmem:[%s0 + $0xba0] sm:$0xff]
  %v399 = vld [vmem:[%s0 + $0xba8] sm:$0xff]
  %v400 = vld [vmem:[%s0 + $0xbb0] sm:$0xff]
  %v401 = vld [vmem:[%s0 + $0xbb8] sm:$0xff]
  %v402 = vld [vmem:[%s0 + $0xbc0] sm:$0xff]
  %v403 = vld [vmem:[%s0 + $0xbc8] sm:$0xff]
  %v404 = vld [vmem:[%s0 + $0xbd0] sm:$0xff]
  %v405 = vld [vmem:[%s0 + $0xbd8] sm:$0xff]
  %v406 = vld [vmem:[%s0 + $0xbe0] sm:$0xff]
  %v407 = vld [vmem:[%s0 + $0xbe8] sm:$0xff]
  %v408 = vld [vmem:[%s0 + $0xbf0] sm:$0xff]
  %v409 = vld [vmem:[%s0 + $0xbf8] sm:$0xff]
  %v410 = vadd.f32 %v26, %v27
  %v411 = vadd.f32 %v410, %v28
  %v412 = vadd.f32 %v411, %v29
  %413 = vadd.xlane.f32.xlu0 %v412
  %v414 = vpop.xlane.xlu0 %413
  %v415 = vadd.f32 %v30, %v31
  %v416 = vadd.f32 %v415, %v32
  %v417 = vadd.f32 %v416, %v33
  %418 = vadd.xlane.f32.xlu0 %v417
  %v419 = vpop.xlane.xlu0 %418
  %v420 = vadd.f32 %v34, %v35
  %v421 = vadd.f32 %v420, %v36
  %v422 = vadd.f32 %v421, %v37
  %423 = vadd.xlane.f32.xlu0 %v422
  %v424 = vpop.xlane.xlu0 %423
  %v425 = vadd.f32 %v38, %v39
  %v426 = vadd.f32 %v425, %v40
  %v427 = vadd.f32 %v426, %v41
  %428 = vadd.xlane.f32.xlu0 %v427
  %v429 = vpop.xlane.xlu0 %428
  %v430 = vadd.f32 %v42, %v43
  %v431 = vadd.f32 %v430, %v44
  %v432 = vadd.f32 %v431, %v45
  %433 = vadd.xlane.f32.xlu0 %v432
  %v434 = vpop.xlane.xlu0 %433
  %v435 = vadd.f32 %v46, %v47
  %v436 = vadd.f32 %v435, %v48
  %v437 = vadd.f32 %v436, %v49
  %438 = vadd.xlane.f32.xlu0 %v437
  %v439 = vpop.xlane.xlu0 %438
  %v440 = vadd.f32 %v50, %v51
  %v441 = vadd.f32 %v440, %v52
  %v442 = vadd.f32 %v441, %v53
  %443 = vadd.xlane.f32.xlu0 %v442
  %v444 = vpop.xlane.xlu0 %443
  %v445 = vadd.f32 %v54, %v55
  %v446 = vadd.f32 %v445, %v56
  %v447 = vadd.f32 %v446, %v57
  %448 = vadd.xlane.f32.xlu0 %v447
  %v449 = vpop.xlane.xlu0 %448
  %v450 = vadd.f32 %v58, %v59
  %v451 = vadd.f32 %v450, %v60
  %v452 = vadd.f32 %v451, %v61
  %453 = vadd.xlane.f32.xlu0 %v452
  %v454 = vpop.xlane.xlu0 %453
  %v455 = vadd.f32 %v62, %v63
  %v456 = vadd.f32 %v455, %v64
  %v457 = vadd.f32 %v456, %v65
  %458 = vadd.xlane.f32.xlu0 %v457
  %v459 = vpop.xlane.xlu0 %458
  %v460 = vadd.f32 %v66, %v67
  %v461 = vadd.f32 %v460, %v68
  %v462 = vadd.f32 %v461, %v69
  %463 = vadd.xlane.f32.xlu0 %v462
  %v464 = vpop.xlane.xlu0 %463
  %v465 = vadd.f32 %v70, %v71
  %v466 = vadd.f32 %v465, %v72
  %v467 = vadd.f32 %v466, %v73
  %468 = vadd.xlane.f32.xlu0 %v467
  %v469 = vpop.xlane.xlu0 %468
  %v470 = vadd.f32 %v74, %v75
  %v471 = vadd.f32 %v470, %v76
  %v472 = vadd.f32 %v471, %v77
  %473 = vadd.xlane.f32.xlu0 %v472
  %v474 = vpop.xlane.xlu0 %473
  %v475 = vadd.f32 %v78, %v79
  %v476 = vadd.f32 %v475, %v80
  %v477 = vadd.f32 %v476, %v81
  %478 = vadd.xlane.f32.xlu0 %v477
  %v479 = vpop.xlane.xlu0 %478
  %v480 = vadd.f32 %v82, %v83
  %v481 = vadd.f32 %v480, %v84
  %v482 = vadd.f32 %v481, %v85
  %483 = vadd.xlane.f32.xlu0 %v482
  %v484 = vpop.xlane.xlu0 %483
  %v485 = vadd.f32 %v86, %v87
  %v486 = vadd.f32 %v485, %v88
  %v487 = vadd.f32 %v486, %v89
  %488 = vadd.xlane.f32.xlu0 %v487
  %v489 = vpop.xlane.xlu0 %488
  %v490 = vadd.f32 %v90, %v91
  %v491 = vadd.f32 %v490, %v92
  %v492 = vadd.f32 %v491, %v93
  %493 = vadd.xlane.f32.xlu0 %v492
  %v494 = vpop.xlane.xlu0 %493
  %v495 = vadd.f32 %v94, %v95
  %v496 = vadd.f32 %v495, %v96
  %v497 = vadd.f32 %v496, %v97
  %498 = vadd.xlane.f32.xlu0 %v497
  %v499 = vpop.xlane.xlu0 %498
  %v500 = vadd.f32 %v98, %v99
  %v501 = vadd.f32 %v500, %v100
  %v502 = vadd.f32 %v501, %v101
  %503 = vadd.xlane.f32.xlu0 %v502
  %v504 = vpop.xlane.xlu0 %503
  %v505 = vadd.f32 %v102, %v103
  %v506 = vadd.f32 %v505, %v104
  %v507 = vadd.f32 %v506, %v105
  %508 = vadd.xlane.f32.xlu0 %v507
  %v509 = vpop.xlane.xlu0 %508
  %v510 = vadd.f32 %v106, %v107
  %v511 = vadd.f32 %v510, %v108
  %v512 = vadd.f32 %v511, %v109
  %513 = vadd.xlane.f32.xlu0 %v512
  %v514 = vpop.xlane.xlu0 %513
  %v515 = vadd.f32 %v110, %v111
  %v516 = vadd.f32 %v515, %v112
  %v517 = vadd.f32 %v516, %v113
  %518 = vadd.xlane.f32.xlu0 %v517
  %v519 = vpop.xlane.xlu0 %518
  %v520 = vadd.f32 %v114, %v115
  %v521 = vadd.f32 %v520, %v116
  %v522 = vadd.f32 %v521, %v117
  %523 = vadd.xlane.f32.xlu0 %v522
  %v524 = vpop.xlane.xlu0 %523
  %v525 = vadd.f32 %v118, %v119
  %v526 = vadd.f32 %v525, %v120
  %v527 = vadd.f32 %v526, %v121
  %528 = vadd.xlane.f32.xlu0 %v527
  %v529 = vpop.xlane.xlu0 %528
  %v530 = vadd.f32 %v122, %v123
  %v531 = vadd.f32 %v530, %v124
  %v532 = vadd.f32 %v531, %v125
  %533 = vadd.xlane.f32.xlu0 %v532
  %v534 = vpop.xlane.xlu0 %533
  %v535 = vadd.f32 %v126, %v127
  %v536 = vadd.f32 %v535, %v128
  %v537 = vadd.f32 %v536, %v129
  %538 = vadd.xlane.f32.xlu0 %v537
  %v539 = vpop.xlane.xlu0 %538
  %v540 = vadd.f32 %v130, %v131
  %v541 = vadd.f32 %v540, %v132
  %v542 = vadd.f32 %v541, %v133
  %543 = vadd.xlane.f32.xlu0 %v542
  %v544 = vpop.xlane.xlu0 %543
  %v545 = vadd.f32 %v134, %v135
  %v546 = vadd.f32 %v545, %v136
  %v547 = vadd.f32 %v546, %v137
  %548 = vadd.xlane.f32.xlu0 %v547
  %v549 = vpop.xlane.xlu0 %548
  %v550 = vadd.f32 %v138, %v139
  %v551 = vadd.f32 %v550, %v140
  %v552 = vadd.f32 %v551, %v141
  %553 = vadd.xlane.f32.xlu0 %v552
  %v554 = vpop.xlane.xlu0 %553
  %v555 = vadd.f32 %v142, %v143
  %v556 = vadd.f32 %v555, %v144
  %v557 = vadd.f32 %v556, %v145
  %558 = vadd.xlane.f32.xlu0 %v557
  %v559 = vpop.xlane.xlu0 %558
  %v560 = vadd.f32 %v146, %v147
  %v561 = vadd.f32 %v560, %v148
  %v562 = vadd.f32 %v561, %v149
  %563 = vadd.xlane.f32.xlu0 %v562
  %v564 = vpop.xlane.xlu0 %563
  %v565 = vadd.f32 %v150, %v151
  %v566 = vadd.f32 %v565, %v152
  %v567 = vadd.f32 %v566, %v153
  %568 = vadd.xlane.f32.xlu0 %v567
  %v569 = vpop.xlane.xlu0 %568
  %v570 = vadd.f32 %v154, %v155
  %v571 = vadd.f32 %v570, %v156
  %v572 = vadd.f32 %v571, %v157
  %573 = vadd.xlane.f32.xlu0 %v572
  %v574 = vpop.xlane.xlu0 %573
  %v575 = vadd.f32 %v158, %v159
  %v576 = vadd.f32 %v575, %v160
  %v577 = vadd.f32 %v576, %v161
  %578 = vadd.xlane.f32.xlu0 %v577
  %v579 = vpop.xlane.xlu0 %578
  %v580 = vadd.f32 %v162, %v163
  %v581 = vadd.f32 %v580, %v164
  %v582 = vadd.f32 %v581, %v165
  %583 = vadd.xlane.f32.xlu0 %v582
  %v584 = vpop.xlane.xlu0 %583
  %v585 = vadd.f32 %v166, %v167
  %v586 = vadd.f32 %v585, %v168
  %v587 = vadd.f32 %v586, %v169
  %588 = vadd.xlane.f32.xlu0 %v587
  %v589 = vpop.xlane.xlu0 %588
  %v590 = vadd.f32 %v170, %v171
  %v591 = vadd.f32 %v590, %v172
  %v592 = vadd.f32 %v591, %v173
  %593 = vadd.xlane.f32.xlu0 %v592
  %v594 = vpop.xlane.xlu0 %593
  %v595 = vadd.f32 %v174, %v175
  %v596 = vadd.f32 %v595, %v176
  %v597 = vadd.f32 %v596, %v177
  %598 = vadd.xlane.f32.xlu0 %v597
  %v599 = vpop.xlane.xlu0 %598
  %v600 = vadd.f32 %v178, %v179
  %v601 = vadd.f32 %v600, %v180
  %v602 = vadd.f32 %v601, %v181
  %603 = vadd.xlane.f32.xlu0 %v602
  %v604 = vpop.xlane.xlu0 %603
  %v605 = vadd.f32 %v182, %v183
  %v606 = vadd.f32 %v605, %v184
  %v607 = vadd.f32 %v606, %v185
  %608 = vadd.xlane.f32.xlu0 %v607
  %v609 = vpop.xlane.xlu0 %608
  %v610 = vadd.f32 %v186, %v187
  %v611 = vadd.f32 %v610, %v188
  %v612 = vadd.f32 %v611, %v189
  %613 = vadd.xlane.f32.xlu0 %v612
  %v614 = vpop.xlane.xlu0 %613
  %v615 = vadd.f32 %v190, %v191
  %v616 = vadd.f32 %v615, %v192
  %v617 = vadd.f32 %v616, %v193
  %618 = vadd.xlane.f32.xlu0 %v617
  %v619 = vpop.xlane.xlu0 %618
  %v620 = vadd.f32 %v194, %v195
  %v621 = vadd.f32 %v620, %v196
  %v622 = vadd.f32 %v621, %v197
  %623 = vadd.xlane.f32.xlu0 %v622
  %v624 = vpop.xlane.xlu0 %623
  %v625 = vadd.f32 %v198, %v199
  %v626 = vadd.f32 %v625, %v200
  %v627 = vadd.f32 %v626, %v201
  %628 = vadd.xlane.f32.xlu0 %v627
  %v629 = vpop.xlane.xlu0 %628
  %v630 = vadd.f32 %v202, %v203
  %v631 = vadd.f32 %v630, %v204
  %v632 = vadd.f32 %v631, %v205
  %633 = vadd.xlane.f32.xlu0 %v632
  %v634 = vpop.xlane.xlu0 %633
  %v635 = vadd.f32 %v206, %v207
  %v636 = vadd.f32 %v635, %v208
  %v637 = vadd.f32 %v636, %v209
  %638 = vadd.xlane.f32.xlu0 %v637
  %v639 = vpop.xlane.xlu0 %638
  %v640 = vadd.f32 %v210, %v211
  %v641 = vadd.f32 %v640, %v212
  %v642 = vadd.f32 %v641, %v213
  %643 = vadd.xlane.f32.xlu0 %v642
  %v644 = vpop.xlane.xlu0 %643
  %v645 = vadd.f32 %v214, %v215
  %v646 = vadd.f32 %v645, %v216
  %v647 = vadd.f32 %v646, %v217
  %648 = vadd.xlane.f32.xlu0 %v647
  %v649 = vpop.xlane.xlu0 %648
  %v650 = vadd.f32 %v218, %v219
  %v651 = vadd.f32 %v650, %v220
  %v652 = vadd.f32 %v651, %v221
  %653 = vadd.xlane.f32.xlu0 %v652
  %v654 = vpop.xlane.xlu0 %653
  %v655 = vadd.f32 %v222, %v223
  %v656 = vadd.f32 %v655, %v224
  %v657 = vadd.f32 %v656, %v225
  %658 = vadd.xlane.f32.xlu0 %v657
  %v659 = vpop.xlane.xlu0 %658
  %v660 = vadd.f32 %v226, %v227
  %v661 = vadd.f32 %v660, %v228
  %v662 = vadd.f32 %v661, %v229
  %663 = vadd.xlane.f32.xlu0 %v662
  %v664 = vpop.xlane.xlu0 %663
  %v665 = vadd.f32 %v230, %v231
  %v666 = vadd.f32 %v665, %v232
  %v667 = vadd.f32 %v666, %v233
  %668 = vadd.xlane.f32.xlu0 %v667
  %v669 = vpop.xlane.xlu0 %668
  %v670 = vadd.f32 %v234, %v235
  %v671 = vadd.f32 %v670, %v236
  %v672 = vadd.f32 %v671, %v237
  %673 = vadd.xlane.f32.xlu0 %v672
  %v674 = vpop.xlane.xlu0 %673
  %v675 = vadd.f32 %v238, %v239
  %v676 = vadd.f32 %v675, %v240
  %v677 = vadd.f32 %v676, %v241
  %678 = vadd.xlane.f32.xlu0 %v677
  %v679 = vpop.xlane.xlu0 %678
  %v680 = vadd.f32 %v242, %v243
  %v681 = vadd.f32 %v680, %v244
  %v682 = vadd.f32 %v681, %v245
  %683 = vadd.xlane.f32.xlu0 %v682
  %v684 = vpop.xlane.xlu0 %683
  %v685 = vadd.f32 %v246, %v247
  %v686 = vadd.f32 %v685, %v248
  %v687 = vadd.f32 %v686, %v249
  %688 = vadd.xlane.f32.xlu0 %v687
  %v689 = vpop.xlane.xlu0 %688
  %v690 = vadd.f32 %v250, %v251
  %v691 = vadd.f32 %v690, %v252
  %v692 = vadd.f32 %v691, %v253
  %693 = vadd.xlane.f32.xlu0 %v692
  %v694 = vpop.xlane.xlu0 %693
  %v695 = vadd.f32 %v254, %v255
  %v696 = vadd.f32 %v695, %v256
  %v697 = vadd.f32 %v696, %v257
  %698 = vadd.xlane.f32.xlu0 %v697
  %v699 = vpop.xlane.xlu0 %698
  %v700 = vadd.f32 %v258, %v259
  %v701 = vadd.f32 %v700, %v260
  %v702 = vadd.f32 %v701, %v261
  %703 = vadd.xlane.f32.xlu0 %v702
  %v704 = vpop.xlane.xlu0 %703
  %v705 = vadd.f32 %v262, %v263
  %v706 = vadd.f32 %v705, %v264
  %v707 = vadd.f32 %v706, %v265
  %708 = vadd.xlane.f32.xlu0 %v707
  %v709 = vpop.xlane.xlu0 %708
  %v710 = vadd.f32 %v266, %v267
  %v711 = vadd.f32 %v710, %v268
  %v712 = vadd.f32 %v711, %v269
  %713 = vadd.xlane.f32.xlu0 %v712
  %v714 = vpop.xlane.xlu0 %713
  %v715 = vadd.f32 %v270, %v271
  %v716 = vadd.f32 %v715, %v272
  %v717 = vadd.f32 %v716, %v273
  %718 = vadd.xlane.f32.xlu0 %v717
  %v719 = vpop.xlane.xlu0 %718
  %v720 = vadd.f32 %v274, %v275
  %v721 = vadd.f32 %v720, %v276
  %v722 = vadd.f32 %v721, %v277
  %723 = vadd.xlane.f32.xlu0 %v722
  %v724 = vpop.xlane.xlu0 %723
  %v725 = vadd.f32 %v278, %v279
  %v726 = vadd.f32 %v725, %v280
  %v727 = vadd.f32 %v726, %v281
  %728 = vadd.xlane.f32.xlu0 %v727
  %v729 = vpop.xlane.xlu0 %728
  %v730 = vadd.f32 %v282, %v283
  %v731 = vadd.f32 %v730, %v284
  %v732 = vadd.f32 %v731, %v285
  %733 = vadd.xlane.f32.xlu0 %v732
  %v734 = vpop.xlane.xlu0 %733
  %v735 = vadd.f32 %v286, %v287
  %v736 = vadd.f32 %v735, %v288
  %v737 = vadd.f32 %v736, %v289
  %738 = vadd.xlane.f32.xlu0 %v737
  %v739 = vpop.xlane.xlu0 %738
  %v740 = vadd.f32 %v290, %v291
  %v741 = vadd.f32 %v740, %v292
  %v742 = vadd.f32 %v741, %v293
  %743 = vadd.xlane.f32.xlu0 %v742
  %v744 = vpop.xlane.xlu0 %743
  %v745 = vadd.f32 %v294, %v295
  %v746 = vadd.f32 %v745, %v296
  %v747 = vadd.f32 %v746, %v297
  %748 = vadd.xlane.f32.xlu0 %v747
  %v749 = vpop.xlane.xlu0 %748
  %v750 = vadd.f32 %v298, %v299
  %v751 = vadd.f32 %v750, %v300
  %v752 = vadd.f32 %v751, %v301
  %753 = vadd.xlane.f32.xlu0 %v752
  %v754 = vpop.xlane.xlu0 %753
  %v755 = vadd.f32 %v302, %v303
  %v756 = vadd.f32 %v755, %v304
  %v757 = vadd.f32 %v756, %v305
  %758 = vadd.xlane.f32.xlu0 %v757
  %v759 = vpop.xlane.xlu0 %758
  %v760 = vadd.f32 %v306, %v307
  %v761 = vadd.f32 %v760, %v308
  %v762 = vadd.f32 %v761, %v309
  %763 = vadd.xlane.f32.xlu0 %v762
  %v764 = vpop.xlane.xlu0 %763
  %v765 = vadd.f32 %v310, %v311
  %v766 = vadd.f32 %v765, %v312
  %v767 = vadd.f32 %v766, %v313
  %768 = vadd.xlane.f32.xlu0 %v767
  %v769 = vpop.xlane.xlu0 %768
  %v770 = vadd.f32 %v314, %v315
  %v771 = vadd.f32 %v770, %v316
  %v772 = vadd.f32 %v771, %v317
  %773 = vadd.xlane.f32.xlu0 %v772
  %v774 = vpop.xlane.xlu0 %773
  %v775 = vadd.f32 %v318, %v319
  %v776 = vadd.f32 %v775, %v320
  %v777 = vadd.f32 %v776, %v321
  %778 = vadd.xlane.f32.xlu0 %v777
  %v779 = vpop.xlane.xlu0 %778
  %v780 = vadd.f32 %v322, %v323
  %v781 = vadd.f32 %v780, %v324
  %v782 = vadd.f32 %v781, %v325
  %783 = vadd.xlane.f32.xlu0 %v782
  %v784 = vpop.xlane.xlu0 %783
  %v785 = vadd.f32 %v326, %v327
  %v786 = vadd.f32 %v785, %v328
  %v787 = vadd.f32 %v786, %v329
  %788 = vadd.xlane.f32.xlu0 %v787
  %v789 = vpop.xlane.xlu0 %788
  %v790 = vadd.f32 %v330, %v331
  %v791 = vadd.f32 %v790, %v332
  %v792 = vadd.f32 %v791, %v333
  %793 = vadd.xlane.f32.xlu0 %v792
  %v794 = vpop.xlane.xlu0 %793
  %v795 = vadd.f32 %v334, %v335
  %v796 = vadd.f32 %v795, %v336
  %v797 = vadd.f32 %v796, %v337
  %798 = vadd.xlane.f32.xlu0 %v797
  %v799 = vpop.xlane.xlu0 %798
  %v800 = vadd.f32 %v338, %v339
  %v801 = vadd.f32 %v800, %v340
  %v802 = vadd.f32 %v801, %v341
  %803 = vadd.xlane.f32.xlu0 %v802
  %v804 = vpop.xlane.xlu0 %803
  %v805 = vadd.f32 %v342, %v343
  %v806 = vadd.f32 %v805, %v344
  %v807 = vadd.f32 %v806, %v345
  %808 = vadd.xlane.f32.xlu0 %v807
  %v809 = vpop.xlane.xlu0 %808
  %v810 = vadd.f32 %v346, %v347
  %v811 = vadd.f32 %v810, %v348
  %v812 = vadd.f32 %v811, %v349
  %813 = vadd.xlane.f32.xlu0 %v812
  %v814 = vpop.xlane.xlu0 %813
  %v815 = vadd.f32 %v350, %v351
  %v816 = vadd.f32 %v815, %v352
  %v817 = vadd.f32 %v816, %v353
  %818 = vadd.xlane.f32.xlu0 %v817
  %v819 = vpop.xlane.xlu0 %818
  %v820 = vadd.f32 %v354, %v355
  %v821 = vadd.f32 %v820, %v356
  %v822 = vadd.f32 %v821, %v357
  %823 = vadd.xlane.f32.xlu0 %v822
  %v824 = vpop.xlane.xlu0 %823
  %v825 = vadd.f32 %v358, %v359
  %v826 = vadd.f32 %v825, %v360
  %v827 = vadd.f32 %v826, %v361
  %828 = vadd.xlane.f32.xlu0 %v827
  %v829 = vpop.xlane.xlu0 %828
  %v830 = vadd.f32 %v362, %v363
  %v831 = vadd.f32 %v830, %v364
  %v832 = vadd.f32 %v831, %v365
  %833 = vadd.xlane.f32.xlu0 %v832
  %v834 = vpop.xlane.xlu0 %833
  %v835 = vadd.f32 %v366, %v367
  %v836 = vadd.f32 %v835, %v368
  %v837 = vadd.f32 %v836, %v369
  %838 = vadd.xlane.f32.xlu0 %v837
  %v839 = vpop.xlane.xlu0 %838
  %v840 = vadd.f32 %v370, %v371
  %v841 = vadd.f32 %v840, %v372
  %v842 = vadd.f32 %v841, %v373
  %843 = vadd.xlane.f32.xlu0 %v842
  %v844 = vpop.xlane.xlu0 %843
  %v845 = vadd.f32 %v374, %v375
  %v846 = vadd.f32 %v845, %v376
  %v847 = vadd.f32 %v846, %v377
  %848 = vadd.xlane.f32.xlu0 %v847
  %v849 = vpop.xlane.xlu0 %848
  %v850 = vadd.f32 %v378, %v379
  %v851 = vadd.f32 %v850, %v380
  %v852 = vadd.f32 %v851, %v381
  %853 = vadd.xlane.f32.xlu0 %v852
  %v854 = vpop.xlane.xlu0 %853
  %v855 = vadd.f32 %v382, %v383
  %v856 = vadd.f32 %v855, %v384
  %v857 = vadd.f32 %v856, %v385
  %858 = vadd.xlane.f32.xlu0 %v857
  %v859 = vpop.xlane.xlu0 %858
  %v860 = vadd.f32 %v386, %v387
  %v861 = vadd.f32 %v860, %v388
  %v862 = vadd.f32 %v861, %v389
  %863 = vadd.xlane.f32.xlu0 %v862
  %v864 = vpop.xlane.xlu0 %863
  %v865 = vadd.f32 %v390, %v391
  %v866 = vadd.f32 %v865, %v392
  %v867 = vadd.f32 %v866, %v393
  %868 = vadd.xlane.f32.xlu0 %v867
  %v869 = vpop.xlane.xlu0 %868
  %v870 = vadd.f32 %v394, %v395
  %v871 = vadd.f32 %v870, %v396
  %v872 = vadd.f32 %v871, %v397
  %873 = vadd.xlane.f32.xlu0 %v872
  %v874 = vpop.xlane.xlu0 %873
  %v875 = vadd.f32 %v398, %v399
  %v876 = vadd.f32 %v875, %v400
  %v877 = vadd.f32 %v876, %v401
  %878 = vadd.xlane.f32.xlu0 %v877
  %v879 = vpop.xlane.xlu0 %878
  %v880 = vadd.f32 %v402, %v403
  %v881 = vadd.f32 %v880, %v404
  %v882 = vadd.f32 %v881, %v405
  %883 = vadd.xlane.f32.xlu0 %v882
  %v884 = vpop.xlane.xlu0 %883
  %v885 = vadd.f32 %v406, %v407
  %v886 = vadd.f32 %v885, %v408
  %v887 = vadd.f32 %v886, %v409
  %888 = vadd.xlane.f32.xlu0 %v887
  %v889 = vpop.xlane.xlu0 %888
  %v890 = vrcp.pop 512.0
  %v891 = vmul.f32 %v414, %v890
  %v892 = vmul.f32 %v419, %v890
  %v893 = vmul.f32 %v424, %v890
  %v894 = vmul.f32 %v429, %v890
  %v895 = vmul.f32 %v434, %v890
  %v896 = vmul.f32 %v439, %v890
  %v897 = vmul.f32 %v444, %v890
  %v898 = vmul.f32 %v449, %v890
  %v899 = vmul.f32 %v454, %v890
  %v900 = vmul.f32 %v459, %v890
  %v901 = vmul.f32 %v464, %v890
  %v902 = vmul.f32 %v469, %v890
  %v903 = vmul.f32 %v474, %v890
  %v904 = vmul.f32 %v479, %v890
  %v905 = vmul.f32 %v484, %v890
  %v906 = vmul.f32 %v489, %v890
  %v907 = vmul.f32 %v494, %v890
  %v908 = vmul.f32 %v499, %v890
  %v909 = vmul.f32 %v504, %v890
  %v910 = vmul.f32 %v509, %v890
  %v911 = vmul.f32 %v514, %v890
  %v912 = vmul.f32 %v519, %v890
  %v913 = vmul.f32 %v524, %v890
  %v914 = vmul.f32 %v529, %v890
  %v915 = vmul.f32 %v534, %v890
  %v916 = vmul.f32 %v539, %v890
  %v917 = vmul.f32 %v544, %v890
  %v918 = vmul.f32 %v549, %v890
  %v919 = vmul.f32 %v554, %v890
  %v920 = vmul.f32 %v559, %v890
  %v921 = vmul.f32 %v564, %v890
  %v922 = vmul.f32 %v569, %v890
  %v923 = vmul.f32 %v574, %v890
  %v924 = vmul.f32 %v579, %v890
  %v925 = vmul.f32 %v584, %v890
  %v926 = vmul.f32 %v589, %v890
  %v927 = vmul.f32 %v594, %v890
  %v928 = vmul.f32 %v599, %v890
  %v929 = vmul.f32 %v604, %v890
  %v930 = vmul.f32 %v609, %v890
  %v931 = vmul.f32 %v614, %v890
  %v932 = vmul.f32 %v619, %v890
  %v933 = vmul.f32 %v624, %v890
  %v934 = vmul.f32 %v629, %v890
  %v935 = vmul.f32 %v634, %v890
  %v936 = vmul.f32 %v639, %v890
  %v937 = vmul.f32 %v644, %v890
  %v938 = vmul.f32 %v649, %v890
  %v939 = vmul.f32 %v654, %v890
  %v940 = vmul.f32 %v659, %v890
  %v941 = vmul.f32 %v664, %v890
  %v942 = vmul.f32 %v669, %v890
  %v943 = vmul.f32 %v674, %v890
  %v944 = vmul.f32 %v679, %v890
  %v945 = vmul.f32 %v684, %v890
  %v946 = vmul.f32 %v689, %v890
  %v947 = vmul.f32 %v694, %v890
  %v948 = vmul.f32 %v699, %v890
  %v949 = vmul.f32 %v704, %v890
  %v950 = vmul.f32 %v709, %v890
  %v951 = vmul.f32 %v714, %v890
  %v952 = vmul.f32 %v719, %v890
  %v953 = vmul.f32 %v724, %v890
  %v954 = vmul.f32 %v729, %v890
  %v955 = vmul.f32 %v734, %v890
  %v956 = vmul.f32 %v739, %v890
  %v957 = vmul.f32 %v744, %v890
  %v958 = vmul.f32 %v749, %v890
  %v959 = vmul.f32 %v754, %v890
  %v960 = vmul.f32 %v759, %v890
  %v961 = vmul.f32 %v764, %v890
  %v962 = vmul.f32 %v769, %v890
  %v963 = vmul.f32 %v774, %v890
  %v964 = vmul.f32 %v779, %v890
  %v965 = vmul.f32 %v784, %v890
  %v966 = vmul.f32 %v789, %v890
  %v967 = vmul.f32 %v794, %v890
  %v968 = vmul.f32 %v799, %v890
  %v969 = vmul.f32 %v804, %v890
  %v970 = vmul.f32 %v809, %v890
  %v971 = vmul.f32 %v814, %v890
  %v972 = vmul.f32 %v819, %v890
  %v973 = vmul.f32 %v824, %v890
  %v974 = vmul.f32 %v829, %v890
  %v975 = vmul.f32 %v834, %v890
  %v976 = vmul.f32 %v839, %v890
  %v977 = vmul.f32 %v844, %v890
  %v978 = vmul.f32 %v849, %v890
  %v979 = vmul.f32 %v854, %v890
  %v980 = vmul.f32 %v859, %v890
  %v981 = vmul.f32 %v864, %v890
  %v982 = vmul.f32 %v869, %v890
  %v983 = vmul.f32 %v874, %v890
  %v984 = vmul.f32 %v879, %v890
  %v985 = vmul.f32 %v884, %v890
  %v986 = vmul.f32 %v889, %v890
  %v987 = vmax.f32 %v26, %v27
  %v988 = vmax.f32 %v987, %v28
  %v989 = vmax.f32 %v988, %v29
  %990 = vmax.xlane.f32.xlu0 %v989
  %v991 = vpop.xlane.xlu0 %990
  %v992 = vmax.f32 %v30, %v31
  %v993 = vmax.f32 %v992, %v32
  %v994 = vmax.f32 %v993, %v33
  %995 = vmax.xlane.f32.xlu0 %v994
  %v996 = vpop.xlane.xlu0 %995
  %v997 = vmax.f32 %v34, %v35
  %v998 = vmax.f32 %v997, %v36
  %v999 = vmax.f32 %v998, %v37
  %1000 = vmax.xlane.f32.xlu0 %v999
  %v1001 = vpop.xlane.xlu0 %1000
  %v1002 = vmax.f32 %v38, %v39
  %v1003 = vmax.f32 %v1002, %v40
  %v1004 = vmax.f32 %v1003, %v41
  %1005 = vmax.xlane.f32.xlu0 %v1004
  %v1006 = vpop.xlane.xlu0 %1005
  %v1007 = vmax.f32 %v42, %v43
  %v1008 = vmax.f32 %v1007, %v44
  %v1009 = vmax.f32 %v1008, %v45
  %1010 = vmax.xlane.f32.xlu0 %v1009
  %v1011 = vpop.xlane.xlu0 %1010
  %v1012 = vmax.f32 %v46, %v47
  %v1013 = vmax.f32 %v1012, %v48
  %v1014 = vmax.f32 %v1013, %v49
  %1015 = vmax.xlane.f32.xlu0 %v1014
  %v1016 = vpop.xlane.xlu0 %1015
  %v1017 = vmax.f32 %v50, %v51
  %v1018 = vmax.f32 %v1017, %v52
  %v1019 = vmax.f32 %v1018, %v53
  %1020 = vmax.xlane.f32.xlu0 %v1019
  %v1021 = vpop.xlane.xlu0 %1020
  %v1022 = vmax.f32 %v54, %v55
  %v1023 = vmax.f32 %v1022, %v56
  %v1024 = vmax.f32 %v1023, %v57
  %1025 = vmax.xlane.f32.xlu0 %v1024
  %v1026 = vpop.xlane.xlu0 %1025
  %v1027 = vmax.f32 %v58, %v59
  %v1028 = vmax.f32 %v1027, %v60
  %v1029 = vmax.f32 %v1028, %v61
  %1030 = vmax.xlane.f32.xlu0 %v1029
  %v1031 = vpop.xlane.xlu0 %1030
  %v1032 = vmax.f32 %v62, %v63
  %v1033 = vmax.f32 %v1032, %v64
  %v1034 = vmax.f32 %v1033, %v65
  %1035 = vmax.xlane.f32.xlu0 %v1034
  %v1036 = vpop.xlane.xlu0 %1035
  %v1037 = vmax.f32 %v66, %v67
  %v1038 = vmax.f32 %v1037, %v68
  %v1039 = vmax.f32 %v1038, %v69
  %1040 = vmax.xlane.f32.xlu0 %v1039
  %v1041 = vpop.xlane.xlu0 %1040
  %v1042 = vmax.f32 %v70, %v71
  %v1043 = vmax.f32 %v1042, %v72
  %v1044 = vmax.f32 %v1043, %v73
  %1045 = vmax.xlane.f32.xlu0 %v1044
  %v1046 = vpop.xlane.xlu0 %1045
  %v1047 = vmax.f32 %v74, %v75
  %v1048 = vmax.f32 %v1047, %v76
  %v1049 = vmax.f32 %v1048, %v77
  %1050 = vmax.xlane.f32.xlu0 %v1049
  %v1051 = vpop.xlane.xlu0 %1050
  %v1052 = vmax.f32 %v78, %v79
  %v1053 = vmax.f32 %v1052, %v80
  %v1054 = vmax.f32 %v1053, %v81
  %1055 = vmax.xlane.f32.xlu0 %v1054
  %v1056 = vpop.xlane.xlu0 %1055
  %v1057 = vmax.f32 %v82, %v83
  %v1058 = vmax.f32 %v1057, %v84
  %v1059 = vmax.f32 %v1058, %v85
  %1060 = vmax.xlane.f32.xlu0 %v1059
  %v1061 = vpop.xlane.xlu0 %1060
  %v1062 = vmax.f32 %v86, %v87
  %v1063 = vmax.f32 %v1062, %v88
  %v1064 = vmax.f32 %v1063, %v89
  %1065 = vmax.xlane.f32.xlu0 %v1064
  %v1066 = vpop.xlane.xlu0 %1065
  %v1067 = vmax.f32 %v90, %v91
  %v1068 = vmax.f32 %v1067, %v92
  %v1069 = vmax.f32 %v1068, %v93
  %1070 = vmax.xlane.f32.xlu0 %v1069
  %v1071 = vpop.xlane.xlu0 %1070
  %v1072 = vmax.f32 %v94, %v95
  %v1073 = vmax.f32 %v1072, %v96
  %v1074 = vmax.f32 %v1073, %v97
  %1075 = vmax.xlane.f32.xlu0 %v1074
  %v1076 = vpop.xlane.xlu0 %1075
  %v1077 = vmax.f32 %v98, %v99
  %v1078 = vmax.f32 %v1077, %v100
  %v1079 = vmax.f32 %v1078, %v101
  %1080 = vmax.xlane.f32.xlu0 %v1079
  %v1081 = vpop.xlane.xlu0 %1080
  %v1082 = vmax.f32 %v102, %v103
  %v1083 = vmax.f32 %v1082, %v104
  %v1084 = vmax.f32 %v1083, %v105
  %1085 = vmax.xlane.f32.xlu0 %v1084
  %v1086 = vpop.xlane.xlu0 %1085
  %v1087 = vmax.f32 %v106, %v107
  %v1088 = vmax.f32 %v1087, %v108
  %v1089 = vmax.f32 %v1088, %v109
  %1090 = vmax.xlane.f32.xlu0 %v1089
  %v1091 = vpop.xlane.xlu0 %1090
  %v1092 = vmax.f32 %v110, %v111
  %v1093 = vmax.f32 %v1092, %v112
  %v1094 = vmax.f32 %v1093, %v113
  %1095 = vmax.xlane.f32.xlu0 %v1094
  %v1096 = vpop.xlane.xlu0 %1095
  %v1097 = vmax.f32 %v114, %v115
  %v1098 = vmax.f32 %v1097, %v116
  %v1099 = vmax.f32 %v1098, %v117
  %1100 = vmax.xlane.f32.xlu0 %v1099
  %v1101 = vpop.xlane.xlu0 %1100
  %v1102 = vmax.f32 %v118, %v119
  %v1103 = vmax.f32 %v1102, %v120
  %v1104 = vmax.f32 %v1103, %v121
  %1105 = vmax.xlane.f32.xlu0 %v1104
  %v1106 = vpop.xlane.xlu0 %1105
  %v1107 = vmax.f32 %v122, %v123
  %v1108 = vmax.f32 %v1107, %v124
  %v1109 = vmax.f32 %v1108, %v125
  %1110 = vmax.xlane.f32.xlu0 %v1109
  %v1111 = vpop.xlane.xlu0 %1110
  %v1112 = vmax.f32 %v126, %v127
  %v1113 = vmax.f32 %v1112, %v128
  %v1114 = vmax.f32 %v1113, %v129
  %1115 = vmax.xlane.f32.xlu0 %v1114
  %v1116 = vpop.xlane.xlu0 %1115
  %v1117 = vmax.f32 %v130, %v131
  %v1118 = vmax.f32 %v1117, %v132
  %v1119 = vmax.f32 %v1118, %v133
  %1120 = vmax.xlane.f32.xlu0 %v1119
  %v1121 = vpop.xlane.xlu0 %1120
  %v1122 = vmax.f32 %v134, %v135
  %v1123 = vmax.f32 %v1122, %v136
  %v1124 = vmax.f32 %v1123, %v137
  %1125 = vmax.xlane.f32.xlu0 %v1124
  %v1126 = vpop.xlane.xlu0 %1125
  %v1127 = vmax.f32 %v138, %v139
  %v1128 = vmax.f32 %v1127, %v140
  %v1129 = vmax.f32 %v1128, %v141
  %1130 = vmax.xlane.f32.xlu0 %v1129
  %v1131 = vpop.xlane.xlu0 %1130
  %v1132 = vmax.f32 %v142, %v143
  %v1133 = vmax.f32 %v1132, %v144
  %v1134 = vmax.f32 %v1133, %v145
  %1135 = vmax.xlane.f32.xlu0 %v1134
  %v1136 = vpop.xlane.xlu0 %1135
  %v1137 = vmax.f32 %v146, %v147
  %v1138 = vmax.f32 %v1137, %v148
  %v1139 = vmax.f32 %v1138, %v149
  %1140 = vmax.xlane.f32.xlu0 %v1139
  %v1141 = vpop.xlane.xlu0 %1140
  %v1142 = vmax.f32 %v150, %v151
  %v1143 = vmax.f32 %v1142, %v152
  %v1144 = vmax.f32 %v1143, %v153
  %1145 = vmax.xlane.f32.xlu0 %v1144
  %v1146 = vpop.xlane.xlu0 %1145
  %v1147 = vmax.f32 %v154, %v155
  %v1148 = vmax.f32 %v1147, %v156
  %v1149 = vmax.f32 %v1148, %v157
  %1150 = vmax.xlane.f32.xlu0 %v1149
  %v1151 = vpop.xlane.xlu0 %1150
  %v1152 = vmax.f32 %v158, %v159
  %v1153 = vmax.f32 %v1152, %v160
  %v1154 = vmax.f32 %v1153, %v161
  %1155 = vmax.xlane.f32.xlu0 %v1154
  %v1156 = vpop.xlane.xlu0 %1155
  %v1157 = vmax.f32 %v162, %v163
  %v1158 = vmax.f32 %v1157, %v164
  %v1159 = vmax.f32 %v1158, %v165
  %1160 = vmax.xlane.f32.xlu0 %v1159
  %v1161 = vpop.xlane.xlu0 %1160
  %v1162 = vmax.f32 %v166, %v167
  %v1163 = vmax.f32 %v1162, %v168
  %v1164 = vmax.f32 %v1163, %v169
  %1165 = vmax.xlane.f32.xlu0 %v1164
  %v1166 = vpop.xlane.xlu0 %1165
  %v1167 = vmax.f32 %v170, %v171
  %v1168 = vmax.f32 %v1167, %v172
  %v1169 = vmax.f32 %v1168, %v173
  %1170 = vmax.xlane.f32.xlu0 %v1169
  %v1171 = vpop.xlane.xlu0 %1170
  %v1172 = vmax.f32 %v174, %v175
  %v1173 = vmax.f32 %v1172, %v176
  %v1174 = vmax.f32 %v1173, %v177
  %1175 = vmax.xlane.f32.xlu0 %v1174
  %v1176 = vpop.xlane.xlu0 %1175
  %v1177 = vmax.f32 %v178, %v179
  %v1178 = vmax.f32 %v1177, %v180
  %v1179 = vmax.f32 %v1178, %v181
  %1180 = vmax.xlane.f32.xlu0 %v1179
  %v1181 = vpop.xlane.xlu0 %1180
  %v1182 = vmax.f32 %v182, %v183
  %v1183 = vmax.f32 %v1182, %v184
  %v1184 = vmax.f32 %v1183, %v185
  %1185 = vmax.xlane.f32.xlu0 %v1184
  %v1186 = vpop.xlane.xlu0 %1185
  %v1187 = vmax.f32 %v186, %v187
  %v1188 = vmax.f32 %v1187, %v188
  %v1189 = vmax.f32 %v1188, %v189
  %1190 = vmax.xlane.f32.xlu0 %v1189
  %v1191 = vpop.xlane.xlu0 %1190
  %v1192 = vmax.f32 %v190, %v191
  %v1193 = vmax.f32 %v1192, %v192
  %v1194 = vmax.f32 %v1193, %v193
  %1195 = vmax.xlane.f32.xlu0 %v1194
  %v1196 = vpop.xlane.xlu0 %1195
  %v1197 = vmax.f32 %v194, %v195
  %v1198 = vmax.f32 %v1197, %v196
  %v1199 = vmax.f32 %v1198, %v197
  %1200 = vmax.xlane.f32.xlu0 %v1199
  %v1201 = vpop.xlane.xlu0 %1200
  %v1202 = vmax.f32 %v198, %v199
  %v1203 = vmax.f32 %v1202, %v200
  %v1204 = vmax.f32 %v1203, %v201
  %1205 = vmax.xlane.f32.xlu0 %v1204
  %v1206 = vpop.xlane.xlu0 %1205
  %v1207 = vmax.f32 %v202, %v203
  %v1208 = vmax.f32 %v1207, %v204
  %v1209 = vmax.f32 %v1208, %v205
  %1210 = vmax.xlane.f32.xlu0 %v1209
  %v1211 = vpop.xlane.xlu0 %1210
  %v1212 = vmax.f32 %v206, %v207
  %v1213 = vmax.f32 %v1212, %v208
  %v1214 = vmax.f32 %v1213, %v209
  %1215 = vmax.xlane.f32.xlu0 %v1214
  %v1216 = vpop.xlane.xlu0 %1215
  %v1217 = vmax.f32 %v210, %v211
  %v1218 = vmax.f32 %v1217, %v212
  %v1219 = vmax.f32 %v1218, %v213
  %1220 = vmax.xlane.f32.xlu0 %v1219
  %v1221 = vpop.xlane.xlu0 %1220
  %v1222 = vmax.f32 %v214, %v215
  %v1223 = vmax.f32 %v1222, %v216
  %v1224 = vmax.f32 %v1223, %v217
  %1225 = vmax.xlane.f32.xlu0 %v1224
  %v1226 = vpop.xlane.xlu0 %1225
  %v1227 = vmax.f32 %v218, %v219
  %v1228 = vmax.f32 %v1227, %v220
  %v1229 = vmax.f32 %v1228, %v221
  %1230 = vmax.xlane.f32.xlu0 %v1229
  %v1231 = vpop.xlane.xlu0 %1230
  %v1232 = vmax.f32 %v222, %v223
  %v1233 = vmax.f32 %v1232, %v224
  %v1234 = vmax.f32 %v1233, %v225
  %1235 = vmax.xlane.f32.xlu0 %v1234
  %v1236 = vpop.xlane.xlu0 %1235
  %v1237 = vmax.f32 %v226, %v227
  %v1238 = vmax.f32 %v1237, %v228
  %v1239 = vmax.f32 %v1238, %v229
  %1240 = vmax.xlane.f32.xlu0 %v1239
  %v1241 = vpop.xlane.xlu0 %1240
  %v1242 = vmax.f32 %v230, %v231
  %v1243 = vmax.f32 %v1242, %v232
  %v1244 = vmax.f32 %v1243, %v233
  %1245 = vmax.xlane.f32.xlu0 %v1244
  %v1246 = vpop.xlane.xlu0 %1245
  %v1247 = vmax.f32 %v234, %v235
  %v1248 = vmax.f32 %v1247, %v236
  %v1249 = vmax.f32 %v1248, %v237
  %1250 = vmax.xlane.f32.xlu0 %v1249
  %v1251 = vpop.xlane.xlu0 %1250
  %v1252 = vmax.f32 %v238, %v239
  %v1253 = vmax.f32 %v1252, %v240
  %v1254 = vmax.f32 %v1253, %v241
  %1255 = vmax.xlane.f32.xlu0 %v1254
  %v1256 = vpop.xlane.xlu0 %1255
  %v1257 = vmax.f32 %v242, %v243
  %v1258 = vmax.f32 %v1257, %v244
  %v1259 = vmax.f32 %v1258, %v245
  %1260 = vmax.xlane.f32.xlu0 %v1259
  %v1261 = vpop.xlane.xlu0 %1260
  %v1262 = vmax.f32 %v246, %v247
  %v1263 = vmax.f32 %v1262, %v248
  %v1264 = vmax.f32 %v1263, %v249
  %1265 = vmax.xlane.f32.xlu0 %v1264
  %v1266 = vpop.xlane.xlu0 %1265
  %v1267 = vmax.f32 %v250, %v251
  %v1268 = vmax.f32 %v1267, %v252
  %v1269 = vmax.f32 %v1268, %v253
  %1270 = vmax.xlane.f32.xlu0 %v1269
  %v1271 = vpop.xlane.xlu0 %1270
  %v1272 = vmax.f32 %v254, %v255
  %v1273 = vmax.f32 %v1272, %v256
  %v1274 = vmax.f32 %v1273, %v257
  %1275 = vmax.xlane.f32.xlu0 %v1274
  %v1276 = vpop.xlane.xlu0 %1275
  %v1277 = vmax.f32 %v258, %v259
  %v1278 = vmax.f32 %v1277, %v260
  %v1279 = vmax.f32 %v1278, %v261
  %1280 = vmax.xlane.f32.xlu0 %v1279
  %v1281 = vpop.xlane.xlu0 %1280
  %v1282 = vmax.f32 %v262, %v263
  %v1283 = vmax.f32 %v1282, %v264
  %v1284 = vmax.f32 %v1283, %v265
  %1285 = vmax.xlane.f32.xlu0 %v1284
  %v1286 = vpop.xlane.xlu0 %1285
  %v1287 = vmax.f32 %v266, %v267
  %v1288 = vmax.f32 %v1287, %v268
  %v1289 = vmax.f32 %v1288, %v269
  %1290 = vmax.xlane.f32.xlu0 %v1289
  %v1291 = vpop.xlane.xlu0 %1290
  %v1292 = vmax.f32 %v270, %v271
  %v1293 = vmax.f32 %v1292, %v272
  %v1294 = vmax.f32 %v1293, %v273
  %1295 = vmax.xlane.f32.xlu0 %v1294
  %v1296 = vpop.xlane.xlu0 %1295
  %v1297 = vmax.f32 %v274, %v275
  %v1298 = vmax.f32 %v1297, %v276
  %v1299 = vmax.f32 %v1298, %v277
  %1300 = vmax.xlane.f32.xlu0 %v1299
  %v1301 = vpop.xlane.xlu0 %1300
  %v1302 = vmax.f32 %v278, %v279
  %v1303 = vmax.f32 %v1302, %v280
  %v1304 = vmax.f32 %v1303, %v281
  %1305 = vmax.xlane.f32.xlu0 %v1304
  %v1306 = vpop.xlane.xlu0 %1305
  %v1307 = vmax.f32 %v282, %v283
  %v1308 = vmax.f32 %v1307, %v284
  %v1309 = vmax.f32 %v1308, %v285
  %1310 = vmax.xlane.f32.xlu0 %v1309
  %v1311 = vpop.xlane.xlu0 %1310
  %v1312 = vmax.f32 %v286, %v287
  %v1313 = vmax.f32 %v1312, %v288
  %v1314 = vmax.f32 %v1313, %v289
  %1315 = vmax.xlane.f32.xlu0 %v1314
  %v1316 = vpop.xlane.xlu0 %1315
  %v1317 = vmax.f32 %v290, %v291
  %v1318 = vmax.f32 %v1317, %v292
  %v1319 = vmax.f32 %v1318, %v293
  %1320 = vmax.xlane.f32.xlu0 %v1319
  %v1321 = vpop.xlane.xlu0 %1320
  %v1322 = vmax.f32 %v294, %v295
  %v1323 = vmax.f32 %v1322, %v296
  %v1324 = vmax.f32 %v1323, %v297
  %1325 = vmax.xlane.f32.xlu0 %v1324
  %v1326 = vpop.xlane.xlu0 %1325
  %v1327 = vmax.f32 %v298, %v299
  %v1328 = vmax.f32 %v1327, %v300
  %v1329 = vmax.f32 %v1328, %v301
  %1330 = vmax.xlane.f32.xlu0 %v1329
  %v1331 = vpop.xlane.xlu0 %1330
  %v1332 = vmax.f32 %v302, %v303
  %v1333 = vmax.f32 %v1332, %v304
  %v1334 = vmax.f32 %v1333, %v305
  %1335 = vmax.xlane.f32.xlu0 %v1334
  %v1336 = vpop.xlane.xlu0 %1335
  %v1337 = vmax.f32 %v306, %v307
  %v1338 = vmax.f32 %v1337, %v308
  %v1339 = vmax.f32 %v1338, %v309
  %1340 = vmax.xlane.f32.xlu0 %v1339
  %v1341 = vpop.xlane.xlu0 %1340
  %v1342 = vmax.f32 %v310, %v311
  %v1343 = vmax.f32 %v1342, %v312
  %v1344 = vmax.f32 %v1343, %v313
  %1345 = vmax.xlane.f32.xlu0 %v1344
  %v1346 = vpop.xlane.xlu0 %1345
  %v1347 = vmax.f32 %v314, %v315
  %v1348 = vmax.f32 %v1347, %v316
  %v1349 = vmax.f32 %v1348, %v317
  %1350 = vmax.xlane.f32.xlu0 %v1349
  %v1351 = vpop.xlane.xlu0 %1350
  %v1352 = vmax.f32 %v318, %v319
  %v1353 = vmax.f32 %v1352, %v320
  %v1354 = vmax.f32 %v1353, %v321
  %1355 = vmax.xlane.f32.xlu0 %v1354
  %v1356 = vpop.xlane.xlu0 %1355
  %v1357 = vmax.f32 %v322, %v323
  %v1358 = vmax.f32 %v1357, %v324
  %v1359 = vmax.f32 %v1358, %v325
  %1360 = vmax.xlane.f32.xlu0 %v1359
  %v1361 = vpop.xlane.xlu0 %1360
  %v1362 = vmax.f32 %v326, %v327
  %v1363 = vmax.f32 %v1362, %v328
  %v1364 = vmax.f32 %v1363, %v329
  %1365 = vmax.xlane.f32.xlu0 %v1364
  %v1366 = vpop.xlane.xlu0 %1365
  %v1367 = vmax.f32 %v330, %v331
  %v1368 = vmax.f32 %v1367, %v332
  %v1369 = vmax.f32 %v1368, %v333
  %1370 = vmax.xlane.f32.xlu0 %v1369
  %v1371 = vpop.xlane.xlu0 %1370
  %v1372 = vmax.f32 %v334, %v335
  %v1373 = vmax.f32 %v1372, %v336
  %v1374 = vmax.f32 %v1373, %v337
  %1375 = vmax.xlane.f32.xlu0 %v1374
  %v1376 = vpop.xlane.xlu0 %1375
  %v1377 = vmax.f32 %v338, %v339
  %v1378 = vmax.f32 %v1377, %v340
  %v1379 = vmax.f32 %v1378, %v341
  %1380 = vmax.xlane.f32.xlu0 %v1379
  %v1381 = vpop.xlane.xlu0 %1380
  %v1382 = vmax.f32 %v342, %v343
  %v1383 = vmax.f32 %v1382, %v344
  %v1384 = vmax.f32 %v1383, %v345
  %1385 = vmax.xlane.f32.xlu0 %v1384
  %v1386 = vpop.xlane.xlu0 %1385
  %v1387 = vmax.f32 %v346, %v347
  %v1388 = vmax.f32 %v1387, %v348
  %v1389 = vmax.f32 %v1388, %v349
  %1390 = vmax.xlane.f32.xlu0 %v1389
  %v1391 = vpop.xlane.xlu0 %1390
  %v1392 = vmax.f32 %v350, %v351
  %v1393 = vmax.f32 %v1392, %v352
  %v1394 = vmax.f32 %v1393, %v353
  %1395 = vmax.xlane.f32.xlu0 %v1394
  %v1396 = vpop.xlane.xlu0 %1395
  %v1397 = vmax.f32 %v354, %v355
  %v1398 = vmax.f32 %v1397, %v356
  %v1399 = vmax.f32 %v1398, %v357
  %1400 = vmax.xlane.f32.xlu0 %v1399
  %v1401 = vpop.xlane.xlu0 %1400
  %v1402 = vmax.f32 %v358, %v359
  %v1403 = vmax.f32 %v1402, %v360
  %v1404 = vmax.f32 %v1403, %v361
  %1405 = vmax.xlane.f32.xlu0 %v1404
  %v1406 = vpop.xlane.xlu0 %1405
  %v1407 = vmax.f32 %v362, %v363
  %v1408 = vmax.f32 %v1407, %v364
  %v1409 = vmax.f32 %v1408, %v365
  %1410 = vmax.xlane.f32.xlu0 %v1409
  %v1411 = vpop.xlane.xlu0 %1410
  %v1412 = vmax.f32 %v366, %v367
  %v1413 = vmax.f32 %v1412, %v368
  %v1414 = vmax.f32 %v1413, %v369
  %1415 = vmax.xlane.f32.xlu0 %v1414
  %v1416 = vpop.xlane.xlu0 %1415
  %v1417 = vmax.f32 %v370, %v371
  %v1418 = vmax.f32 %v1417, %v372
  %v1419 = vmax.f32 %v1418, %v373
  %1420 = vmax.xlane.f32.xlu0 %v1419
  %v1421 = vpop.xlane.xlu0 %1420
  %v1422 = vmax.f32 %v374, %v375
  %v1423 = vmax.f32 %v1422, %v376
  %v1424 = vmax.f32 %v1423, %v377
  %1425 = vmax.xlane.f32.xlu0 %v1424
  %v1426 = vpop.xlane.xlu0 %1425
  %v1427 = vmax.f32 %v378, %v379
  %v1428 = vmax.f32 %v1427, %v380
  %v1429 = vmax.f32 %v1428, %v381
  %1430 = vmax.xlane.f32.xlu0 %v1429
  %v1431 = vpop.xlane.xlu0 %1430
  %v1432 = vmax.f32 %v382, %v383
  %v1433 = vmax.f32 %v1432, %v384
  %v1434 = vmax.f32 %v1433, %v385
  %1435 = vmax.xlane.f32.xlu0 %v1434
  %v1436 = vpop.xlane.xlu0 %1435
  %v1437 = vmax.f32 %v386, %v387
  %v1438 = vmax.f32 %v1437, %v388
  %v1439 = vmax.f32 %v1438, %v389
  %1440 = vmax.xlane.f32.xlu0 %v1439
  %v1441 = vpop.xlane.xlu0 %1440
  %v1442 = vmax.f32 %v390, %v391
  %v1443 = vmax.f32 %v1442, %v392
  %v1444 = vmax.f32 %v1443, %v393
  %1445 = vmax.xlane.f32.xlu0 %v1444
  %v1446 = vpop.xlane.xlu0 %1445
  %v1447 = vmax.f32 %v394, %v395
  %v1448 = vmax.f32 %v1447, %v396
  %v1449 = vmax.f32 %v1448, %v397
  %1450 = vmax.xlane.f32.xlu0 %v1449
  %v1451 = vpop.xlane.xlu0 %1450
  %v1452 = vmax.f32 %v398, %v399
  %v1453 = vmax.f32 %v1452, %v400
  %v1454 = vmax.f32 %v1453, %v401
  %1455 = vmax.xlane.f32.xlu0 %v1454
  %v1456 = vpop.xlane.xlu0 %1455
  %v1457 = vmax.f32 %v402, %v403
  %v1458 = vmax.f32 %v1457, %v404
  %v1459 = vmax.f32 %v1458, %v405
  %1460 = vmax.xlane.f32.xlu0 %v1459
  %v1461 = vpop.xlane.xlu0 %1460
  %v1462 = vmax.f32 %v406, %v407
  %v1463 = vmax.f32 %v1462, %v408
  %v1464 = vmax.f32 %v1463, %v409
  %1465 = vmax.xlane.f32.xlu0 %v1464
  %v1466 = vpop.xlane.xlu0 %1465
  %v1467 = vld [vmem:[%s1] sm:$0xff]
  %v1468 = vld [vmem:[%s1 + $0x8] sm:$0xff]
  %v1469 = vld [vmem:[%s1 + $0x10] sm:$0xff]
  %v1470 = vld [vmem:[%s1 + $0x18] sm:$0xff]
  %v1471 = vld [vmem:[%s1 + $0x20] sm:$0xff]
  %v1472 = vld [vmem:[%s1 + $0x28] sm:$0xff]
  %v1473 = vld [vmem:[%s1 + $0x30] sm:$0xff]
  %v1474 = vld [vmem:[%s1 + $0x38] sm:$0xff]
  %v1475 = vld [vmem:[%s1 + $0x40] sm:$0xff]
  %v1476 = vld [vmem:[%s1 + $0x48] sm:$0xff]
  %v1477 = vld [vmem:[%s1 + $0x50] sm:$0xff]
  %v1478 = vld [vmem:[%s1 + $0x58] sm:$0xff]
  %v1479 = vld [vmem:[%s1 + $0x60] sm:$0xff]
  %v1480 = vld [vmem:[%s1 + $0x68] sm:$0xff]
  %v1481 = vld [vmem:[%s1 + $0x70] sm:$0xff]
  %v1482 = vld [vmem:[%s1 + $0x78] sm:$0xff]
  %v1483 = vld [vmem:[%s1 + $0x80] sm:$0xff]
  %v1484 = vld [vmem:[%s1 + $0x88] sm:$0xff]
  %v1485 = vld [vmem:[%s1 + $0x90] sm:$0xff]
  %v1486 = vld [vmem:[%s1 + $0x98] sm:$0xff]
  %v1487 = vld [vmem:[%s1 + $0xa0] sm:$0xff]
  %v1488 = vld [vmem:[%s1 + $0xa8] sm:$0xff]
  %v1489 = vld [vmem:[%s1 + $0xb0] sm:$0xff]
  %v1490 = vld [vmem:[%s1 + $0xb8] sm:$0xff]
  %v1491 = vld [vmem:[%s1 + $0xc0] sm:$0xff]
  %v1492 = vld [vmem:[%s1 + $0xc8] sm:$0xff]
  %v1493 = vld [vmem:[%s1 + $0xd0] sm:$0xff]
  %v1494 = vld [vmem:[%s1 + $0xd8] sm:$0xff]
  %v1495 = vld [vmem:[%s1 + $0xe0] sm:$0xff]
  %v1496 = vld [vmem:[%s1 + $0xe8] sm:$0xff]
  %v1497 = vld [vmem:[%s1 + $0xf0] sm:$0xff]
  %v1498 = vld [vmem:[%s1 + $0xf8] sm:$0xff]
  %v1499 = vld [vmem:[%s1 + $0x100] sm:$0xff]
  %v1500 = vld [vmem:[%s1 + $0x108] sm:$0xff]
  %v1501 = vld [vmem:[%s1 + $0x110] sm:$0xff]
  %v1502 = vld [vmem:[%s1 + $0x118] sm:$0xff]
  %v1503 = vld [vmem:[%s1 + $0x120] sm:$0xff]
  %v1504 = vld [vmem:[%s1 + $0x128] sm:$0xff]
  %v1505 = vld [vmem:[%s1 + $0x130] sm:$0xff]
  %v1506 = vld [vmem:[%s1 + $0x138] sm:$0xff]
  %v1507 = vld [vmem:[%s1 + $0x140] sm:$0xff]
  %v1508 = vld [vmem:[%s1 + $0x148] sm:$0xff]
  %v1509 = vld [vmem:[%s1 + $0x150] sm:$0xff]
  %v1510 = vld [vmem:[%s1 + $0x158] sm:$0xff]
  %v1511 = vld [vmem:[%s1 + $0x160] sm:$0xff]
  %v1512 = vld [vmem:[%s1 + $0x168] sm:$0xff]
  %v1513 = vld [vmem:[%s1 + $0x170] sm:$0xff]
  %v1514 = vld [vmem:[%s1 + $0x178] sm:$0xff]
  %v1515 = vld [vmem:[%s1 + $0x180] sm:$0xff]
  %v1516 = vld [vmem:[%s1 + $0x188] sm:$0xff]
  %v1517 = vld [vmem:[%s1 + $0x190] sm:$0xff]
  %v1518 = vld [vmem:[%s1 + $0x198] sm:$0xff]
  %v1519 = vld [vmem:[%s1 + $0x1a0] sm:$0xff]
  %v1520 = vld [vmem:[%s1 + $0x1a8] sm:$0xff]
  %v1521 = vld [vmem:[%s1 + $0x1b0] sm:$0xff]
  %v1522 = vld [vmem:[%s1 + $0x1b8] sm:$0xff]
  %v1523 = vld [vmem:[%s1 + $0x1c0] sm:$0xff]
  %v1524 = vld [vmem:[%s1 + $0x1c8] sm:$0xff]
  %v1525 = vld [vmem:[%s1 + $0x1d0] sm:$0xff]
  %v1526 = vld [vmem:[%s1 + $0x1d8] sm:$0xff]
  %v1527 = vld [vmem:[%s1 + $0x1e0] sm:$0xff]
  %v1528 = vld [vmem:[%s1 + $0x1e8] sm:$0xff]
  %v1529 = vld [vmem:[%s1 + $0x1f0] sm:$0xff]
  %v1530 = vld [vmem:[%s1 + $0x1f8] sm:$0xff]
  %v1531 = vld [vmem:[%s1 + $0x200] sm:$0xff]
  %v1532 = vld [vmem:[%s1 + $0x208] sm:$0xff]
  %v1533 = vld [vmem:[%s1 + $0x210] sm:$0xff]
  %v1534 = vld [vmem:[%s1 + $0x218] sm:$0xff]
  %v1535 = vld [vmem:[%s1 + $0x220] sm:$0xff]
  %v1536 = vld [vmem:[%s1 + $0x228] sm:$0xff]
  %v1537 = vld [vmem:[%s1 + $0x230] sm:$0xff]
  %v1538 = vld [vmem:[%s1 + $0x238] sm:$0xff]
  %v1539 = vld [vmem:[%s1 + $0x240] sm:$0xff]
  %v1540 = vld [vmem:[%s1 + $0x248] sm:$0xff]
  %v1541 = vld [vmem:[%s1 + $0x250] sm:$0xff]
  %v1542 = vld [vmem:[%s1 + $0x258] sm:$0xff]
  %v1543 = vld [vmem:[%s1 + $0x260] sm:$0xff]
  %v1544 = vld [vmem:[%s1 + $0x268] sm:$0xff]
  %v1545 = vld [vmem:[%s1 + $0x270] sm:$0xff]
  %v1546 = vld [vmem:[%s1 + $0x278] sm:$0xff]
  %v1547 = vld [vmem:[%s1 + $0x280] sm:$0xff]
  %v1548 = vld [vmem:[%s1 + $0x288] sm:$0xff]
  %v1549 = vld [vmem:[%s1 + $0x290] sm:$0xff]
  %v1550 = vld [vmem:[%s1 + $0x298] sm:$0xff]
  %v1551 = vld [vmem:[%s1 + $0x2a0] sm:$0xff]
  %v1552 = vld [vmem:[%s1 + $0x2a8] sm:$0xff]
  %v1553 = vld [vmem:[%s1 + $0x2b0] sm:$0xff]
  %v1554 = vld [vmem:[%s1 + $0x2b8] sm:$0xff]
  %v1555 = vld [vmem:[%s1 + $0x2c0] sm:$0xff]
  %v1556 = vld [vmem:[%s1 + $0x2c8] sm:$0xff]
  %v1557 = vld [vmem:[%s1 + $0x2d0] sm:$0xff]
  %v1558 = vld [vmem:[%s1 + $0x2d8] sm:$0xff]
  %v1559 = vld [vmem:[%s1 + $0x2e0] sm:$0xff]
  %v1560 = vld [vmem:[%s1 + $0x2e8] sm:$0xff]
  %v1561 = vld [vmem:[%s1 + $0x2f0] sm:$0xff]
  %v1562 = vld [vmem:[%s1 + $0x2f8] sm:$0xff]
  %v1563 = vld [vmem:[%s1 + $0x300] sm:$0xff]
  %v1564 = vld [vmem:[%s1 + $0x308] sm:$0xff]
  %v1565 = vld [vmem:[%s1 + $0x310] sm:$0xff]
  %v1566 = vld [vmem:[%s1 + $0x318] sm:$0xff]
  %v1567 = vld [vmem:[%s1 + $0x320] sm:$0xff]
  %v1568 = vld [vmem:[%s1 + $0x328] sm:$0xff]
  %v1569 = vld [vmem:[%s1 + $0x330] sm:$0xff]
  %v1570 = vld [vmem:[%s1 + $0x338] sm:$0xff]
  %v1571 = vld [vmem:[%s1 + $0x340] sm:$0xff]
  %v1572 = vld [vmem:[%s1 + $0x348] sm:$0xff]
  %v1573 = vld [vmem:[%s1 + $0x350] sm:$0xff]
  %v1574 = vld [vmem:[%s1 + $0x358] sm:$0xff]
  %v1575 = vld [vmem:[%s1 + $0x360] sm:$0xff]
  %v1576 = vld [vmem:[%s1 + $0x368] sm:$0xff]
  %v1577 = vld [vmem:[%s1 + $0x370] sm:$0xff]
  %v1578 = vld [vmem:[%s1 + $0x378] sm:$0xff]
  %v1579 = vld [vmem:[%s1 + $0x380] sm:$0xff]
  %v1580 = vld [vmem:[%s1 + $0x388] sm:$0xff]
  %v1581 = vld [vmem:[%s1 + $0x390] sm:$0xff]
  %v1582 = vld [vmem:[%s1 + $0x398] sm:$0xff]
  %v1583 = vld [vmem:[%s1 + $0x3a0] sm:$0xff]
  %v1584 = vld [vmem:[%s1 + $0x3a8] sm:$0xff]
  %v1585 = vld [vmem:[%s1 + $0x3b0] sm:$0xff]
  %v1586 = vld [vmem:[%s1 + $0x3b8] sm:$0xff]
  %v1587 = vld [vmem:[%s1 + $0x3c0] sm:$0xff]
  %v1588 = vld [vmem:[%s1 + $0x3c8] sm:$0xff]
  %v1589 = vld [vmem:[%s1 + $0x3d0] sm:$0xff]
  %v1590 = vld [vmem:[%s1 + $0x3d8] sm:$0xff]
  %v1591 = vld [vmem:[%s1 + $0x3e0] sm:$0xff]
  %v1592 = vld [vmem:[%s1 + $0x3e8] sm:$0xff]
  %v1593 = vld [vmem:[%s1 + $0x3f0] sm:$0xff]
  %v1594 = vld [vmem:[%s1 + $0x3f8] sm:$0xff]
  %v1595 = vld [vmem:[%s1 + $0x400] sm:$0xff]
  %v1596 = vld [vmem:[%s1 + $0x408] sm:$0xff]
  %v1597 = vld [vmem:[%s1 + $0x410] sm:$0xff]
  %v1598 = vld [vmem:[%s1 + $0x418] sm:$0xff]
  %v1599 = vld [vmem:[%s1 + $0x420] sm:$0xff]
  %v1600 = vld [vmem:[%s1 + $0x428] sm:$0xff]
  %v1601 = vld [vmem:[%s1 + $0x430] sm:$0xff]
  %v1602 = vld [vmem:[%s1 + $0x438] sm:$0xff]
  %v1603 = vld [vmem:[%s1 + $0x440] sm:$0xff]
  %v1604 = vld [vmem:[%s1 + $0x448] sm:$0xff]
  %v1605 = vld [vmem:[%s1 + $0x450] sm:$0xff]
  %v1606 = vld [vmem:[%s1 + $0x458] sm:$0xff]
  %v1607 = vld [vmem:[%s1 + $0x460] sm:$0xff]
  %v1608 = vld [vmem:[%s1 + $0x468] sm:$0xff]
  %v1609 = vld [vmem:[%s1 + $0x470] sm:$0xff]
  %v1610 = vld [vmem:[%s1 + $0x478] sm:$0xff]
  %v1611 = vld [vmem:[%s1 + $0x480] sm:$0xff]
  %v1612 = vld [vmem:[%s1 + $0x488] sm:$0xff]
  %v1613 = vld [vmem:[%s1 + $0x490] sm:$0xff]
  %v1614 = vld [vmem:[%s1 + $0x498] sm:$0xff]
  %v1615 = vld [vmem:[%s1 + $0x4a0] sm:$0xff]
  %v1616 = vld [vmem:[%s1 + $0x4a8] sm:$0xff]
  %v1617 = vld [vmem:[%s1 + $0x4b0] sm:$0xff]
  %v1618 = vld [vmem:[%s1 + $0x4b8] sm:$0xff]
  %v1619 = vld [vmem:[%s1 + $0x4c0] sm:$0xff]
  %v1620 = vld [vmem:[%s1 + $0x4c8] sm:$0xff]
  %v1621 = vld [vmem:[%s1 + $0x4d0] sm:$0xff]
  %v1622 = vld [vmem:[%s1 + $0x4d8] sm:$0xff]
  %v1623 = vld [vmem:[%s1 + $0x4e0] sm:$0xff]
  %v1624 = vld [vmem:[%s1 + $0x4e8] sm:$0xff]
  %v1625 = vld [vmem:[%s1 + $0x4f0] sm:$0xff]
  %v1626 = vld [vmem:[%s1 + $0x4f8] sm:$0xff]
  %v1627 = vld [vmem:[%s1 + $0x500] sm:$0xff]
  %v1628 = vld [vmem:[%s1 + $0x508] sm:$0xff]
  %v1629 = vld [vmem:[%s1 + $0x510] sm:$0xff]
  %v1630 = vld [vmem:[%s1 + $0x518] sm:$0xff]
  %v1631 = vld [vmem:[%s1 + $0x520] sm:$0xff]
  %v1632 = vld [vmem:[%s1 + $0x528] sm:$0xff]
  %v1633 = vld [vmem:[%s1 + $0x530] sm:$0xff]
  %v1634 = vld [vmem:[%s1 + $0x538] sm:$0xff]
  %v1635 = vld [vmem:[%s1 + $0x540] sm:$0xff]
  %v1636 = vld [vmem:[%s1 + $0x548] sm:$0xff]
  %v1637 = vld [vmem:[%s1 + $0x550] sm:$0xff]
  %v1638 = vld [vmem:[%s1 + $0x558] sm:$0xff]
  %v1639 = vld [vmem:[%s1 + $0x560] sm:$0xff]
  %v1640 = vld [vmem:[%s1 + $0x568] sm:$0xff]
  %v1641 = vld [vmem:[%s1 + $0x570] sm:$0xff]
  %v1642 = vld [vmem:[%s1 + $0x578] sm:$0xff]
  %v1643 = vld [vmem:[%s1 + $0x580] sm:$0xff]
  %v1644 = vld [vmem:[%s1 + $0x588] sm:$0xff]
  %v1645 = vld [vmem:[%s1 + $0x590] sm:$0xff]
  %v1646 = vld [vmem:[%s1 + $0x598] sm:$0xff]
  %v1647 = vld [vmem:[%s1 + $0x5a0] sm:$0xff]
  %v1648 = vld [vmem:[%s1 + $0x5a8] sm:$0xff]
  %v1649 = vld [vmem:[%s1 + $0x5b0] sm:$0xff]
  %v1650 = vld [vmem:[%s1 + $0x5b8] sm:$0xff]
  %v1651 = vld [vmem:[%s1 + $0x5c0] sm:$0xff]
  %v1652 = vld [vmem:[%s1 + $0x5c8] sm:$0xff]
  %v1653 = vld [vmem:[%s1 + $0x5d0] sm:$0xff]
  %v1654 = vld [vmem:[%s1 + $0x5d8] sm:$0xff]
  %v1655 = vld [vmem:[%s1 + $0x5e0] sm:$0xff]
  %v1656 = vld [vmem:[%s1 + $0x5e8] sm:$0xff]
  %v1657 = vld [vmem:[%s1 + $0x5f0] sm:$0xff]
  %v1658 = vld [vmem:[%s1 + $0x5f8] sm:$0xff]
  %v1755 = vlaneseq
  %v1756 = vand.u32 %v1755, 127
  %v1757 = vlaneseq
  %v1758 = vshrl.u32 %v1757, 7
  %v1759 = vsub.s32 %v1756, %v1758
  %v1760 = vrot.slane %v991, %v1759
  %v1761 = vadd.s32 %v1756, 4294967288
  %v1762 = vlaneseq
  %v1763 = vshrl.u32 %v1762, 7
  %v1764 = vsub.s32 %v1761, %v1763
  %v1765 = vrot.slane %v996, %v1764
  %vm1766 = vcmask 130112
  %v1767 = vsel %vm1766, %v1765, %v1760
  %v1768 = vadd.s32 %v1756, 4294967280
  %v1769 = vlaneseq
  %v1770 = vshrl.u32 %v1769, 7
  %v1771 = vsub.s32 %v1768, %v1770
  %v1772 = vrot.slane %v1001, %v1771
  %vm1773 = vcmask 195712
  %v1774 = vsel %vm1773, %v1772, %v1767
  %v1775 = vadd.s32 %v1756, 4294967272
  %v1776 = vlaneseq
  %v1777 = vshrl.u32 %v1776, 7
  %v1778 = vsub.s32 %v1775, %v1777
  %v1779 = vrot.slane %v1006, %v1778
  %vm1780 = vcmask 261312
  %v1781 = vsel %vm1780, %v1779, %v1774
  %v1782 = vadd.s32 %v1756, 4294967264
  %v1783 = vlaneseq
  %v1784 = vshrl.u32 %v1783, 7
  %v1785 = vsub.s32 %v1782, %v1784
  %v1786 = vrot.slane %v1011, %v1785
  %vm1787 = vcmask 326912
  %v1788 = vsel %vm1787, %v1786, %v1781
  %v1789 = vadd.s32 %v1756, 4294967256
  %v1790 = vlaneseq
  %v1791 = vshrl.u32 %v1790, 7
  %v1792 = vsub.s32 %v1789, %v1791
  %v1793 = vrot.slane %v1016, %v1792
  %vm1794 = vcmask 392512
  %v1795 = vsel %vm1794, %v1793, %v1788
  %v1796 = vadd.s32 %v1756, 4294967248
  %v1797 = vlaneseq
  %v1798 = vshrl.u32 %v1797, 7
  %v1799 = vsub.s32 %v1796, %v1798
  %v1800 = vrot.slane %v1021, %v1799
  %vm1801 = vcmask 458112
  %v1802 = vsel %vm1801, %v1800, %v1795
  %v1803 = vadd.s32 %v1756, 4294967240
  %v1804 = vlaneseq
  %v1805 = vshrl.u32 %v1804, 7
  %v1806 = vsub.s32 %v1803, %v1805
  %v1807 = vrot.slane %v1026, %v1806
  %vm1808 = vcmask 523712
  %v1809 = vsel %vm1808, %v1807, %v1802
  %v1810 = vadd.s32 %v1756, 4294967232
  %v1811 = vlaneseq
  %v1812 = vshrl.u32 %v1811, 7
  %v1813 = vsub.s32 %v1810, %v1812
  %v1814 = vrot.slane %v1031, %v1813
  %vm1815 = vcmask 589312
  %v1816 = vsel %vm1815, %v1814, %v1809
  %v1817 = vadd.s32 %v1756, 4294967224
  %v1818 = vlaneseq
  %v1819 = vshrl.u32 %v1818, 7
  %v1820 = vsub.s32 %v1817, %v1819
  %v1821 = vrot.slane %v1036, %v1820
  %vm1822 = vcmask 654912
  %v1823 = vsel %vm1822, %v1821, %v1816
  %v1824 = vadd.s32 %v1756, 4294967216
  %v1825 = vlaneseq
  %v1826 = vshrl.u32 %v1825, 7
  %v1827 = vsub.s32 %v1824, %v1826
  %v1828 = vrot.slane %v1041, %v1827
  %vm1829 = vcmask 720512
  %v1830 = vsel %vm1829, %v1828, %v1823
  %v1831 = vadd.s32 %v1756, 4294967208
  %v1832 = vlaneseq
  %v1833 = vshrl.u32 %v1832, 7
  %v1834 = vsub.s32 %v1831, %v1833
  %v1835 = vrot.slane %v1046, %v1834
  %vm1836 = vcmask 786112
  %v1837 = vsel %vm1836, %v1835, %v1830
  %v1838 = vadd.s32 %v1756, 4294967200
  %v1839 = vlaneseq
  %v1840 = vshrl.u32 %v1839, 7
  %v1841 = vsub.s32 %v1838, %v1840
  %v1842 = vrot.slane %v1051, %v1841
  %vm1843 = vcmask 851712
  %v1844 = vsel %vm1843, %v1842, %v1837
  %v1845 = vadd.s32 %v1756, 4294967192
  %v1846 = vlaneseq
  %v1847 = vshrl.u32 %v1846, 7
  %v1848 = vsub.s32 %v1845, %v1847
  %v1849 = vrot.slane %v1056, %v1848
  %vm1850 = vcmask 917312
  %v1851 = vsel %vm1850, %v1849, %v1844
  %v1852 = vadd.s32 %v1756, 4294967184
  %v1853 = vlaneseq
  %v1854 = vshrl.u32 %v1853, 7
  %v1855 = vsub.s32 %v1852, %v1854
  %v1856 = vrot.slane %v1061, %v1855
  %vm1857 = vcmask 982912
  %v1858 = vsel %vm1857, %v1856, %v1851
  %v1859 = vadd.s32 %v1756, 4294967176
  %v1860 = vlaneseq
  %v1861 = vshrl.u32 %v1860, 7
  %v1862 = vsub.s32 %v1859, %v1861
  %v1863 = vrot.slane %v1066, %v1862
  %vm1864 = vcmask 1048512
  %v1865 = vsel %vm1864, %v1863, %v1858
  %v1866 = vlaneseq
  %v1867 = vshrl.u32 %v1866, 7
  %v1868 = vsub.s32 %v1756, %v1867
  %v1869 = vrot.slane %v1071, %v1868
  %v1870 = vlaneseq
  %v1871 = vshrl.u32 %v1870, 7
  %v1872 = vsub.s32 %v1761, %v1871
  %v1873 = vrot.slane %v1076, %v1872
  %v1874 = vsel %vm1766, %v1873, %v1869
  %v1875 = vlaneseq
  %v1876 = vshrl.u32 %v1875, 7
  %v1877 = vsub.s32 %v1768, %v1876
  %v1878 = vrot.slane %v1081, %v1877
  %v1879 = vsel %vm1773, %v1878, %v1874
  %v1880 = vlaneseq
  %v1881 = vshrl.u32 %v1880, 7
  %v1882 = vsub.s32 %v1775, %v1881
  %v1883 = vrot.slane %v1086, %v1882
  %v1884 = vsel %vm1780, %v1883, %v1879
  %v1885 = vlaneseq
  %v1886 = vshrl.u32 %v1885, 7
  %v1887 = vsub.s32 %v1782, %v1886
  %v1888 = vrot.slane %v1091, %v1887
  %v1889 = vsel %vm1787, %v1888, %v1884
  %v1890 = vlaneseq
  %v1891 = vshrl.u32 %v1890, 7
  %v1892 = vsub.s32 %v1789, %v1891
  %v1893 = vrot.slane %v1096, %v1892
  %v1894 = vsel %vm1794, %v1893, %v1889
  %v1895 = vlaneseq
  %v1896 = vshrl.u32 %v1895, 7
  %v1897 = vsub.s32 %v1796, %v1896
  %v1898 = vrot.slane %v1101, %v1897
  %v1899 = vsel %vm1801, %v1898, %v1894
  %v1900 = vlaneseq
  %v1901 = vshrl.u32 %v1900, 7
  %v1902 = vsub.s32 %v1803, %v1901
  %v1903 = vrot.slane %v1106, %v1902
  %v1904 = vsel %vm1808, %v1903, %v1899
  %v1905 = vlaneseq
  %v1906 = vshrl.u32 %v1905, 7
  %v1907 = vsub.s32 %v1810, %v1906
  %v1908 = vrot.slane %v1111, %v1907
  %v1909 = vsel %vm1815, %v1908, %v1904
  %v1910 = vlaneseq
  %v1911 = vshrl.u32 %v1910, 7
  %v1912 = vsub.s32 %v1817, %v1911
  %v1913 = vrot.slane %v1116, %v1912
  %v1914 = vsel %vm1822, %v1913, %v1909
  %v1915 = vlaneseq
  %v1916 = vshrl.u32 %v1915, 7
  %v1917 = vsub.s32 %v1824, %v1916
  %v1918 = vrot.slane %v1121, %v1917
  %v1919 = vsel %vm1829, %v1918, %v1914
  %v1920 = vlaneseq
  %v1921 = vshrl.u32 %v1920, 7
  %v1922 = vsub.s32 %v1831, %v1921
  %v1923 = vrot.slane %v1126, %v1922
  %v1924 = vsel %vm1836, %v1923, %v1919
  %v1925 = vlaneseq
  %v1926 = vshrl.u32 %v1925, 7
  %v1927 = vsub.s32 %v1838, %v1926
  %v1928 = vrot.slane %v1131, %v1927
  %v1929 = vsel %vm1843, %v1928, %v1924
  %v1930 = vlaneseq
  %v1931 = vshrl.u32 %v1930, 7
  %v1932 = vsub.s32 %v1845, %v1931
  %v1933 = vrot.slane %v1136, %v1932
  %v1934 = vsel %vm1850, %v1933, %v1929
  %v1935 = vlaneseq
  %v1936 = vshrl.u32 %v1935, 7
  %v1937 = vsub.s32 %v1852, %v1936
  %v1938 = vrot.slane %v1141, %v1937
  %v1939 = vsel %vm1857, %v1938, %v1934
  %v1940 = vlaneseq
  %v1941 = vshrl.u32 %v1940, 7
  %v1942 = vsub.s32 %v1859, %v1941
  %v1943 = vrot.slane %v1146, %v1942
  %v1944 = vsel %vm1864, %v1943, %v1939
  %v1945 = vlaneseq
  %v1946 = vshrl.u32 %v1945, 7
  %v1947 = vsub.s32 %v1756, %v1946
  %v1948 = vrot.slane %v1151, %v1947
  %v1949 = vlaneseq
  %v1950 = vshrl.u32 %v1949, 7
  %v1951 = vsub.s32 %v1761, %v1950
  %v1952 = vrot.slane %v1156, %v1951
  %v1953 = vsel %vm1766, %v1952, %v1948
  %v1954 = vlaneseq
  %v1955 = vshrl.u32 %v1954, 7
  %v1956 = vsub.s32 %v1768, %v1955
  %v1957 = vrot.slane %v1161, %v1956
  %v1958 = vsel %vm1773, %v1957, %v1953
  %v1959 = vlaneseq
  %v1960 = vshrl.u32 %v1959, 7
  %v1961 = vsub.s32 %v1775, %v1960
  %v1962 = vrot.slane %v1166, %v1961
  %v1963 = vsel %vm1780, %v1962, %v1958
  %v1964 = vlaneseq
  %v1965 = vshrl.u32 %v1964, 7
  %v1966 = vsub.s32 %v1782, %v1965
  %v1967 = vrot.slane %v1171, %v1966
  %v1968 = vsel %vm1787, %v1967, %v1963
  %v1969 = vlaneseq
  %v1970 = vshrl.u32 %v1969, 7
  %v1971 = vsub.s32 %v1789, %v1970
  %v1972 = vrot.slane %v1176, %v1971
  %v1973 = vsel %vm1794, %v1972, %v1968
  %v1974 = vlaneseq
  %v1975 = vshrl.u32 %v1974, 7
  %v1976 = vsub.s32 %v1796, %v1975
  %v1977 = vrot.slane %v1181, %v1976
  %v1978 = vsel %vm1801, %v1977, %v1973
  %v1979 = vlaneseq
  %v1980 = vshrl.u32 %v1979, 7
  %v1981 = vsub.s32 %v1803, %v1980
  %v1982 = vrot.slane %v1186, %v1981
  %v1983 = vsel %vm1808, %v1982, %v1978
  %v1984 = vlaneseq
  %v1985 = vshrl.u32 %v1984, 7
  %v1986 = vsub.s32 %v1810, %v1985
  %v1987 = vrot.slane %v1191, %v1986
  %v1988 = vsel %vm1815, %v1987, %v1983
  %v1989 = vlaneseq
  %v1990 = vshrl.u32 %v1989, 7
  %v1991 = vsub.s32 %v1817, %v1990
  %v1992 = vrot.slane %v1196, %v1991
  %v1993 = vsel %vm1822, %v1992, %v1988
  %v1994 = vlaneseq
  %v1995 = vshrl.u32 %v1994, 7
  %v1996 = vsub.s32 %v1824, %v1995
  %v1997 = vrot.slane %v1201, %v1996
  %v1998 = vsel %vm1829, %v1997, %v1993
  %v1999 = vlaneseq
  %v2000 = vshrl.u32 %v1999, 7
  %v2001 = vsub.s32 %v1831, %v2000
  %v2002 = vrot.slane %v1206, %v2001
  %v2003 = vsel %vm1836, %v2002, %v1998
  %v2004 = vlaneseq
  %v2005 = vshrl.u32 %v2004, 7
  %v2006 = vsub.s32 %v1838, %v2005
  %v2007 = vrot.slane %v1211, %v2006
  %v2008 = vsel %vm1843, %v2007, %v2003
  %v2009 = vlaneseq
  %v2010 = vshrl.u32 %v2009, 7
  %v2011 = vsub.s32 %v1845, %v2010
  %v2012 = vrot.slane %v1216, %v2011
  %v2013 = vsel %vm1850, %v2012, %v2008
  %v2014 = vlaneseq
  %v2015 = vshrl.u32 %v2014, 7
  %v2016 = vsub.s32 %v1852, %v2015
  %v2017 = vrot.slane %v1221, %v2016
  %v2018 = vsel %vm1857, %v2017, %v2013
  %v2019 = vlaneseq
  %v2020 = vshrl.u32 %v2019, 7
  %v2021 = vsub.s32 %v1859, %v2020
  %v2022 = vrot.slane %v1226, %v2021
  %v2023 = vsel %vm1864, %v2022, %v2018
  %v2024 = vlaneseq
  %v2025 = vshrl.u32 %v2024, 7
  %v2026 = vsub.s32 %v1756, %v2025
  %v2027 = vrot.slane %v1231, %v2026
  %v2028 = vlaneseq
  %v2029 = vshrl.u32 %v2028, 7
  %v2030 = vsub.s32 %v1761, %v2029
  %v2031 = vrot.slane %v1236, %v2030
  %v2032 = vsel %vm1766, %v2031, %v2027
  %v2033 = vlaneseq
  %v2034 = vshrl.u32 %v2033, 7
  %v2035 = vsub.s32 %v1768, %v2034
  %v2036 = vrot.slane %v1241, %v2035
  %v2037 = vsel %vm1773, %v2036, %v2032
  %v2038 = vlaneseq
  %v2039 = vshrl.u32 %v2038, 7
  %v2040 = vsub.s32 %v1775, %v2039
  %v2041 = vrot.slane %v1246, %v2040
  %v2042 = vsel %vm1780, %v2041, %v2037
  %v2043 = vlaneseq
  %v2044 = vshrl.u32 %v2043, 7
  %v2045 = vsub.s32 %v1782, %v2044
  %v2046 = vrot.slane %v1251, %v2045
  %v2047 = vsel %vm1787, %v2046, %v2042
  %v2048 = vlaneseq
  %v2049 = vshrl.u32 %v2048, 7
  %v2050 = vsub.s32 %v1789, %v2049
  %v2051 = vrot.slane %v1256, %v2050
  %v2052 = vsel %vm1794, %v2051, %v2047
  %v2053 = vlaneseq
  %v2054 = vshrl.u32 %v2053, 7
  %v2055 = vsub.s32 %v1796, %v2054
  %v2056 = vrot.slane %v1261, %v2055
  %v2057 = vsel %vm1801, %v2056, %v2052
  %v2058 = vlaneseq
  %v2059 = vshrl.u32 %v2058, 7
  %v2060 = vsub.s32 %v1803, %v2059
  %v2061 = vrot.slane %v1266, %v2060
  %v2062 = vsel %vm1808, %v2061, %v2057
  %v2063 = vlaneseq
  %v2064 = vshrl.u32 %v2063, 7
  %v2065 = vsub.s32 %v1810, %v2064
  %v2066 = vrot.slane %v1271, %v2065
  %v2067 = vsel %vm1815, %v2066, %v2062
  %v2068 = vlaneseq
  %v2069 = vshrl.u32 %v2068, 7
  %v2070 = vsub.s32 %v1817, %v2069
  %v2071 = vrot.slane %v1276, %v2070
  %v2072 = vsel %vm1822, %v2071, %v2067
  %v2073 = vlaneseq
  %v2074 = vshrl.u32 %v2073, 7
  %v2075 = vsub.s32 %v1824, %v2074
  %v2076 = vrot.slane %v1281, %v2075
  %v2077 = vsel %vm1829, %v2076, %v2072
  %v2078 = vlaneseq
  %v2079 = vshrl.u32 %v2078, 7
  %v2080 = vsub.s32 %v1831, %v2079
  %v2081 = vrot.slane %v1286, %v2080
  %v2082 = vsel %vm1836, %v2081, %v2077
  %v2083 = vlaneseq
  %v2084 = vshrl.u32 %v2083, 7
  %v2085 = vsub.s32 %v1838, %v2084
  %v2086 = vrot.slane %v1291, %v2085
  %v2087 = vsel %vm1843, %v2086, %v2082
  %v2088 = vlaneseq
  %v2089 = vshrl.u32 %v2088, 7
  %v2090 = vsub.s32 %v1845, %v2089
  %v2091 = vrot.slane %v1296, %v2090
  %v2092 = vsel %vm1850, %v2091, %v2087
  %v2093 = vlaneseq
  %v2094 = vshrl.u32 %v2093, 7
  %v2095 = vsub.s32 %v1852, %v2094
  %v2096 = vrot.slane %v1301, %v2095
  %v2097 = vsel %vm1857, %v2096, %v2092
  %v2098 = vlaneseq
  %v2099 = vshrl.u32 %v2098, 7
  %v2100 = vsub.s32 %v1859, %v2099
  %v2101 = vrot.slane %v1306, %v2100
  %v2102 = vsel %vm1864, %v2101, %v2097
  %v2103 = vlaneseq
  %v2104 = vshrl.u32 %v2103, 7
  %v2105 = vsub.s32 %v1756, %v2104
  %v2106 = vrot.slane %v1311, %v2105
  %v2107 = vlaneseq
  %v2108 = vshrl.u32 %v2107, 7
  %v2109 = vsub.s32 %v1761, %v2108
  %v2110 = vrot.slane %v1316, %v2109
  %v2111 = vsel %vm1766, %v2110, %v2106
  %v2112 = vlaneseq
  %v2113 = vshrl.u32 %v2112, 7
  %v2114 = vsub.s32 %v1768, %v2113
  %v2115 = vrot.slane %v1321, %v2114
  %v2116 = vsel %vm1773, %v2115, %v2111
  %v2117 = vlaneseq
  %v2118 = vshrl.u32 %v2117, 7
  %v2119 = vsub.s32 %v1775, %v2118
  %v2120 = vrot.slane %v1326, %v2119
  %v2121 = vsel %vm1780, %v2120, %v2116
  %v2122 = vlaneseq
  %v2123 = vshrl.u32 %v2122, 7
  %v2124 = vsub.s32 %v1782, %v2123
  %v2125 = vrot.slane %v1331, %v2124
  %v2126 = vsel %vm1787, %v2125, %v2121
  %v2127 = vlaneseq
  %v2128 = vshrl.u32 %v2127, 7
  %v2129 = vsub.s32 %v1789, %v2128
  %v2130 = vrot.slane %v1336, %v2129
  %v2131 = vsel %vm1794, %v2130, %v2126
  %v2132 = vlaneseq
  %v2133 = vshrl.u32 %v2132, 7
  %v2134 = vsub.s32 %v1796, %v2133
  %v2135 = vrot.slane %v1341, %v2134
  %v2136 = vsel %vm1801, %v2135, %v2131
  %v2137 = vlaneseq
  %v2138 = vshrl.u32 %v2137, 7
  %v2139 = vsub.s32 %v1803, %v2138
  %v2140 = vrot.slane %v1346, %v2139
  %v2141 = vsel %vm1808, %v2140, %v2136
  %v2142 = vlaneseq
  %v2143 = vshrl.u32 %v2142, 7
  %v2144 = vsub.s32 %v1810, %v2143
  %v2145 = vrot.slane %v1351, %v2144
  %v2146 = vsel %vm1815, %v2145, %v2141
  %v2147 = vlaneseq
  %v2148 = vshrl.u32 %v2147, 7
  %v2149 = vsub.s32 %v1817, %v2148
  %v2150 = vrot.slane %v1356, %v2149
  %v2151 = vsel %vm1822, %v2150, %v2146
  %v2152 = vlaneseq
  %v2153 = vshrl.u32 %v2152, 7
  %v2154 = vsub.s32 %v1824, %v2153
  %v2155 = vrot.slane %v1361, %v2154
  %v2156 = vsel %vm1829, %v2155, %v2151
  %v2157 = vlaneseq
  %v2158 = vshrl.u32 %v2157, 7
  %v2159 = vsub.s32 %v1831, %v2158
  %v2160 = vrot.slane %v1366, %v2159
  %v2161 = vsel %vm1836, %v2160, %v2156
  %v2162 = vlaneseq
  %v2163 = vshrl.u32 %v2162, 7
  %v2164 = vsub.s32 %v1838, %v2163
  %v2165 = vrot.slane %v1371, %v2164
  %v2166 = vsel %vm1843, %v2165, %v2161
  %v2167 = vlaneseq
  %v2168 = vshrl.u32 %v2167, 7
  %v2169 = vsub.s32 %v1845, %v2168
  %v2170 = vrot.slane %v1376, %v2169
  %v2171 = vsel %vm1850, %v2170, %v2166
  %v2172 = vlaneseq
  %v2173 = vshrl.u32 %v2172, 7
  %v2174 = vsub.s32 %v1852, %v2173
  %v2175 = vrot.slane %v1381, %v2174
  %v2176 = vsel %vm1857, %v2175, %v2171
  %v2177 = vlaneseq
  %v2178 = vshrl.u32 %v2177, 7
  %v2179 = vsub.s32 %v1859, %v2178
  %v2180 = vrot.slane %v1386, %v2179
  %v2181 = vsel %vm1864, %v2180, %v2176
  %v2182 = vlaneseq
  %v2183 = vshrl.u32 %v2182, 7
  %v2184 = vsub.s32 %v1756, %v2183
  %v2185 = vrot.slane %v1391, %v2184
  %v2186 = vlaneseq
  %v2187 = vshrl.u32 %v2186, 7
  %v2188 = vsub.s32 %v1761, %v2187
  %v2189 = vrot.slane %v1396, %v2188
  %v2190 = vsel %vm1766, %v2189, %v2185
  %v2191 = vlaneseq
  %v2192 = vshrl.u32 %v2191, 7
  %v2193 = vsub.s32 %v1768, %v2192
  %v2194 = vrot.slane %v1401, %v2193
  %v2195 = vsel %vm1773, %v2194, %v2190
  %v2196 = vlaneseq
  %v2197 = vshrl.u32 %v2196, 7
  %v2198 = vsub.s32 %v1775, %v2197
  %v2199 = vrot.slane %v1406, %v2198
  %v2200 = vsel %vm1780, %v2199, %v2195
  %v2201 = vlaneseq
  %v2202 = vshrl.u32 %v2201, 7
  %v2203 = vsub.s32 %v1782, %v2202
  %v2204 = vrot.slane %v1411, %v2203
  %v2205 = vsel %vm1787, %v2204, %v2200
  %v2206 = vlaneseq
  %v2207 = vshrl.u32 %v2206, 7
  %v2208 = vsub.s32 %v1789, %v2207
  %v2209 = vrot.slane %v1416, %v2208
  %v2210 = vsel %vm1794, %v2209, %v2205
  %v2211 = vlaneseq
  %v2212 = vshrl.u32 %v2211, 7
  %v2213 = vsub.s32 %v1796, %v2212
  %v2214 = vrot.slane %v1421, %v2213
  %v2215 = vsel %vm1801, %v2214, %v2210
  %v2216 = vlaneseq
  %v2217 = vshrl.u32 %v2216, 7
  %v2218 = vsub.s32 %v1803, %v2217
  %v2219 = vrot.slane %v1426, %v2218
  %v2220 = vsel %vm1808, %v2219, %v2215
  %v2221 = vlaneseq
  %v2222 = vshrl.u32 %v2221, 7
  %v2223 = vsub.s32 %v1810, %v2222
  %v2224 = vrot.slane %v1431, %v2223
  %v2225 = vsel %vm1815, %v2224, %v2220
  %v2226 = vlaneseq
  %v2227 = vshrl.u32 %v2226, 7
  %v2228 = vsub.s32 %v1817, %v2227
  %v2229 = vrot.slane %v1436, %v2228
  %v2230 = vsel %vm1822, %v2229, %v2225
  %v2231 = vlaneseq
  %v2232 = vshrl.u32 %v2231, 7
  %v2233 = vsub.s32 %v1824, %v2232
  %v2234 = vrot.slane %v1441, %v2233
  %v2235 = vsel %vm1829, %v2234, %v2230
  %v2236 = vlaneseq
  %v2237 = vshrl.u32 %v2236, 7
  %v2238 = vsub.s32 %v1831, %v2237
  %v2239 = vrot.slane %v1446, %v2238
  %v2240 = vsel %vm1836, %v2239, %v2235
  %v2241 = vlaneseq
  %v2242 = vshrl.u32 %v2241, 7
  %v2243 = vsub.s32 %v1838, %v2242
  %v2244 = vrot.slane %v1451, %v2243
  %v2245 = vsel %vm1843, %v2244, %v2240
  %v2246 = vlaneseq
  %v2247 = vshrl.u32 %v2246, 7
  %v2248 = vsub.s32 %v1845, %v2247
  %v2249 = vrot.slane %v1456, %v2248
  %v2250 = vsel %vm1850, %v2249, %v2245
  %v2251 = vlaneseq
  %v2252 = vshrl.u32 %v2251, 7
  %v2253 = vsub.s32 %v1852, %v2252
  %v2254 = vrot.slane %v1461, %v2253
  %v2255 = vsel %vm1857, %v2254, %v2250
  %v2256 = vlaneseq
  %v2257 = vshrl.u32 %v2256, 7
  %v2258 = vsub.s32 %v1859, %v2257
  %v2259 = vrot.slane %v1466, %v2258
  %v2260 = vsel %vm1864, %v2259, %v2255
  %vm2261 = vcmask 1041409
  %v2262 = vsel %vm2261, %v2102, %v1865
  %v2263 = vsel %vm2261, %v2181, %v1944
  %v2264 = vsel %vm2261, %v2260, %v2023
  %2268 = vmatprep.subr.mxu0 %v1564
  %2269 = vmatpush1.msra.mxu0 %v1563
  %2270 = vmatprep.subr.mxu0 %v1566
  %2271 = vmatpush1.msra.mxu0 %v1565
  %2272 = vmatprep.subr.mxu0 %v1568
  %2273 = vmatpush1.msra.mxu0 %v1567
  %2274 = vmatprep.subr.mxu0 %v1570
  %2275 = vmatpush1.msra.mxu0 %v1569
  %2276 = vmatprep.subr.mxu0 %v1572
  %2277 = vmatpush1.msra.mxu0 %v1571
  %2278 = vmatprep.subr.mxu0 %v1574
  %2279 = vmatpush1.msra.mxu0 %v1573
  %2280 = vmatprep.subr.mxu0 %v1576
  %2281 = vmatpush1.msra.mxu0 %v1575
  %2282 = vmatprep.subr.mxu0 %v1578
  %2283 = vmatpush1.msra.mxu0 %v1577
  %2284 = vmatprep.subr.mxu0 %v1580
  %2285 = vmatpush1.msra.mxu0 %v1579
  %2286 = vmatprep.subr.mxu0 %v1582
  %2287 = vmatpush1.msra.mxu0 %v1581
  %2288 = vmatprep.subr.mxu0 %v1584
  %2289 = vmatpush1.msra.mxu0 %v1583
  %2290 = vmatprep.subr.mxu0 %v1586
  %2291 = vmatpush1.msra.mxu0 %v1585
  %2292 = vmatprep.subr.mxu0 %v1588
  %2293 = vmatpush1.msra.mxu0 %v1587
  %2294 = vmatprep.subr.mxu0 %v1590
  %2295 = vmatpush1.msra.mxu0 %v1589
  %2296 = vmatprep.subr.mxu0 %v1592
  %2297 = vmatpush1.msra.mxu0 %v1591
  %2298 = vmatprep.subr.mxu0 %v1594
  %2299 = vmatpush1.msra.mxu0 %v1593
  %2300 = vmatprep.subr.mxu0 %v1596
  %2301 = vmatpush1.msra.mxu0 %v1595
  %2302 = vmatprep.subr.mxu0 %v1598
  %2303 = vmatpush1.msra.mxu0 %v1597
  %2304 = vmatprep.subr.mxu0 %v1600
  %2305 = vmatpush1.msra.mxu0 %v1599
  %2306 = vmatprep.subr.mxu0 %v1602
  %2307 = vmatpush1.msra.mxu0 %v1601
  %2308 = vmatprep.subr.mxu0 %v1604
  %2309 = vmatpush1.msra.mxu0 %v1603
  %2310 = vmatprep.subr.mxu0 %v1606
  %2311 = vmatpush1.msra.mxu0 %v1605
  %2312 = vmatprep.subr.mxu0 %v1608
  %2313 = vmatpush1.msra.mxu0 %v1607
  %2314 = vmatprep.subr.mxu0 %v1610
  %2315 = vmatpush1.msra.mxu0 %v1609
  %2316 = vmatprep.subr.mxu0 %v1612
  %2317 = vmatpush1.msra.mxu0 %v1611
  %2318 = vmatprep.subr.mxu0 %v1614
  %2319 = vmatpush1.msra.mxu0 %v1613
  %2320 = vmatprep.subr.mxu0 %v1616
  %2321 = vmatpush1.msra.mxu0 %v1615
  %2322 = vmatprep.subr.mxu0 %v1618
  %2323 = vmatpush1.msra.mxu0 %v1617
  %2324 = vmatprep.subr.mxu0 %v1620
  %2325 = vmatpush1.msra.mxu0 %v1619
  %2326 = vmatprep.subr.mxu0 %v1622
  %2327 = vmatpush1.msra.mxu0 %v1621
  %2328 = vmatprep.subr.mxu0 %v1624
  %2329 = vmatpush1.msra.mxu0 %v1623
  %2330 = vmatprep.subr.mxu0 %v1626
  %2331 = vmatpush1.msra.mxu0 %v1625
  %2332 = vmatprep.mubr.f32.mxu0 %v2263
  %2333 = vmatmul.mubr.f32.gmra.mrb[0].mxu0 %v2262
  %v2334 = vpop.f32.mrb[0].mxu0
  %v2335 = vadd.f32 0.0, %v2334
  %v2336 = vpop.f32.mrb[0].mxu0
  %v2337 = vadd.f32 0.0, %v2336
  %2338 = vdwg.mxu0
  %2339 = vmatprep.subr.mxu0 %v1628
  %2340 = vmatpush1.msra.mxu0 %v1627
  %2341 = vmatprep.subr.mxu0 %v1630
  %2342 = vmatpush1.msra.mxu0 %v1629
  %2343 = vmatprep.subr.mxu0 %v1632
  %2344 = vmatpush1.msra.mxu0 %v1631
  %2345 = vmatprep.subr.mxu0 %v1634
  %2346 = vmatpush1.msra.mxu0 %v1633
  %2347 = vmatprep.subr.mxu0 %v1636
  %2348 = vmatpush1.msra.mxu0 %v1635
  %2349 = vmatprep.subr.mxu0 %v1638
  %2350 = vmatpush1.msra.mxu0 %v1637
  %2351 = vmatprep.subr.mxu0 %v1640
  %2352 = vmatpush1.msra.mxu0 %v1639
  %2353 = vmatprep.subr.mxu0 %v1642
  %2354 = vmatpush1.msra.mxu0 %v1641
  %2355 = vmatprep.subr.mxu0 %v1644
  %2356 = vmatpush1.msra.mxu0 %v1643
  %2357 = vmatprep.subr.mxu0 %v1646
  %2358 = vmatpush1.msra.mxu0 %v1645
  %2359 = vmatprep.subr.mxu0 %v1648
  %2360 = vmatpush1.msra.mxu0 %v1647
  %2361 = vmatprep.subr.mxu0 %v1650
  %2362 = vmatpush1.msra.mxu0 %v1649
  %2363 = vmatprep.subr.mxu0 %v1652
  %2364 = vmatpush1.msra.mxu0 %v1651
  %2365 = vmatprep.subr.mxu0 %v1654
  %2366 = vmatpush1.msra.mxu0 %v1653
  %2367 = vmatprep.subr.mxu0 %v1656
  %2368 = vmatpush1.msra.mxu0 %v1655
  %2369 = vmatprep.subr.mxu0 %v1658
  %2370 = vmatpush1.msra.mxu0 %v1657
  %2371 = vmatprep.subr.mxu0 0.0
  %2372 = vmatpush1.msra.mxu0 0.0
  %2373 = vmatprep.subr.mxu0 0.0
  %2374 = vmatpush1.msra.mxu0 0.0
  %2375 = vmatprep.subr.mxu0 0.0
  %2376 = vmatpush1.msra.mxu0 0.0
  %2377 = vmatprep.subr.mxu0 0.0
  %2378 = vmatpush1.msra.mxu0 0.0
  %2379 = vmatprep.subr.mxu0 0.0
  %2380 = vmatpush1.msra.mxu0 0.0
  %2381 = vmatprep.subr.mxu0 0.0
  %2382 = vmatpush1.msra.mxu0 0.0
  %2383 = vmatprep.subr.mxu0 0.0
  %2384 = vmatpush1.msra.mxu0 0.0
  %2385 = vmatprep.subr.mxu0 0.0
  %2386 = vmatpush1.msra.mxu0 0.0
  %2387 = vmatprep.subr.mxu0 0.0
  %2388 = vmatpush1.msra.mxu0 0.0
  %2389 = vmatprep.subr.mxu0 0.0
  %2390 = vmatpush1.msra.mxu0 0.0
  %2391 = vmatprep.subr.mxu0 0.0
  %2392 = vmatpush1.msra.mxu0 0.0
  %2393 = vmatprep.subr.mxu0 0.0
  %2394 = vmatpush1.msra.mxu0 0.0
  %2395 = vmatprep.subr.mxu0 0.0
  %2396 = vmatpush1.msra.mxu0 0.0
  %2397 = vmatprep.subr.mxu0 0.0
  %2398 = vmatpush1.msra.mxu0 0.0
  %2399 = vmatprep.subr.mxu0 0.0
  %2400 = vmatpush1.msra.mxu0 0.0
  %2401 = vmatprep.subr.mxu0 0.0
  %2402 = vmatpush1.msra.mxu0 0.0
  %2403 = vmatprep.mubr.f32.mxu0 0.0
  %2404 = vmatmul.mubr.f32.gmra.mrb[0].mxu0 %v2264
  %v2405 = vpop.f32.mrb[0].mxu0
  %v2406 = vadd.f32 %v2335, %v2405
  %v2407 = vpop.f32.mrb[0].mxu0
  %v2408 = vadd.f32 %v2337, %v2407
  %2409 = vdwg.mxu0
  %v2506 = vlaneseq
  %v2507 = vshrl.u32 %v2506, 7
  %v2508 = vsub.s32 %v1756, %v2507
  %v2509 = vrot.slane %v891, %v2508
  %v2510 = vlaneseq
  %v2511 = vshrl.u32 %v2510, 7
  %v2512 = vsub.s32 %v1761, %v2511
  %v2513 = vrot.slane %v892, %v2512
  %v2514 = vsel %vm1766, %v2513, %v2509
  %v2515 = vlaneseq
  %v2516 = vshrl.u32 %v2515, 7
  %v2517 = vsub.s32 %v1768, %v2516
  %v2518 = vrot.slane %v893, %v2517
  %v2519 = vsel %vm1773, %v2518, %v2514
  %v2520 = vlaneseq
  %v2521 = vshrl.u32 %v2520, 7
  %v2522 = vsub.s32 %v1775, %v2521
  %v2523 = vrot.slane %v894, %v2522
  %v2524 = vsel %vm1780, %v2523, %v2519
  %v2525 = vlaneseq
  %v2526 = vshrl.u32 %v2525, 7
  %v2527 = vsub.s32 %v1782, %v2526
  %v2528 = vrot.slane %v895, %v2527
  %v2529 = vsel %vm1787, %v2528, %v2524
  %v2530 = vlaneseq
  %v2531 = vshrl.u32 %v2530, 7
  %v2532 = vsub.s32 %v1789, %v2531
  %v2533 = vrot.slane %v896, %v2532
  %v2534 = vsel %vm1794, %v2533, %v2529
  %v2535 = vlaneseq
  %v2536 = vshrl.u32 %v2535, 7
  %v2537 = vsub.s32 %v1796, %v2536
  %v2538 = vrot.slane %v897, %v2537
  %v2539 = vsel %vm1801, %v2538, %v2534
  %v2540 = vlaneseq
  %v2541 = vshrl.u32 %v2540, 7
  %v2542 = vsub.s32 %v1803, %v2541
  %v2543 = vrot.slane %v898, %v2542
  %v2544 = vsel %vm1808, %v2543, %v2539
  %v2545 = vlaneseq
  %v2546 = vshrl.u32 %v2545, 7
  %v2547 = vsub.s32 %v1810, %v2546
  %v2548 = vrot.slane %v899, %v2547
  %v2549 = vsel %vm1815, %v2548, %v2544
  %v2550 = vlaneseq
  %v2551 = vshrl.u32 %v2550, 7
  %v2552 = vsub.s32 %v1817, %v2551
  %v2553 = vrot.slane %v900, %v2552
  %v2554 = vsel %vm1822, %v2553, %v2549
  %v2555 = vlaneseq
  %v2556 = vshrl.u32 %v2555, 7
  %v2557 = vsub.s32 %v1824, %v2556
  %v2558 = vrot.slane %v901, %v2557
  %v2559 = vsel %vm1829, %v2558, %v2554
  %v2560 = vlaneseq
  %v2561 = vshrl.u32 %v2560, 7
  %v2562 = vsub.s32 %v1831, %v2561
  %v2563 = vrot.slane %v902, %v2562
  %v2564 = vsel %vm1836, %v2563, %v2559
  %v2565 = vlaneseq
  %v2566 = vshrl.u32 %v2565, 7
  %v2567 = vsub.s32 %v1838, %v2566
  %v2568 = vrot.slane %v903, %v2567
  %v2569 = vsel %vm1843, %v2568, %v2564
  %v2570 = vlaneseq
  %v2571 = vshrl.u32 %v2570, 7
  %v2572 = vsub.s32 %v1845, %v2571
  %v2573 = vrot.slane %v904, %v2572
  %v2574 = vsel %vm1850, %v2573, %v2569
  %v2575 = vlaneseq
  %v2576 = vshrl.u32 %v2575, 7
  %v2577 = vsub.s32 %v1852, %v2576
  %v2578 = vrot.slane %v905, %v2577
  %v2579 = vsel %vm1857, %v2578, %v2574
  %v2580 = vlaneseq
  %v2581 = vshrl.u32 %v2580, 7
  %v2582 = vsub.s32 %v1859, %v2581
  %v2583 = vrot.slane %v906, %v2582
  %v2584 = vsel %vm1864, %v2583, %v2579
  %v2585 = vlaneseq
  %v2586 = vshrl.u32 %v2585, 7
  %v2587 = vsub.s32 %v1756, %v2586
  %v2588 = vrot.slane %v907, %v2587
  %v2589 = vlaneseq
  %v2590 = vshrl.u32 %v2589, 7
  %v2591 = vsub.s32 %v1761, %v2590
  %v2592 = vrot.slane %v908, %v2591
  %v2593 = vsel %vm1766, %v2592, %v2588
  %v2594 = vlaneseq
  %v2595 = vshrl.u32 %v2594, 7
  %v2596 = vsub.s32 %v1768, %v2595
  %v2597 = vrot.slane %v909, %v2596
  %v2598 = vsel %vm1773, %v2597, %v2593
  %v2599 = vlaneseq
  %v2600 = vshrl.u32 %v2599, 7
  %v2601 = vsub.s32 %v1775, %v2600
  %v2602 = vrot.slane %v910, %v2601
  %v2603 = vsel %vm1780, %v2602, %v2598
  %v2604 = vlaneseq
  %v2605 = vshrl.u32 %v2604, 7
  %v2606 = vsub.s32 %v1782, %v2605
  %v2607 = vrot.slane %v911, %v2606
  %v2608 = vsel %vm1787, %v2607, %v2603
  %v2609 = vlaneseq
  %v2610 = vshrl.u32 %v2609, 7
  %v2611 = vsub.s32 %v1789, %v2610
  %v2612 = vrot.slane %v912, %v2611
  %v2613 = vsel %vm1794, %v2612, %v2608
  %v2614 = vlaneseq
  %v2615 = vshrl.u32 %v2614, 7
  %v2616 = vsub.s32 %v1796, %v2615
  %v2617 = vrot.slane %v913, %v2616
  %v2618 = vsel %vm1801, %v2617, %v2613
  %v2619 = vlaneseq
  %v2620 = vshrl.u32 %v2619, 7
  %v2621 = vsub.s32 %v1803, %v2620
  %v2622 = vrot.slane %v914, %v2621
  %v2623 = vsel %vm1808, %v2622, %v2618
  %v2624 = vlaneseq
  %v2625 = vshrl.u32 %v2624, 7
  %v2626 = vsub.s32 %v1810, %v2625
  %v2627 = vrot.slane %v915, %v2626
  %v2628 = vsel %vm1815, %v2627, %v2623
  %v2629 = vlaneseq
  %v2630 = vshrl.u32 %v2629, 7
  %v2631 = vsub.s32 %v1817, %v2630
  %v2632 = vrot.slane %v916, %v2631
  %v2633 = vsel %vm1822, %v2632, %v2628
  %v2634 = vlaneseq
  %v2635 = vshrl.u32 %v2634, 7
  %v2636 = vsub.s32 %v1824, %v2635
  %v2637 = vrot.slane %v917, %v2636
  %v2638 = vsel %vm1829, %v2637, %v2633
  %v2639 = vlaneseq
  %v2640 = vshrl.u32 %v2639, 7
  %v2641 = vsub.s32 %v1831, %v2640
  %v2642 = vrot.slane %v918, %v2641
  %v2643 = vsel %vm1836, %v2642, %v2638
  %v2644 = vlaneseq
  %v2645 = vshrl.u32 %v2644, 7
  %v2646 = vsub.s32 %v1838, %v2645
  %v2647 = vrot.slane %v919, %v2646
  %v2648 = vsel %vm1843, %v2647, %v2643
  %v2649 = vlaneseq
  %v2650 = vshrl.u32 %v2649, 7
  %v2651 = vsub.s32 %v1845, %v2650
  %v2652 = vrot.slane %v920, %v2651
  %v2653 = vsel %vm1850, %v2652, %v2648
  %v2654 = vlaneseq
  %v2655 = vshrl.u32 %v2654, 7
  %v2656 = vsub.s32 %v1852, %v2655
  %v2657 = vrot.slane %v921, %v2656
  %v2658 = vsel %vm1857, %v2657, %v2653
  %v2659 = vlaneseq
  %v2660 = vshrl.u32 %v2659, 7
  %v2661 = vsub.s32 %v1859, %v2660
  %v2662 = vrot.slane %v922, %v2661
  %v2663 = vsel %vm1864, %v2662, %v2658
  %v2664 = vlaneseq
  %v2665 = vshrl.u32 %v2664, 7
  %v2666 = vsub.s32 %v1756, %v2665
  %v2667 = vrot.slane %v923, %v2666
  %v2668 = vlaneseq
  %v2669 = vshrl.u32 %v2668, 7
  %v2670 = vsub.s32 %v1761, %v2669
  %v2671 = vrot.slane %v924, %v2670
  %v2672 = vsel %vm1766, %v2671, %v2667
  %v2673 = vlaneseq
  %v2674 = vshrl.u32 %v2673, 7
  %v2675 = vsub.s32 %v1768, %v2674
  %v2676 = vrot.slane %v925, %v2675
  %v2677 = vsel %vm1773, %v2676, %v2672
  %v2678 = vlaneseq
  %v2679 = vshrl.u32 %v2678, 7
  %v2680 = vsub.s32 %v1775, %v2679
  %v2681 = vrot.slane %v926, %v2680
  %v2682 = vsel %vm1780, %v2681, %v2677
  %v2683 = vlaneseq
  %v2684 = vshrl.u32 %v2683, 7
  %v2685 = vsub.s32 %v1782, %v2684
  %v2686 = vrot.slane %v927, %v2685
  %v2687 = vsel %vm1787, %v2686, %v2682
  %v2688 = vlaneseq
  %v2689 = vshrl.u32 %v2688, 7
  %v2690 = vsub.s32 %v1789, %v2689
  %v2691 = vrot.slane %v928, %v2690
  %v2692 = vsel %vm1794, %v2691, %v2687
  %v2693 = vlaneseq
  %v2694 = vshrl.u32 %v2693, 7
  %v2695 = vsub.s32 %v1796, %v2694
  %v2696 = vrot.slane %v929, %v2695
  %v2697 = vsel %vm1801, %v2696, %v2692
  %v2698 = vlaneseq
  %v2699 = vshrl.u32 %v2698, 7
  %v2700 = vsub.s32 %v1803, %v2699
  %v2701 = vrot.slane %v930, %v2700
  %v2702 = vsel %vm1808, %v2701, %v2697
  %v2703 = vlaneseq
  %v2704 = vshrl.u32 %v2703, 7
  %v2705 = vsub.s32 %v1810, %v2704
  %v2706 = vrot.slane %v931, %v2705
  %v2707 = vsel %vm1815, %v2706, %v2702
  %v2708 = vlaneseq
  %v2709 = vshrl.u32 %v2708, 7
  %v2710 = vsub.s32 %v1817, %v2709
  %v2711 = vrot.slane %v932, %v2710
  %v2712 = vsel %vm1822, %v2711, %v2707
  %v2713 = vlaneseq
  %v2714 = vshrl.u32 %v2713, 7
  %v2715 = vsub.s32 %v1824, %v2714
  %v2716 = vrot.slane %v933, %v2715
  %v2717 = vsel %vm1829, %v2716, %v2712
  %v2718 = vlaneseq
  %v2719 = vshrl.u32 %v2718, 7
  %v2720 = vsub.s32 %v1831, %v2719
  %v2721 = vrot.slane %v934, %v2720
  %v2722 = vsel %vm1836, %v2721, %v2717
  %v2723 = vlaneseq
  %v2724 = vshrl.u32 %v2723, 7
  %v2725 = vsub.s32 %v1838, %v2724
  %v2726 = vrot.slane %v935, %v2725
  %v2727 = vsel %vm1843, %v2726, %v2722
  %v2728 = vlaneseq
  %v2729 = vshrl.u32 %v2728, 7
  %v2730 = vsub.s32 %v1845, %v2729
  %v2731 = vrot.slane %v936, %v2730
  %v2732 = vsel %vm1850, %v2731, %v2727
  %v2733 = vlaneseq
  %v2734 = vshrl.u32 %v2733, 7
  %v2735 = vsub.s32 %v1852, %v2734
  %v2736 = vrot.slane %v937, %v2735
  %v2737 = vsel %vm1857, %v2736, %v2732
  %v2738 = vlaneseq
  %v2739 = vshrl.u32 %v2738, 7
  %v2740 = vsub.s32 %v1859, %v2739
  %v2741 = vrot.slane %v938, %v2740
  %v2742 = vsel %vm1864, %v2741, %v2737
  %v2743 = vlaneseq
  %v2744 = vshrl.u32 %v2743, 7
  %v2745 = vsub.s32 %v1756, %v2744
  %v2746 = vrot.slane %v939, %v2745
  %v2747 = vlaneseq
  %v2748 = vshrl.u32 %v2747, 7
  %v2749 = vsub.s32 %v1761, %v2748
  %v2750 = vrot.slane %v940, %v2749
  %v2751 = vsel %vm1766, %v2750, %v2746
  %v2752 = vlaneseq
  %v2753 = vshrl.u32 %v2752, 7
  %v2754 = vsub.s32 %v1768, %v2753
  %v2755 = vrot.slane %v941, %v2754
  %v2756 = vsel %vm1773, %v2755, %v2751
  %v2757 = vlaneseq
  %v2758 = vshrl.u32 %v2757, 7
  %v2759 = vsub.s32 %v1775, %v2758
  %v2760 = vrot.slane %v942, %v2759
  %v2761 = vsel %vm1780, %v2760, %v2756
  %v2762 = vlaneseq
  %v2763 = vshrl.u32 %v2762, 7
  %v2764 = vsub.s32 %v1782, %v2763
  %v2765 = vrot.slane %v943, %v2764
  %v2766 = vsel %vm1787, %v2765, %v2761
  %v2767 = vlaneseq
  %v2768 = vshrl.u32 %v2767, 7
  %v2769 = vsub.s32 %v1789, %v2768
  %v2770 = vrot.slane %v944, %v2769
  %v2771 = vsel %vm1794, %v2770, %v2766
  %v2772 = vlaneseq
  %v2773 = vshrl.u32 %v2772, 7
  %v2774 = vsub.s32 %v1796, %v2773
  %v2775 = vrot.slane %v945, %v2774
  %v2776 = vsel %vm1801, %v2775, %v2771
  %v2777 = vlaneseq
  %v2778 = vshrl.u32 %v2777, 7
  %v2779 = vsub.s32 %v1803, %v2778
  %v2780 = vrot.slane %v946, %v2779
  %v2781 = vsel %vm1808, %v2780, %v2776
  %v2782 = vlaneseq
  %v2783 = vshrl.u32 %v2782, 7
  %v2784 = vsub.s32 %v1810, %v2783
  %v2785 = vrot.slane %v947, %v2784
  %v2786 = vsel %vm1815, %v2785, %v2781
  %v2787 = vlaneseq
  %v2788 = vshrl.u32 %v2787, 7
  %v2789 = vsub.s32 %v1817, %v2788
  %v2790 = vrot.slane %v948, %v2789
  %v2791 = vsel %vm1822, %v2790, %v2786
  %v2792 = vlaneseq
  %v2793 = vshrl.u32 %v2792, 7
  %v2794 = vsub.s32 %v1824, %v2793
  %v2795 = vrot.slane %v949, %v2794
  %v2796 = vsel %vm1829, %v2795, %v2791
  %v2797 = vlaneseq
  %v2798 = vshrl.u32 %v2797, 7
  %v2799 = vsub.s32 %v1831, %v2798
  %v2800 = vrot.slane %v950, %v2799
  %v2801 = vsel %vm1836, %v2800, %v2796
  %v2802 = vlaneseq
  %v2803 = vshrl.u32 %v2802, 7
  %v2804 = vsub.s32 %v1838, %v2803
  %v2805 = vrot.slane %v951, %v2804
  %v2806 = vsel %vm1843, %v2805, %v2801
  %v2807 = vlaneseq
  %v2808 = vshrl.u32 %v2807, 7
  %v2809 = vsub.s32 %v1845, %v2808
  %v2810 = vrot.slane %v952, %v2809
  %v2811 = vsel %vm1850, %v2810, %v2806
  %v2812 = vlaneseq
  %v2813 = vshrl.u32 %v2812, 7
  %v2814 = vsub.s32 %v1852, %v2813
  %v2815 = vrot.slane %v953, %v2814
  %v2816 = vsel %vm1857, %v2815, %v2811
  %v2817 = vlaneseq
  %v2818 = vshrl.u32 %v2817, 7
  %v2819 = vsub.s32 %v1859, %v2818
  %v2820 = vrot.slane %v954, %v2819
  %v2821 = vsel %vm1864, %v2820, %v2816
  %v2822 = vlaneseq
  %v2823 = vshrl.u32 %v2822, 7
  %v2824 = vsub.s32 %v1756, %v2823
  %v2825 = vrot.slane %v955, %v2824
  %v2826 = vlaneseq
  %v2827 = vshrl.u32 %v2826, 7
  %v2828 = vsub.s32 %v1761, %v2827
  %v2829 = vrot.slane %v956, %v2828
  %v2830 = vsel %vm1766, %v2829, %v2825
  %v2831 = vlaneseq
  %v2832 = vshrl.u32 %v2831, 7
  %v2833 = vsub.s32 %v1768, %v2832
  %v2834 = vrot.slane %v957, %v2833
  %v2835 = vsel %vm1773, %v2834, %v2830
  %v2836 = vlaneseq
  %v2837 = vshrl.u32 %v2836, 7
  %v2838 = vsub.s32 %v1775, %v2837
  %v2839 = vrot.slane %v958, %v2838
  %v2840 = vsel %vm1780, %v2839, %v2835
  %v2841 = vlaneseq
  %v2842 = vshrl.u32 %v2841, 7
  %v2843 = vsub.s32 %v1782, %v2842
  %v2844 = vrot.slane %v959, %v2843
  %v2845 = vsel %vm1787, %v2844, %v2840
  %v2846 = vlaneseq
  %v2847 = vshrl.u32 %v2846, 7
  %v2848 = vsub.s32 %v1789, %v2847
  %v2849 = vrot.slane %v960, %v2848
  %v2850 = vsel %vm1794, %v2849, %v2845
  %v2851 = vlaneseq
  %v2852 = vshrl.u32 %v2851, 7
  %v2853 = vsub.s32 %v1796, %v2852
  %v2854 = vrot.slane %v961, %v2853
  %v2855 = vsel %vm1801, %v2854, %v2850
  %v2856 = vlaneseq
  %v2857 = vshrl.u32 %v2856, 7
  %v2858 = vsub.s32 %v1803, %v2857
  %v2859 = vrot.slane %v962, %v2858
  %v2860 = vsel %vm1808, %v2859, %v2855
  %v2861 = vlaneseq
  %v2862 = vshrl.u32 %v2861, 7
  %v2863 = vsub.s32 %v1810, %v2862
  %v2864 = vrot.slane %v963, %v2863
  %v2865 = vsel %vm1815, %v2864, %v2860
  %v2866 = vlaneseq
  %v2867 = vshrl.u32 %v2866, 7
  %v2868 = vsub.s32 %v1817, %v2867
  %v2869 = vrot.slane %v964, %v2868
  %v2870 = vsel %vm1822, %v2869, %v2865
  %v2871 = vlaneseq
  %v2872 = vshrl.u32 %v2871, 7
  %v2873 = vsub.s32 %v1824, %v2872
  %v2874 = vrot.slane %v965, %v2873
  %v2875 = vsel %vm1829, %v2874, %v2870
  %v2876 = vlaneseq
  %v2877 = vshrl.u32 %v2876, 7
  %v2878 = vsub.s32 %v1831, %v2877
  %v2879 = vrot.slane %v966, %v2878
  %v2880 = vsel %vm1836, %v2879, %v2875
  %v2881 = vlaneseq
  %v2882 = vshrl.u32 %v2881, 7
  %v2883 = vsub.s32 %v1838, %v2882
  %v2884 = vrot.slane %v967, %v2883
  %v2885 = vsel %vm1843, %v2884, %v2880
  %v2886 = vlaneseq
  %v2887 = vshrl.u32 %v2886, 7
  %v2888 = vsub.s32 %v1845, %v2887
  %v2889 = vrot.slane %v968, %v2888
  %v2890 = vsel %vm1850, %v2889, %v2885
  %v2891 = vlaneseq
  %v2892 = vshrl.u32 %v2891, 7
  %v2893 = vsub.s32 %v1852, %v2892
  %v2894 = vrot.slane %v969, %v2893
  %v2895 = vsel %vm1857, %v2894, %v2890
  %v2896 = vlaneseq
  %v2897 = vshrl.u32 %v2896, 7
  %v2898 = vsub.s32 %v1859, %v2897
  %v2899 = vrot.slane %v970, %v2898
  %v2900 = vsel %vm1864, %v2899, %v2895
  %v2901 = vlaneseq
  %v2902 = vshrl.u32 %v2901, 7
  %v2903 = vsub.s32 %v1756, %v2902
  %v2904 = vrot.slane %v971, %v2903
  %v2905 = vlaneseq
  %v2906 = vshrl.u32 %v2905, 7
  %v2907 = vsub.s32 %v1761, %v2906
  %v2908 = vrot.slane %v972, %v2907
  %v2909 = vsel %vm1766, %v2908, %v2904
  %v2910 = vlaneseq
  %v2911 = vshrl.u32 %v2910, 7
  %v2912 = vsub.s32 %v1768, %v2911
  %v2913 = vrot.slane %v973, %v2912
  %v2914 = vsel %vm1773, %v2913, %v2909
  %v2915 = vlaneseq
  %v2916 = vshrl.u32 %v2915, 7
  %v2917 = vsub.s32 %v1775, %v2916
  %v2918 = vrot.slane %v974, %v2917
  %v2919 = vsel %vm1780, %v2918, %v2914
  %v2920 = vlaneseq
  %v2921 = vshrl.u32 %v2920, 7
  %v2922 = vsub.s32 %v1782, %v2921
  %v2923 = vrot.slane %v975, %v2922
  %v2924 = vsel %vm1787, %v2923, %v2919
  %v2925 = vlaneseq
  %v2926 = vshrl.u32 %v2925, 7
  %v2927 = vsub.s32 %v1789, %v2926
  %v2928 = vrot.slane %v976, %v2927
  %v2929 = vsel %vm1794, %v2928, %v2924
  %v2930 = vlaneseq
  %v2931 = vshrl.u32 %v2930, 7
  %v2932 = vsub.s32 %v1796, %v2931
  %v2933 = vrot.slane %v977, %v2932
  %v2934 = vsel %vm1801, %v2933, %v2929
  %v2935 = vlaneseq
  %v2936 = vshrl.u32 %v2935, 7
  %v2937 = vsub.s32 %v1803, %v2936
  %v2938 = vrot.slane %v978, %v2937
  %v2939 = vsel %vm1808, %v2938, %v2934
  %v2940 = vlaneseq
  %v2941 = vshrl.u32 %v2940, 7
  %v2942 = vsub.s32 %v1810, %v2941
  %v2943 = vrot.slane %v979, %v2942
  %v2944 = vsel %vm1815, %v2943, %v2939
  %v2945 = vlaneseq
  %v2946 = vshrl.u32 %v2945, 7
  %v2947 = vsub.s32 %v1817, %v2946
  %v2948 = vrot.slane %v980, %v2947
  %v2949 = vsel %vm1822, %v2948, %v2944
  %v2950 = vlaneseq
  %v2951 = vshrl.u32 %v2950, 7
  %v2952 = vsub.s32 %v1824, %v2951
  %v2953 = vrot.slane %v981, %v2952
  %v2954 = vsel %vm1829, %v2953, %v2949
  %v2955 = vlaneseq
  %v2956 = vshrl.u32 %v2955, 7
  %v2957 = vsub.s32 %v1831, %v2956
  %v2958 = vrot.slane %v982, %v2957
  %v2959 = vsel %vm1836, %v2958, %v2954
  %v2960 = vlaneseq
  %v2961 = vshrl.u32 %v2960, 7
  %v2962 = vsub.s32 %v1838, %v2961
  %v2963 = vrot.slane %v983, %v2962
  %v2964 = vsel %vm1843, %v2963, %v2959
  %v2965 = vlaneseq
  %v2966 = vshrl.u32 %v2965, 7
  %v2967 = vsub.s32 %v1845, %v2966
  %v2968 = vrot.slane %v984, %v2967
  %v2969 = vsel %vm1850, %v2968, %v2964
  %v2970 = vlaneseq
  %v2971 = vshrl.u32 %v2970, 7
  %v2972 = vsub.s32 %v1852, %v2971
  %v2973 = vrot.slane %v985, %v2972
  %v2974 = vsel %vm1857, %v2973, %v2969
  %v2975 = vlaneseq
  %v2976 = vshrl.u32 %v2975, 7
  %v2977 = vsub.s32 %v1859, %v2976
  %v2978 = vrot.slane %v986, %v2977
  %v2979 = vsel %vm1864, %v2978, %v2974
  %v2980 = vsel %vm2261, %v2821, %v2584
  %v2981 = vsel %vm2261, %v2900, %v2663
  %v2982 = vsel %vm2261, %v2979, %v2742
  %2986 = vmatprep.subr.mxu0 %v1468
  %2987 = vmatpush1.msra.mxu0 %v1467
  %2988 = vmatprep.subr.mxu0 %v1470
  %2989 = vmatpush1.msra.mxu0 %v1469
  %2990 = vmatprep.subr.mxu0 %v1472
  %2991 = vmatpush1.msra.mxu0 %v1471
  %2992 = vmatprep.subr.mxu0 %v1474
  %2993 = vmatpush1.msra.mxu0 %v1473
  %2994 = vmatprep.subr.mxu0 %v1476
  %2995 = vmatpush1.msra.mxu0 %v1475
  %2996 = vmatprep.subr.mxu0 %v1478
  %2997 = vmatpush1.msra.mxu0 %v1477
  %2998 = vmatprep.subr.mxu0 %v1480
  %2999 = vmatpush1.msra.mxu0 %v1479
  %3000 = vmatprep.subr.mxu0 %v1482
  %3001 = vmatpush1.msra.mxu0 %v1481
  %3002 = vmatprep.subr.mxu0 %v1484
  %3003 = vmatpush1.msra.mxu0 %v1483
  %3004 = vmatprep.subr.mxu0 %v1486
  %3005 = vmatpush1.msra.mxu0 %v1485
  %3006 = vmatprep.subr.mxu0 %v1488
  %3007 = vmatpush1.msra.mxu0 %v1487
  %3008 = vmatprep.subr.mxu0 %v1490
  %3009 = vmatpush1.msra.mxu0 %v1489
  %3010 = vmatprep.subr.mxu0 %v1492
  %3011 = vmatpush1.msra.mxu0 %v1491
  %3012 = vmatprep.subr.mxu0 %v1494
  %3013 = vmatpush1.msra.mxu0 %v1493
  %3014 = vmatprep.subr.mxu0 %v1496
  %3015 = vmatpush1.msra.mxu0 %v1495
  %3016 = vmatprep.subr.mxu0 %v1498
  %3017 = vmatpush1.msra.mxu0 %v1497
  %3018 = vmatprep.subr.mxu0 %v1500
  %3019 = vmatpush1.msra.mxu0 %v1499
  %3020 = vmatprep.subr.mxu0 %v1502
  %3021 = vmatpush1.msra.mxu0 %v1501
  %3022 = vmatprep.subr.mxu0 %v1504
  %3023 = vmatpush1.msra.mxu0 %v1503
  %3024 = vmatprep.subr.mxu0 %v1506
  %3025 = vmatpush1.msra.mxu0 %v1505
  %3026 = vmatprep.subr.mxu0 %v1508
  %3027 = vmatpush1.msra.mxu0 %v1507
  %3028 = vmatprep.subr.mxu0 %v1510
  %3029 = vmatpush1.msra.mxu0 %v1509
  %3030 = vmatprep.subr.mxu0 %v1512
  %3031 = vmatpush1.msra.mxu0 %v1511
  %3032 = vmatprep.subr.mxu0 %v1514
  %3033 = vmatpush1.msra.mxu0 %v1513
  %3034 = vmatprep.subr.mxu0 %v1516
  %3035 = vmatpush1.msra.mxu0 %v1515
  %3036 = vmatprep.subr.mxu0 %v1518
  %3037 = vmatpush1.msra.mxu0 %v1517
  %3038 = vmatprep.subr.mxu0 %v1520
  %3039 = vmatpush1.msra.mxu0 %v1519
  %3040 = vmatprep.subr.mxu0 %v1522
  %3041 = vmatpush1.msra.mxu0 %v1521
  %3042 = vmatprep.subr.mxu0 %v1524
  %3043 = vmatpush1.msra.mxu0 %v1523
  %3044 = vmatprep.subr.mxu0 %v1526
  %3045 = vmatpush1.msra.mxu0 %v1525
  %3046 = vmatprep.subr.mxu0 %v1528
  %3047 = vmatpush1.msra.mxu0 %v1527
  %3048 = vmatprep.subr.mxu0 %v1530
  %3049 = vmatpush1.msra.mxu0 %v1529
  %3050 = vmatprep.mubr.f32.mxu0 %v2981
  %3051 = vmatmul.mubr.f32.gmra.mrb[0].mxu0 %v2980
  %v3052 = vpop.f32.mrb[0].mxu0
  %v3053 = vadd.f32 %v2406, %v3052
  %v3054 = vpop.f32.mrb[0].mxu0
  %v3055 = vadd.f32 %v2408, %v3054
  %3056 = vdwg.mxu0
  %3057 = vmatprep.subr.mxu0 %v1532
  %3058 = vmatpush1.msra.mxu0 %v1531
  %3059 = vmatprep.subr.mxu0 %v1534
  %3060 = vmatpush1.msra.mxu0 %v1533
  %3061 = vmatprep.subr.mxu0 %v1536
  %3062 = vmatpush1.msra.mxu0 %v1535
  %3063 = vmatprep.subr.mxu0 %v1538
  %3064 = vmatpush1.msra.mxu0 %v1537
  %3065 = vmatprep.subr.mxu0 %v1540
  %3066 = vmatpush1.msra.mxu0 %v1539
  %3067 = vmatprep.subr.mxu0 %v1542
  %3068 = vmatpush1.msra.mxu0 %v1541
  %3069 = vmatprep.subr.mxu0 %v1544
  %3070 = vmatpush1.msra.mxu0 %v1543
  %3071 = vmatprep.subr.mxu0 %v1546
  %3072 = vmatpush1.msra.mxu0 %v1545
  %3073 = vmatprep.subr.mxu0 %v1548
  %3074 = vmatpush1.msra.mxu0 %v1547
  %3075 = vmatprep.subr.mxu0 %v1550
  %3076 = vmatpush1.msra.mxu0 %v1549
  %3077 = vmatprep.subr.mxu0 %v1552
  %3078 = vmatpush1.msra.mxu0 %v1551
  %3079 = vmatprep.subr.mxu0 %v1554
  %3080 = vmatpush1.msra.mxu0 %v1553
  %3081 = vmatprep.subr.mxu0 %v1556
  %3082 = vmatpush1.msra.mxu0 %v1555
  %3083 = vmatprep.subr.mxu0 %v1558
  %3084 = vmatpush1.msra.mxu0 %v1557
  %3085 = vmatprep.subr.mxu0 %v1560
  %3086 = vmatpush1.msra.mxu0 %v1559
  %3087 = vmatprep.subr.mxu0 %v1562
  %3088 = vmatpush1.msra.mxu0 %v1561
  %3089 = vmatprep.subr.mxu0 0.0
  %3090 = vmatpush1.msra.mxu0 0.0
  %3091 = vmatprep.subr.mxu0 0.0
  %3092 = vmatpush1.msra.mxu0 0.0
  %3093 = vmatprep.subr.mxu0 0.0
  %3094 = vmatpush1.msra.mxu0 0.0
  %3095 = vmatprep.subr.mxu0 0.0
  %3096 = vmatpush1.msra.mxu0 0.0
  %3097 = vmatprep.subr.mxu0 0.0
  %3098 = vmatpush1.msra.mxu0 0.0
  %3099 = vmatprep.subr.mxu0 0.0
  %3100 = vmatpush1.msra.mxu0 0.0
  %3101 = vmatprep.subr.mxu0 0.0
  %3102 = vmatpush1.msra.mxu0 0.0
  %3103 = vmatprep.subr.mxu0 0.0
  %3104 = vmatpush1.msra.mxu0 0.0
  %3105 = vmatprep.subr.mxu0 0.0
  %3106 = vmatpush1.msra.mxu0 0.0
  %3107 = vmatprep.subr.mxu0 0.0
  %3108 = vmatpush1.msra.mxu0 0.0
  %3109 = vmatprep.subr.mxu0 0.0
  %3110 = vmatpush1.msra.mxu0 0.0
  %3111 = vmatprep.subr.mxu0 0.0
  %3112 = vmatpush1.msra.mxu0 0.0
  %3113 = vmatprep.subr.mxu0 0.0
  %3114 = vmatpush1.msra.mxu0 0.0
  %3115 = vmatprep.subr.mxu0 0.0
  %3116 = vmatpush1.msra.mxu0 0.0
  %3117 = vmatprep.subr.mxu0 0.0
  %3118 = vmatpush1.msra.mxu0 0.0
  %3119 = vmatprep.subr.mxu0 0.0
  %3120 = vmatpush1.msra.mxu0 0.0
  %3121 = vmatprep.mubr.f32.mxu0 0.0
  %3122 = vmatmul.mubr.f32.gmra.mrb[0].mxu0 %v2982
  %v3123 = vpop.f32.mrb[0].mxu0
  %v3124 = vadd.f32 %v3053, %v3123
  %v3125 = vpop.f32.mrb[0].mxu0
  %v3126 = vadd.f32 %v3055, %v3125
  %3127 = vdwg.mxu0
  %v3128 = vld [vmem:[%s2] sm:$0x3]
  %v3130 = vlaneseq
  %v3131 = vshrl.u32 %v3130, 7
  %v3132 = vsub.s32 0, %v3131
  %v3133 = vrot.slane %v3128, %v3132
  %v3134 = vlaneseq
  %v3135 = vshrl.u32 %v3134, 7
  %v3136 = vsub.s32 1, %v3135
  %v3137 = vrot.slane %v3128, %v3136
  %v3140 = vadd.f32 %v3124, %v3133
  %v3141 = vadd.f32 %v3126, %v3137
  %vm3142 = vcmp.gt.f32.partialorder %v3140, 0.0
  %vm3143 = vcmp.gt.f32.partialorder %v3141, 0.0
  %v3144 = vmin.f32 %v3140, 0.0
  %v3145 = vmin.f32 %v3141, 0.0
  %v3146 = vmul.f32 %v3144, 1.442695
  %v3147 = vpow.pop %v3146
  %v3148 = vmul.f32 %v3145, 1.442695
  %v3149 = vpow.pop %v3148
  %v3150 = vsub.f32 %v3147, 1.0
  %v3151 = vsub.f32 %v3149, 1.0
  %v3152 = vsel %vm3142, %v3140, %v3150
  %v3153 = vsel %vm3143, %v3141, %v3151
  %v3154 = vld [vmem:[%s3] sm:$0xff]
  %v3155 = vld [vmem:[%s3 + $0x8] sm:$0xff]
  %v3156 = vld [vmem:[%s3 + $0x10] sm:$0xff]
  %v3157 = vld [vmem:[%s3 + $0x18] sm:$0xff]
  %v3158 = vld [vmem:[%s3 + $0x20] sm:$0xff]
  %v3159 = vld [vmem:[%s3 + $0x28] sm:$0xff]
  %v3160 = vld [vmem:[%s3 + $0x30] sm:$0xff]
  %v3161 = vld [vmem:[%s3 + $0x38] sm:$0xff]
  %v3162 = vld [vmem:[%s3 + $0x40] sm:$0xff]
  %v3163 = vld [vmem:[%s3 + $0x48] sm:$0xff]
  %v3164 = vld [vmem:[%s3 + $0x50] sm:$0xff]
  %v3165 = vld [vmem:[%s3 + $0x58] sm:$0xff]
  %v3166 = vld [vmem:[%s3 + $0x60] sm:$0xff]
  %v3167 = vld [vmem:[%s3 + $0x68] sm:$0xff]
  %v3168 = vld [vmem:[%s3 + $0x70] sm:$0xff]
  %v3169 = vld [vmem:[%s3 + $0x78] sm:$0xff]
  %v3170 = vld [vmem:[%s3 + $0x80] sm:$0xff]
  %v3171 = vld [vmem:[%s3 + $0x88] sm:$0xff]
  %v3172 = vld [vmem:[%s3 + $0x90] sm:$0xff]
  %v3173 = vld [vmem:[%s3 + $0x98] sm:$0xff]
  %v3174 = vld [vmem:[%s3 + $0xa0] sm:$0xff]
  %v3175 = vld [vmem:[%s3 + $0xa8] sm:$0xff]
  %v3176 = vld [vmem:[%s3 + $0xb0] sm:$0xff]
  %v3177 = vld [vmem:[%s3 + $0xb8] sm:$0xff]
  %v3178 = vld [vmem:[%s3 + $0xc0] sm:$0xff]
  %v3179 = vld [vmem:[%s3 + $0xc8] sm:$0xff]
  %v3180 = vld [vmem:[%s3 + $0xd0] sm:$0xff]
  %v3181 = vld [vmem:[%s3 + $0xd8] sm:$0xff]
  %v3182 = vld [vmem:[%s3 + $0xe0] sm:$0xff]
  %v3183 = vld [vmem:[%s3 + $0xe8] sm:$0xff]
  %v3184 = vld [vmem:[%s3 + $0xf0] sm:$0xff]
  %v3185 = vld [vmem:[%s3 + $0xf8] sm:$0xff]
  %v3186 = vld [vmem:[%s4] sm:$0x1]
  %v3188 = vlaneseq
  %v3189 = vshrl.u32 %v3188, 7
  %v3190 = vsub.s32 0, %v3189
  %v3191 = vrot.slane %v3186, %v3190
  %3193 = vmatprep.subr.mxu0 0.0
  %3194 = vmatpush1.msra.mxu0 %v3154
  %3195 = vmatprep.subr.mxu0 0.0
  %3196 = vmatpush1.msra.mxu0 %v3155
  %3197 = vmatprep.subr.mxu0 0.0
  %3198 = vmatpush1.msra.mxu0 %v3156
  %3199 = vmatprep.subr.mxu0 0.0
  %3200 = vmatpush1.msra.mxu0 %v3157
  %3201 = vmatprep.subr.mxu0 0.0
  %3202 = vmatpush1.msra.mxu0 %v3158
  %3203 = vmatprep.subr.mxu0 0.0
  %3204 = vmatpush1.msra.mxu0 %v3159
  %3205 = vmatprep.subr.mxu0 0.0
  %3206 = vmatpush1.msra.mxu0 %v3160
  %3207 = vmatprep.subr.mxu0 0.0
  %3208 = vmatpush1.msra.mxu0 %v3161
  %3209 = vmatprep.subr.mxu0 0.0
  %3210 = vmatpush1.msra.mxu0 %v3162
  %3211 = vmatprep.subr.mxu0 0.0
  %3212 = vmatpush1.msra.mxu0 %v3163
  %3213 = vmatprep.subr.mxu0 0.0
  %3214 = vmatpush1.msra.mxu0 %v3164
  %3215 = vmatprep.subr.mxu0 0.0
  %3216 = vmatpush1.msra.mxu0 %v3165
  %3217 = vmatprep.subr.mxu0 0.0
  %3218 = vmatpush1.msra.mxu0 %v3166
  %3219 = vmatprep.subr.mxu0 0.0
  %3220 = vmatpush1.msra.mxu0 %v3167
  %3221 = vmatprep.subr.mxu0 0.0
  %3222 = vmatpush1.msra.mxu0 %v3168
  %3223 = vmatprep.subr.mxu0 0.0
  %3224 = vmatpush1.msra.mxu0 %v3169
  %3225 = vmatprep.subr.mxu0 0.0
  %3226 = vmatpush1.msra.mxu0 %v3170
  %3227 = vmatprep.subr.mxu0 0.0
  %3228 = vmatpush1.msra.mxu0 %v3171
  %3229 = vmatprep.subr.mxu0 0.0
  %3230 = vmatpush1.msra.mxu0 %v3172
  %3231 = vmatprep.subr.mxu0 0.0
  %3232 = vmatpush1.msra.mxu0 %v3173
  %3233 = vmatprep.subr.mxu0 0.0
  %3234 = vmatpush1.msra.mxu0 %v3174
  %3235 = vmatprep.subr.mxu0 0.0
  %3236 = vmatpush1.msra.mxu0 %v3175
  %3237 = vmatprep.subr.mxu0 0.0
  %3238 = vmatpush1.msra.mxu0 %v3176
  %3239 = vmatprep.subr.mxu0 0.0
  %3240 = vmatpush1.msra.mxu0 %v3177
  %3241 = vmatprep.subr.mxu0 0.0
  %3242 = vmatpush1.msra.mxu0 %v3178
  %3243 = vmatprep.subr.mxu0 0.0
  %3244 = vmatpush1.msra.mxu0 %v3179
  %3245 = vmatprep.subr.mxu0 0.0
  %3246 = vmatpush1.msra.mxu0 %v3180
  %3247 = vmatprep.subr.mxu0 0.0
  %3248 = vmatpush1.msra.mxu0 %v3181
  %3249 = vmatprep.subr.mxu0 0.0
  %3250 = vmatpush1.msra.mxu0 %v3182
  %3251 = vmatprep.subr.mxu0 0.0
  %3252 = vmatpush1.msra.mxu0 %v3183
  %3253 = vmatprep.subr.mxu0 0.0
  %3254 = vmatpush1.msra.mxu0 %v3184
  %3255 = vmatprep.subr.mxu0 0.0
  %3256 = vmatpush1.msra.mxu0 %v3185
  %3257 = vmatprep.mubr.f32.mxu0 %v3153
  %3258 = vmatmul.mubr.f32.gmra.mrb[0].mxu0 %v3152
  %v3259 = vpop.f32.mrb[0].mxu0
  %v3260 = vadd.f32 %v3191, %v3259
  %v3261 = vpop.f32.mrb[0].mxu0
  %3262 = vdwg.mxu0
  %vm3263 = vcmp.gt.f32.partialorder %v3260, 0.0
  %v3264 = vmin.f32 %v3260, 0.0
  %v3265 = vmul.f32 %v3264, 1.442695
  %v3266 = vpow.pop %v3265
  %v3267 = vsub.f32 %v3266, 1.0
  %v3268 = vsel %vm3263, %v3260, %v3267
  %v3269 = vld [vmem:[%s5] sm:$0xff]
  %v3270 = vld [vmem:[%s5 + $0x8] sm:$0xff]
  %v3271 = vld [vmem:[%s5 + $0x10] sm:$0xff]
  %v3272 = vld [vmem:[%s5 + $0x18] sm:$0xff]
  %v3273 = vld [vmem:[%s5 + $0x20] sm:$0xff]
  %v3274 = vld [vmem:[%s5 + $0x28] sm:$0xff]
  %v3275 = vld [vmem:[%s5 + $0x30] sm:$0xff]
  %v3276 = vld [vmem:[%s5 + $0x38] sm:$0xff]
  %v3277 = vld [vmem:[%s5 + $0x40] sm:$0xff]
  %v3278 = vld [vmem:[%s5 + $0x48] sm:$0xff]
  %v3279 = vld [vmem:[%s5 + $0x50] sm:$0xff]
  %v3280 = vld [vmem:[%s5 + $0x58] sm:$0xff]
  %v3281 = vld [vmem:[%s5 + $0x60] sm:$0xff]
  %v3282 = vld [vmem:[%s5 + $0x68] sm:$0xff]
  %v3283 = vld [vmem:[%s5 + $0x70] sm:$0xff]
  %v3284 = vld [vmem:[%s5 + $0x78] sm:$0xff]
  %v3285 = vld [vmem:[%s6] sm:$0x1]
  %v3287 = vlaneseq
  %v3288 = vshrl.u32 %v3287, 7
  %v3289 = vsub.s32 0, %v3288
  %v3290 = vrot.slane %v3285, %v3289
  %3292 = vmatprep.subr.mxu0 0.0
  %3293 = vmatpush1.msra.mxu0 %v3269
  %3294 = vmatprep.subr.mxu0 0.0
  %3295 = vmatpush1.msra.mxu0 %v3270
  %3296 = vmatprep.subr.mxu0 0.0
  %3297 = vmatpush1.msra.mxu0 %v3271
  %3298 = vmatprep.subr.mxu0 0.0
  %3299 = vmatpush1.msra.mxu0 %v3272
  %3300 = vmatprep.subr.mxu0 0.0
  %3301 = vmatpush1.msra.mxu0 %v3273
  %3302 = vmatprep.subr.mxu0 0.0
  %3303 = vmatpush1.msra.mxu0 %v3274
  %3304 = vmatprep.subr.mxu0 0.0
  %3305 = vmatpush1.msra.mxu0 %v3275
  %3306 = vmatprep.subr.mxu0 0.0
  %3307 = vmatpush1.msra.mxu0 %v3276
  %3308 = vmatprep.subr.mxu0 0.0
  %3309 = vmatpush1.msra.mxu0 %v3277
  %3310 = vmatprep.subr.mxu0 0.0
  %3311 = vmatpush1.msra.mxu0 %v3278
  %3312 = vmatprep.subr.mxu0 0.0
  %3313 = vmatpush1.msra.mxu0 %v3279
  %3314 = vmatprep.subr.mxu0 0.0
  %3315 = vmatpush1.msra.mxu0 %v3280
  %3316 = vmatprep.subr.mxu0 0.0
  %3317 = vmatpush1.msra.mxu0 %v3281
  %3318 = vmatprep.subr.mxu0 0.0
  %3319 = vmatpush1.msra.mxu0 %v3282
  %3320 = vmatprep.subr.mxu0 0.0
  %3321 = vmatpush1.msra.mxu0 %v3283
  %3322 = vmatprep.subr.mxu0 0.0
  %3323 = vmatpush1.msra.mxu0 %v3284
  %3324 = vmatprep.subr.mxu0 0.0
  %3325 = vmatpush1.msra.mxu0 0.0
  %3326 = vmatprep.subr.mxu0 0.0
  %3327 = vmatpush1.msra.mxu0 0.0
  %3328 = vmatprep.subr.mxu0 0.0
  %3329 = vmatpush1.msra.mxu0 0.0
  %3330 = vmatprep.subr.mxu0 0.0
  %3331 = vmatpush1.msra.mxu0 0.0
  %3332 = vmatprep.subr.mxu0 0.0
  %3333 = vmatpush1.msra.mxu0 0.0
  %3334 = vmatprep.subr.mxu0 0.0
  %3335 = vmatpush1.msra.mxu0 0.0
  %3336 = vmatprep.subr.mxu0 0.0
  %3337 = vmatpush1.msra.mxu0 0.0
  %3338 = vmatprep.subr.mxu0 0.0
  %3339 = vmatpush1.msra.mxu0 0.0
  %3340 = vmatprep.subr.mxu0 0.0
  %3341 = vmatpush1.msra.mxu0 0.0
  %3342 = vmatprep.subr.mxu0 0.0
  %3343 = vmatpush1.msra.mxu0 0.0
  %3344 = vmatprep.subr.mxu0 0.0
  %3345 = vmatpush1.msra.mxu0 0.0
  %3346 = vmatprep.subr.mxu0 0.0
  %3347 = vmatpush1.msra.mxu0 0.0
  %3348 = vmatprep.subr.mxu0 0.0
  %3349 = vmatpush1.msra.mxu0 0.0
  %3350 = vmatprep.subr.mxu0 0.0
  %3351 = vmatpush1.msra.mxu0 0.0
  %3352 = vmatprep.subr.mxu0 0.0
  %3353 = vmatpush1.msra.mxu0 0.0
  %3354 = vmatprep.subr.mxu0 0.0
  %3355 = vmatpush1.msra.mxu0 0.0
  %3356 = vmatprep.mubr.f32.mxu0 0.0
  %3357 = vmatmul.mubr.f32.gmra.mrb[0].mxu0 %v3268
  %v3358 = vpop.f32.mrb[0].mxu0
  %v3359 = vadd.f32 %v3290, %v3358
  %v3360 = vpop.f32.mrb[0].mxu0
  %3361 = vdwg.mxu0
  %vm3362 = vcmp.lt.s32.totalorder %v1756, 4
  %v3363 = vxor.u32 %v3359, 2147483648
  %v3364 = vmul.f32 %v3363, 1.442695
  %v3365 = vpow.pop %v3364
  %v3366 = vadd.f32 %v3365, 1.0
  %v3367 = vrcp.pop %v3366
  %v3368 = vmul.f32 1.0, %v3367
  %v3369 = vsel %vm3362, %v3368, 0.0
  %v3370 = vsub.f32 1.0, %v3368
  %3372 = vrot.lane.b32.xlu0 %v3370, 127
  %v3373 = vpop.permute.xlu0 %3372
  %v3375 = vmul.f32 %v3370, %v3373
  %3376 = vrot.lane.b32.xlu0 %v3370, 126
  %v3377 = vpop.permute.xlu0 %3376
  %v3379 = vmul.f32 %v3375, %v3377
  %3380 = vrot.lane.b32.xlu0 %v3370, 125
  %v3381 = vpop.permute.xlu0 %3380
  %v3383 = vmul.f32 %v3379, %v3381
  %vm3384 = vcmp.eq.s32.totalorder %v1756, 0
  %vm3385 = vcmp.eq.s32.totalorder %v1756, 1
  %vm3386 = vcmp.eq.s32.totalorder %v1756, 2
  %vm3387 = vcmp.eq.s32.totalorder %v1756, 3
  %3389 = vset.pattern.permute.xlu0 0
  %3390 = vperm.xlu0 %3389, %v3383
  %v3391 = vpop.permute.xlu0 %3390
  %v3393 = vsel %vm3387, %v3391, 0.0
  %3395 = vset.pattern.permute.xlu0 0
  %3396 = vperm.xlu0 %3395, %v3379
  %v3397 = vpop.permute.xlu0 %3396
  %v3399 = vsel %vm3386, %v3397, %v3393
  %3401 = vset.pattern.permute.xlu0 0
  %3402 = vperm.xlu0 %3401, %v3375
  %v3403 = vpop.permute.xlu0 %3402
  %v3405 = vsel %vm3385, %v3403, %v3399
  %3406 = vset.pattern.permute.xlu0 0
  %3407 = vperm.xlu0 %3406, %v3370
  %v3408 = vpop.permute.xlu0 %3407
  %v3410 = vsel %vm3384, %v3408, %v3405
  %v3411 = vsel %vm3362, %v3359, -1e+30
  %vm3412 = vcmask 1041408
  %v3413 = vsel %vm3412, %v3411, -inf
  %3414 = vmax.xlane.f32.xlu0 %v3413
  %v3415 = vpop.xlane.xlu0 %3414
  %vm3416 = vcmp.eq.f32.partialorder %v3411, %v3415
  %v3417 = vsel %vm3416, %v1756, 128
  %v3418 = vsel %vm3412, %v3417, 2147483647
  %v3419 = vand.u32 %v3418, 65535
  %v3420 = vshra.s32 %v3418, 16
  %v3421 = vcvt.s32.f32 %v3419
  %v3422 = vcvt.s32.f32 %v3420
  %3423 = vmin.xlane.f32.xlu0 %v3422
  %v3424 = vpop.xlane.xlu0 %3423
  %vm3425 = vcmp.eq.f32.partialorder %v3422, %v3424
  %v3426 = vsel %vm3425, %v3421, inf
  %3427 = vmin.xlane.f32.xlu0 %v3426
  %v3428 = vpop.xlane.xlu0 %3427
  %v3429 = vcvt.f32.s32 %v3428
  %v3430 = vcvt.f32.s32 %v3424
  %v3431 = vshll.u32 %v3430, 16
  %v3432 = vadd.s32 %v3431, %v3429
  %v3433 = vcvt.s32.f32 %v3432
  %v3437 = vcombine.low %v3369, %v3410
  %v3439 = vunpack.c.l.s4 1983009808
  %v3440 = vunpack.c.0.s8 %v3439
  %v3441 = vlaneseq
  %v3442 = vshrl.u32 %v3441, 7
  %v3443 = vsub.s32 %v3440, %v3442
  %v3444 = vrot.slane %v3437, %v3443
  %v3446 = vunpack.c.l.s4 1983009808
  %v3447 = vunpack.c.0.s8 %v3446
  %v3448 = vlaneseq
  %v3449 = vshrl.u32 %v3448, 7
  %v3450 = vsub.s32 %v3447, %v3449
  %v3451 = vrot.slane %v3433, %v3450
  %v3452 = vcombine.low %v3444, %v3451
  %3454 = vst [vmem:[%s7] sm:$0x3f] %v3452
  // Predicated region
  $region30: #{surv_forward.1} parent=0 // pred_check
    _
  $region31: #{surv_forward.1} parent=0 // pred_check_branch
    %3456 = sbr.rel (0) target = $region33
  $region32: #{surv_forward.1} parent=0 // pred_region
    _
  $region33: #{surv_forward.1} parent=0 // pred_fallthru
    _
  // Predicated region
  $region34: #{surv_forward.1} parent=0 // pred_check
    _
  $region35: #{surv_forward.1} parent=0 // pred_check_branch
    %3458 = sbr.rel (0) target = $region37
  $region36: #{surv_forward.1} parent=0 // pred_region
    _
  $region37: #{surv_forward.1} parent=0 // pred_fallthru
    _

</llo_original>
